<compile_context>
chip_gen: v7x
topology: tpu7x:2x2x1
jax: 0.10.0
libtpu: 0.0.40
codegen_flags: <defaults>
</compile_context>

<pallas_src>
import functools
import math

import jax
import jax.numpy as jnp
from jax.experimental import pallas as pl
from jax.experimental.pallas import tpu as pltpu


def mhsa_kernel(x_ref, wqkv_ref, bqkv_ref, wo_ref, bo_ref, gamma_ref,
                lnw_ref, lnb_ref, o_ref, *, num_heads, seq_len, eps,
                compute_dtype, approx_recip):
    rows, C = x_ref.shape
    L = seq_len
    Bt = rows // L
    H = num_heads
    dh = C // H
    cd = compute_dtype

    # Parameters: loaded (and cast) once per grid step.
    wqkv = wqkv_ref[...].astype(cd)        # (C, 3C) pre-transposed, Q pre-scaled
    bqkv = bqkv_ref[...]                   # (1, 3C)
    wo = wo_ref[...].astype(cd)            # (C, C)  pre-transposed Wo
    bo = bo_ref[...]                       # (1, C)
    gamma = gamma_ref[0]                   # scalar from SMEM
    lnw = lnw_ref[...]                     # (1, C)
    lnb = lnb_ref[...]                     # (1, C)

    # Fused QKV projection for the whole batch tile: one fat MXU matmul
    # (M = Bt*L), bias broadcast emitted once, single full-tensor dtype cast.
    x2d = x_ref[...]                                                   # (Bt*L, C) f32
    qkv = jnp.dot(x2d.astype(cd), wqkv,
                  preferred_element_type=jnp.float32) + bqkv           # (Bt*L, 3C) f32
    qkv_cd = qkv.astype(cd)

    # Per-batch / per-head attention; head outputs stay in vregs and are folded
    # head-by-head into the (pre-transposed) output projection accumulator.
    attn_rows = []
    for bi in range(Bt):                   # static loop, Bt is small
        qkv_b = qkv_cd[bi * L:(bi + 1) * L, :]        # sublane-aligned row slice
        attn_b = None
        for h in range(H):
            # TODO(synk): head-batched contraction would remove these dh=8 lane
            # sub-slices; pending bundle-dump check of the (L,H,dh) relayout.
            cols = slice(h * dh, (h + 1) * dh)
            qh = qkv_b[:, cols]                                   # scale folded into Wq
            kh = qkv_b[:, C + h * dh:C + (h + 1) * dh]
            vh = qkv_b[:, 2 * C + h * dh:2 * C + (h + 1) * dh]

            # q @ k^T with no explicit transpose: contract last dims of both.
            s = jax.lax.dot_general(
                qh, kh,
                dimension_numbers=(((1,), (1,)), ((), ())),
                preferred_element_type=jnp.float32)               # (L, L)

            s = s - jnp.max(s, axis=-1, keepdims=True)
            p = jnp.exp(s)                                        # unnormalized probs
            denom = jnp.sum(p, axis=-1, keepdims=True)            # (L, 1)

            oh = jnp.dot(p.astype(cd), vh,
                         preferred_element_type=jnp.float32)      # (L, dh)
            # Normalize AFTER P@V: L*dh multiplies instead of L*L.
            oh = oh * pl.reciprocal(denom, approx=approx_recip)

            # Fold the output projection per head: oh @ Wo^T[h*dh:(h+1)*dh, :]
            contrib = jnp.dot(oh.astype(cd), wo[cols, :],
                              preferred_element_type=jnp.float32)  # (L, C)
            attn_b = contrib if attn_b is None else attn_b + contrib
        attn_rows.append(attn_b)

    attn = attn_rows[0] if Bt == 1 else jnp.concatenate(attn_rows, axis=0)

    # Batched epilogue: gamma-gated residual + LayerNorm, one store (all f32).
    out = gamma * (attn + bo) + x2d
    mean = jnp.mean(out, axis=-1, keepdims=True)
    var = jnp.mean(jnp.square(out - mean), axis=-1, keepdims=True)
    out = (out - mean) * jax.lax.rsqrt(var + eps)
    o_ref[...] = out * lnw + lnb


def _detect_num_tensorcores():
    """Best-effort TensorCore count of the local device (v7x: 2, v5e/v6e: 1)."""
    try:
        return max(1, int(getattr(jax.devices()[0], "num_cores", 1)))
    except Exception:
        return 1


def multihead_self_attention(x, params, *, num_heads=4, eps=1e-5,
                             compute_dtype=jnp.float32, approx_recip=False,
                             num_cores=None):
    """x: (B, C, T, F) float32 -> (B, C, T, F) float32."""
    wq, wk, wv, bq, bk, bv, wo, bo, gamma, lnw, lnb = params
    B, C, T, F = x.shape
    L = T * F
    assert C % num_heads == 0
    dh = C // num_heads
    scale = 1.0 / math.sqrt(dh)

    # One-time wrapper-side layout plumbing:
    #  * pre-transpose weights to (C_in, C_out) so the kernel never transposes,
    #  * fuse Wq/Wk/Wv (+biases) into a single QKV projection,
    #  * fold the softmax 1/sqrt(dh) scale into the Q columns/bias.
    wqkv_t = jnp.concatenate([wq.T * scale, wk.T, wv.T], axis=1)      # (C, 3C)
    bqkv = jnp.concatenate([bq * scale, bk, bv]).reshape(1, 3 * C)    # (1, 3C)
    wo_t = wo.T                                                       # (C, C)

    # (B, C, T, F) -> (B*L, C) sequence-major rows, channels on the lane dim.
    seq2d = jnp.transpose(x.reshape(B, C, L), (0, 2, 1)).reshape(B * L, C)

    if num_cores is None:
        num_cores = _detect_num_tensorcores()
    if num_cores > 1 and B % num_cores == 0:
        # v7x: actually shard the batch axis across the TensorCores.
        batch_block, steps = B // num_cores, num_cores
        dim_sem = (pltpu.CORE_PARALLEL,)
    else:
        # v5e / v6e (single TensorCore): one fat grid step, no per-step overhead.
        batch_block, steps = B, 1
        dim_sem = ("arbitrary",)
    rows_blk = batch_block * L

    kernel = functools.partial(mhsa_kernel, num_heads=num_heads, seq_len=L,
                               eps=eps, compute_dtype=compute_dtype,
                               approx_recip=approx_recip)
    full2d = lambda b: (0, 0)

    out2d = pl.pallas_call(
        kernel,
        out_shape=jax.ShapeDtypeStruct((B * L, C), jnp.float32),
        grid=(steps,),
        in_specs=[
            pl.BlockSpec((rows_blk, C), lambda b: (b, 0)),            # seq rows tile
            pl.BlockSpec((C, 3 * C), full2d),                         # fused Wqkv^T
            pl.BlockSpec((1, 3 * C), full2d),                         # fused bqkv
            pl.BlockSpec((C, C), full2d),                             # Wo^T
            pl.BlockSpec((1, C), full2d),                             # bo
            pl.BlockSpec(memory_space=pltpu.MemorySpace.SMEM),        # gamma (1,)
            pl.BlockSpec((1, C), full2d),                             # ln weight
            pl.BlockSpec((1, C), full2d),                             # ln bias
        ],
        out_specs=pl.BlockSpec((rows_blk, C), lambda b: (b, 0)),
        compiler_params=pltpu.CompilerParams(dimension_semantics=dim_sem),
    )(seq2d, wqkv_t, bqkv, wo_t, bo.reshape(1, C), gamma,
      lnw.reshape(1, C), lnb.reshape(1, C))

    out = out2d.reshape(B, L, C)
    return jnp.transpose(out, (0, 2, 1)).reshape(B, C, T, F)


def reference(x, params, *, num_heads=4, eps=1e-5):
    """Pure-JAX reference of the PyTorch forward pass."""
    wq, wk, wv, bq, bk, bv, wo, bo, gamma, lnw, lnb = params
    B, C, T, F = x.shape
    L = T * F
    dh = C // num_heads
    seq = jnp.transpose(x.reshape(B, C, L), (0, 2, 1))                # (B, L, C)
    q = seq @ wq.T + bq
    k = seq @ wk.T + bk
    v = seq @ wv.T + bv
    qh = q.reshape(B, L, num_heads, dh).transpose(0, 2, 1, 3)
    kh = k.reshape(B, L, num_heads, dh).transpose(0, 2, 1, 3)
    vh = v.reshape(B, L, num_heads, dh).transpose(0, 2, 1, 3)
    s = jnp.einsum('bhqd,bhkd->bhqk', qh, kh) / jnp.sqrt(dh)
    p = jax.nn.softmax(s, axis=-1)
    o = jnp.einsum('bhqk,bhkd->bhqd', p, vh)
    o = o.transpose(0, 2, 1, 3).reshape(B, L, C)
    attn = o @ wo.T + bo
    out = gamma[0] * attn + seq
    mean = out.mean(-1, keepdims=True)
    var = ((out - mean) ** 2).mean(-1, keepdims=True)
    out = (out - mean) / jnp.sqrt(var + eps) * lnw + lnb
    return jnp.transpose(out, (0, 2, 1)).reshape(B, C, T, F)


def make_params(key, channels):
    C = channels
    ks = jax.random.split(key, 8)
    scale = 1.0 / math.sqrt(C)
    wq = jax.random.normal(ks[0], (C, C), jnp.float32) * scale
    wk = jax.random.normal(ks[1], (C, C), jnp.float32) * scale
    wv = jax.random.normal(ks[2], (C, C), jnp.float32) * scale
    wo = jax.random.normal(ks[3], (C, C), jnp.float32) * scale
    bq = jax.random.normal(ks[4], (C,), jnp.float32) * 0.01
    bk = jax.random.normal(ks[5], (C,), jnp.float32) * 0.01
    bv = jax.random.normal(ks[6], (C,), jnp.float32) * 0.01
    bo = jax.random.normal(ks[7], (C,), jnp.float32) * 0.01
    # PyTorch inits gamma = 0 (which would zero out the attention branch);
    # use a nonzero deterministic value so the attention path is exercised.
    gamma = jnp.array([0.5], jnp.float32)
    lnw = jnp.ones((C,), jnp.float32)
    lnb = jnp.zeros((C,), jnp.float32)
    return (wq, wk, wv, bq, bk, bv, wo, bo, gamma, lnw, lnb)


if __name__ == "__main__":
    B, C, T, F = 2, 32, 8, 8     # channels divisible by num_heads=4
    key = jax.random.PRNGKey(0)
    kx, kp = jax.random.split(key)
    x = jax.random.normal(kx, (B, C, T, F), jnp.float32)
    params = make_params(kp, C)

    out = multihead_self_attention(x, params, num_heads=4)
    out = jax.block_until_ready(out)

    ref = reference(x, params, num_heads=4)
    assert out.shape == (B, C, T, F)
    # Default path is f32 with the exact reciprocal -> 1e-4 agreement.
    # (compute_dtype=bf16 or approx_recip=True would need a looser tolerance.)
    max_diff = jnp.max(jnp.abs(out - ref))
    assert jnp.allclose(out, ref, atol=1e-4, rtol=1e-4), (
        f"max abs diff = {max_diff}")
    print("KERNEL_OK")
</pallas_src>

<mosaic_0001>
module attributes {stable_mosaic.version = 11 : i64} {
  func.func @mhsa_kernel(%arg0: i32, %arg1: memref<128x32xf32, #tpu.memory_space<vmem>>, %arg2: memref<32x96xf32, #tpu.memory_space<vmem>>, %arg3: memref<1x96xf32, #tpu.memory_space<vmem>>, %arg4: memref<32x32xf32, #tpu.memory_space<vmem>>, %arg5: memref<1x32xf32, #tpu.memory_space<vmem>>, %arg6: memref<1xf32, #tpu.memory_space<smem>>, %arg7: memref<1x32xf32, #tpu.memory_space<vmem>>, %arg8: memref<1x32xf32, #tpu.memory_space<vmem>>, %arg9: memref<128x32xf32, #tpu.memory_space<vmem>>) attributes {dimension_semantics = [#tpu.dimension_semantics<arbitrary>], iteration_bounds = array<i64: 1>, scalar_prefetch = 0 : i64, scratch_operands = 0 : i64, tpu.core_type = #tpu.core_type<tc>, window_params = [{transform_indices = @transform_0, window_bounds = array<i64: 128, 32>}, {pipeline_mode = #tpu.pipeline_mode<synchronous>, transform_indices = @transform_1, window_bounds = array<i64: 32, 96>}, {pipeline_mode = #tpu.pipeline_mode<synchronous>, transform_indices = @transform_2, window_bounds = array<i64: 1, 96>}, {pipeline_mode = #tpu.pipeline_mode<synchronous>, transform_indices = @transform_3, window_bounds = array<i64: 32, 32>}, {pipeline_mode = #tpu.pipeline_mode<synchronous>, transform_indices = @transform_4, window_bounds = array<i64: 1, 32>}, {transform_indices = @transform_5, window_bounds = array<i64: 1>}, {pipeline_mode = #tpu.pipeline_mode<synchronous>, transform_indices = @transform_6, window_bounds = array<i64: 1, 32>}, {pipeline_mode = #tpu.pipeline_mode<synchronous>, transform_indices = @transform_7, window_bounds = array<i64: 1, 32>}, {transform_indices = @transform_8, window_bounds = array<i64: 128, 32>}]} {
    %c0 = arith.constant 0 : index
    %c0_0 = arith.constant 0 : index
    %0 = vector.load %arg2[%c0, %c0_0] : memref<32x96xf32, #tpu.memory_space<vmem>>, vector<32x96xf32>
    %c0_1 = arith.constant 0 : index
    %c0_2 = arith.constant 0 : index
    %1 = vector.load %arg3[%c0_1, %c0_2] : memref<1x96xf32, #tpu.memory_space<vmem>>, vector<1x96xf32>
    %c0_3 = arith.constant 0 : index
    %c0_4 = arith.constant 0 : index
    %2 = vector.load %arg4[%c0_3, %c0_4] : memref<32x32xf32, #tpu.memory_space<vmem>>, vector<32x32xf32>
    %c0_5 = arith.constant 0 : index
    %c0_6 = arith.constant 0 : index
    %3 = vector.load %arg5[%c0_5, %c0_6] : memref<1x32xf32, #tpu.memory_space<vmem>>, vector<1x32xf32>
    %c0_7 = arith.constant 0 : index
    %4 = memref.load %arg6[%c0_7] : memref<1xf32, #tpu.memory_space<smem>>
    %c0_8 = arith.constant 0 : index
    %c0_9 = arith.constant 0 : index
    %5 = vector.load %arg7[%c0_8, %c0_9] : memref<1x32xf32, #tpu.memory_space<vmem>>, vector<1x32xf32>
    %c0_10 = arith.constant 0 : index
    %c0_11 = arith.constant 0 : index
    %6 = vector.load %arg8[%c0_10, %c0_11] : memref<1x32xf32, #tpu.memory_space<vmem>>, vector<1x32xf32>
    %c0_12 = arith.constant 0 : index
    %c0_13 = arith.constant 0 : index
    %7 = vector.load %arg1[%c0_12, %c0_13] : memref<128x32xf32, #tpu.memory_space<vmem>>, vector<128x32xf32>
    %cst = arith.constant dense<0.000000e+00> : vector<128x96xf32>
    %8 = tpu.matmul %7, %0, %cst {dimension_numbers = #tpu.dot_dimension_numbers<[1], [0], [0], [1], [0, 0, 1, 1], [], []>} : vector<128x32xf32>, vector<32x96xf32>, vector<128x96xf32> -> vector<128x96xf32>
    %9 = vector.broadcast %1 : vector<1x96xf32> to vector<128x96xf32>
    %10 = arith.addf %8, %9 : vector<128x96xf32>
    %11 = vector.extract_strided_slice %10 {offsets = [0, 0], sizes = [64, 96], strides = [1, 1]} : vector<128x96xf32> to vector<64x96xf32>
    %12 = vector.extract_strided_slice %11 {offsets = [0, 0], sizes = [64, 8], strides = [1, 1]} : vector<64x96xf32> to vector<64x8xf32>
    %13 = vector.extract_strided_slice %11 {offsets = [0, 32], sizes = [64, 8], strides = [1, 1]} : vector<64x96xf32> to vector<64x8xf32>
    %14 = vector.extract_strided_slice %11 {offsets = [0, 64], sizes = [64, 8], strides = [1, 1]} : vector<64x96xf32> to vector<64x8xf32>
    %cst_14 = arith.constant dense<0.000000e+00> : vector<64x64xf32>
    %15 = tpu.matmul %12, %13, %cst_14 {dimension_numbers = #tpu.dot_dimension_numbers<[1], [1], [0], [0], [0, 0, 1, 0], [], []>} : vector<64x8xf32>, vector<64x8xf32>, vector<64x64xf32> -> vector<64x64xf32>
    %cst_15 = arith.constant dense<0xFF800000> : vector<64xf32>
    %16 = vector.multi_reduction <maximumf>, %15, %cst_15 [1] : vector<64x64xf32> to vector<64xf32>
    %17 = vector.shape_cast %16 : vector<64xf32> to vector<64x1xf32>
    %18 = vector.broadcast %17 : vector<64x1xf32> to vector<64x64xf32>
    %19 = arith.subf %15, %18 : vector<64x64xf32>
    %20 = math.exp %19 : vector<64x64xf32>
    %cst_16 = arith.constant dense<0.000000e+00> : vector<64xf32>
    %21 = vector.multi_reduction <add>, %20, %cst_16 [1] : vector<64x64xf32> to vector<64xf32>
    %22 = vector.shape_cast %21 : vector<64xf32> to vector<64x1xf32>
    %cst_17 = arith.constant dense<0.000000e+00> : vector<64x8xf32>
    %23 = tpu.matmul %20, %14, %cst_17 {dimension_numbers = #tpu.dot_dimension_numbers<[1], [0], [0], [1], [0, 0, 1, 1], [], []>} : vector<64x64xf32>, vector<64x8xf32>, vector<64x8xf32> -> vector<64x8xf32>
    %24 = tpu.reciprocal %22 : vector<64x1xf32> -> vector<64x1xf32>
    %25 = vector.broadcast %24 : vector<64x1xf32> to vector<64x8xf32>
    %26 = arith.mulf %23, %25 : vector<64x8xf32>
    %27 = vector.extract_strided_slice %2 {offsets = [0, 0], sizes = [8, 32], strides = [1, 1]} : vector<32x32xf32> to vector<8x32xf32>
    %cst_18 = arith.constant dense<0.000000e+00> : vector<64x32xf32>
    %28 = tpu.matmul %26, %27, %cst_18 {dimension_numbers = #tpu.dot_dimension_numbers<[1], [0], [0], [1], [0, 0, 1, 1], [], []>} : vector<64x8xf32>, vector<8x32xf32>, vector<64x32xf32> -> vector<64x32xf32>
    %29 = vector.extract_strided_slice %11 {offsets = [0, 8], sizes = [64, 8], strides = [1, 1]} : vector<64x96xf32> to vector<64x8xf32>
    %30 = vector.extract_strided_slice %11 {offsets = [0, 40], sizes = [64, 8], strides = [1, 1]} : vector<64x96xf32> to vector<64x8xf32>
    %31 = vector.extract_strided_slice %11 {offsets = [0, 72], sizes = [64, 8], strides = [1, 1]} : vector<64x96xf32> to vector<64x8xf32>
    %cst_19 = arith.constant dense<0.000000e+00> : vector<64x64xf32>
    %32 = tpu.matmul %29, %30, %cst_19 {dimension_numbers = #tpu.dot_dimension_numbers<[1], [1], [0], [0], [0, 0, 1, 0], [], []>} : vector<64x8xf32>, vector<64x8xf32>, vector<64x64xf32> -> vector<64x64xf32>
    %cst_20 = arith.constant dense<0xFF800000> : vector<64xf32>
    %33 = vector.multi_reduction <maximumf>, %32, %cst_20 [1] : vector<64x64xf32> to vector<64xf32>
    %34 = vector.shape_cast %33 : vector<64xf32> to vector<64x1xf32>
    %35 = vector.broadcast %34 : vector<64x1xf32> to vector<64x64xf32>
    %36 = arith.subf %32, %35 : vector<64x64xf32>
    %37 = math.exp %36 : vector<64x64xf32>
    %cst_21 = arith.constant dense<0.000000e+00> : vector<64xf32>
    %38 = vector.multi_reduction <add>, %37, %cst_21 [1] : vector<64x64xf32> to vector<64xf32>
    %39 = vector.shape_cast %38 : vector<64xf32> to vector<64x1xf32>
    %cst_22 = arith.constant dense<0.000000e+00> : vector<64x8xf32>
    %40 = tpu.matmul %37, %31, %cst_22 {dimension_numbers = #tpu.dot_dimension_numbers<[1], [0], [0], [1], [0, 0, 1, 1], [], []>} : vector<64x64xf32>, vector<64x8xf32>, vector<64x8xf32> -> vector<64x8xf32>
    %41 = tpu.reciprocal %39 : vector<64x1xf32> -> vector<64x1xf32>
    %42 = vector.broadcast %41 : vector<64x1xf32> to vector<64x8xf32>
    %43 = arith.mulf %40, %42 : vector<64x8xf32>
    %44 = vector.extract_strided_slice %2 {offsets = [8, 0], sizes = [8, 32], strides = [1, 1]} : vector<32x32xf32> to vector<8x32xf32>
    %cst_23 = arith.constant dense<0.000000e+00> : vector<64x32xf32>
    %45 = tpu.matmul %43, %44, %cst_23 {dimension_numbers = #tpu.dot_dimension_numbers<[1], [0], [0], [1], [0, 0, 1, 1], [], []>} : vector<64x8xf32>, vector<8x32xf32>, vector<64x32xf32> -> vector<64x32xf32>
    %46 = arith.addf %28, %45 : vector<64x32xf32>
    %47 = vector.extract_strided_slice %11 {offsets = [0, 16], sizes = [64, 8], strides = [1, 1]} : vector<64x96xf32> to vector<64x8xf32>
    %48 = vector.extract_strided_slice %11 {offsets = [0, 48], sizes = [64, 8], strides = [1, 1]} : vector<64x96xf32> to vector<64x8xf32>
    %49 = vector.extract_strided_slice %11 {offsets = [0, 80], sizes = [64, 8], strides = [1, 1]} : vector<64x96xf32> to vector<64x8xf32>
    %cst_24 = arith.constant dense<0.000000e+00> : vector<64x64xf32>
    %50 = tpu.matmul %47, %48, %cst_24 {dimension_numbers = #tpu.dot_dimension_numbers<[1], [1], [0], [0], [0, 0, 1, 0], [], []>} : vector<64x8xf32>, vector<64x8xf32>, vector<64x64xf32> -> vector<64x64xf32>
    %cst_25 = arith.constant dense<0xFF800000> : vector<64xf32>
    %51 = vector.multi_reduction <maximumf>, %50, %cst_25 [1] : vector<64x64xf32> to vector<64xf32>
    %52 = vector.shape_cast %51 : vector<64xf32> to vector<64x1xf32>
    %53 = vector.broadcast %52 : vector<64x1xf32> to vector<64x64xf32>
    %54 = arith.subf %50, %53 : vector<64x64xf32>
    %55 = math.exp %54 : vector<64x64xf32>
    %cst_26 = arith.constant dense<0.000000e+00> : vector<64xf32>
    %56 = vector.multi_reduction <add>, %55, %cst_26 [1] : vector<64x64xf32> to vector<64xf32>
    %57 = vector.shape_cast %56 : vector<64xf32> to vector<64x1xf32>
    %cst_27 = arith.constant dense<0.000000e+00> : vector<64x8xf32>
    %58 = tpu.matmul %55, %49, %cst_27 {dimension_numbers = #tpu.dot_dimension_numbers<[1], [0], [0], [1], [0, 0, 1, 1], [], []>} : vector<64x64xf32>, vector<64x8xf32>, vector<64x8xf32> -> vector<64x8xf32>
    %59 = tpu.reciprocal %57 : vector<64x1xf32> -> vector<64x1xf32>
    %60 = vector.broadcast %59 : vector<64x1xf32> to vector<64x8xf32>
    %61 = arith.mulf %58, %60 : vector<64x8xf32>
    %62 = vector.extract_strided_slice %2 {offsets = [16, 0], sizes = [8, 32], strides = [1, 1]} : vector<32x32xf32> to vector<8x32xf32>
    %cst_28 = arith.constant dense<0.000000e+00> : vector<64x32xf32>
    %63 = tpu.matmul %61, %62, %cst_28 {dimension_numbers = #tpu.dot_dimension_numbers<[1], [0], [0], [1], [0, 0, 1, 1], [], []>} : vector<64x8xf32>, vector<8x32xf32>, vector<64x32xf32> -> vector<64x32xf32>
    %64 = arith.addf %46, %63 : vector<64x32xf32>
    %65 = vector.extract_strided_slice %11 {offsets = [0, 24], sizes = [64, 8], strides = [1, 1]} : vector<64x96xf32> to vector<64x8xf32>
    %66 = vector.extract_strided_slice %11 {offsets = [0, 56], sizes = [64, 8], strides = [1, 1]} : vector<64x96xf32> to vector<64x8xf32>
    %67 = vector.extract_strided_slice %11 {offsets = [0, 88], sizes = [64, 8], strides = [1, 1]} : vector<64x96xf32> to vector<64x8xf32>
    %cst_29 = arith.constant dense<0.000000e+00> : vector<64x64xf32>
    %68 = tpu.matmul %65, %66, %cst_29 {dimension_numbers = #tpu.dot_dimension_numbers<[1], [1], [0], [0], [0, 0, 1, 0], [], []>} : vector<64x8xf32>, vector<64x8xf32>, vector<64x64xf32> -> vector<64x64xf32>
    %cst_30 = arith.constant dense<0xFF800000> : vector<64xf32>
    %69 = vector.multi_reduction <maximumf>, %68, %cst_30 [1] : vector<64x64xf32> to vector<64xf32>
    %70 = vector.shape_cast %69 : vector<64xf32> to vector<64x1xf32>
    %71 = vector.broadcast %70 : vector<64x1xf32> to vector<64x64xf32>
    %72 = arith.subf %68, %71 : vector<64x64xf32>
    %73 = math.exp %72 : vector<64x64xf32>
    %cst_31 = arith.constant dense<0.000000e+00> : vector<64xf32>
    %74 = vector.multi_reduction <add>, %73, %cst_31 [1] : vector<64x64xf32> to vector<64xf32>
    %75 = vector.shape_cast %74 : vector<64xf32> to vector<64x1xf32>
    %cst_32 = arith.constant dense<0.000000e+00> : vector<64x8xf32>
    %76 = tpu.matmul %73, %67, %cst_32 {dimension_numbers = #tpu.dot_dimension_numbers<[1], [0], [0], [1], [0, 0, 1, 1], [], []>} : vector<64x64xf32>, vector<64x8xf32>, vector<64x8xf32> -> vector<64x8xf32>
    %77 = tpu.reciprocal %75 : vector<64x1xf32> -> vector<64x1xf32>
    %78 = vector.broadcast %77 : vector<64x1xf32> to vector<64x8xf32>
    %79 = arith.mulf %76, %78 : vector<64x8xf32>
    %80 = vector.extract_strided_slice %2 {offsets = [24, 0], sizes = [8, 32], strides = [1, 1]} : vector<32x32xf32> to vector<8x32xf32>
    %cst_33 = arith.constant dense<0.000000e+00> : vector<64x32xf32>
    %81 = tpu.matmul %79, %80, %cst_33 {dimension_numbers = #tpu.dot_dimension_numbers<[1], [0], [0], [1], [0, 0, 1, 1], [], []>} : vector<64x8xf32>, vector<8x32xf32>, vector<64x32xf32> -> vector<64x32xf32>
    %82 = arith.addf %64, %81 : vector<64x32xf32>
    %83 = vector.extract_strided_slice %10 {offsets = [64, 0], sizes = [64, 96], strides = [1, 1]} : vector<128x96xf32> to vector<64x96xf32>
    %84 = vector.extract_strided_slice %83 {offsets = [0, 0], sizes = [64, 8], strides = [1, 1]} : vector<64x96xf32> to vector<64x8xf32>
    %85 = vector.extract_strided_slice %83 {offsets = [0, 32], sizes = [64, 8], strides = [1, 1]} : vector<64x96xf32> to vector<64x8xf32>
    %86 = vector.extract_strided_slice %83 {offsets = [0, 64], sizes = [64, 8], strides = [1, 1]} : vector<64x96xf32> to vector<64x8xf32>
    %cst_34 = arith.constant dense<0.000000e+00> : vector<64x64xf32>
    %87 = tpu.matmul %84, %85, %cst_34 {dimension_numbers = #tpu.dot_dimension_numbers<[1], [1], [0], [0], [0, 0, 1, 0], [], []>} : vector<64x8xf32>, vector<64x8xf32>, vector<64x64xf32> -> vector<64x64xf32>
    %cst_35 = arith.constant dense<0xFF800000> : vector<64xf32>
    %88 = vector.multi_reduction <maximumf>, %87, %cst_35 [1] : vector<64x64xf32> to vector<64xf32>
    %89 = vector.shape_cast %88 : vector<64xf32> to vector<64x1xf32>
    %90 = vector.broadcast %89 : vector<64x1xf32> to vector<64x64xf32>
    %91 = arith.subf %87, %90 : vector<64x64xf32>
    %92 = math.exp %91 : vector<64x64xf32>
    %cst_36 = arith.constant dense<0.000000e+00> : vector<64xf32>
    %93 = vector.multi_reduction <add>, %92, %cst_36 [1] : vector<64x64xf32> to vector<64xf32>
    %94 = vector.shape_cast %93 : vector<64xf32> to vector<64x1xf32>
    %cst_37 = arith.constant dense<0.000000e+00> : vector<64x8xf32>
    %95 = tpu.matmul %92, %86, %cst_37 {dimension_numbers = #tpu.dot_dimension_numbers<[1], [0], [0], [1], [0, 0, 1, 1], [], []>} : vector<64x64xf32>, vector<64x8xf32>, vector<64x8xf32> -> vector<64x8xf32>
    %96 = tpu.reciprocal %94 : vector<64x1xf32> -> vector<64x1xf32>
    %97 = vector.broadcast %96 : vector<64x1xf32> to vector<64x8xf32>
    %98 = arith.mulf %95, %97 : vector<64x8xf32>
    %99 = vector.extract_strided_slice %2 {offsets = [0, 0], sizes = [8, 32], strides = [1, 1]} : vector<32x32xf32> to vector<8x32xf32>
    %cst_38 = arith.constant dense<0.000000e+00> : vector<64x32xf32>
    %100 = tpu.matmul %98, %99, %cst_38 {dimension_numbers = #tpu.dot_dimension_numbers<[1], [0], [0], [1], [0, 0, 1, 1], [], []>} : vector<64x8xf32>, vector<8x32xf32>, vector<64x32xf32> -> vector<64x32xf32>
    %101 = vector.extract_strided_slice %83 {offsets = [0, 8], sizes = [64, 8], strides = [1, 1]} : vector<64x96xf32> to vector<64x8xf32>
    %102 = vector.extract_strided_slice %83 {offsets = [0, 40], sizes = [64, 8], strides = [1, 1]} : vector<64x96xf32> to vector<64x8xf32>
    %103 = vector.extract_strided_slice %83 {offsets = [0, 72], sizes = [64, 8], strides = [1, 1]} : vector<64x96xf32> to vector<64x8xf32>
    %cst_39 = arith.constant dense<0.000000e+00> : vector<64x64xf32>
    %104 = tpu.matmul %101, %102, %cst_39 {dimension_numbers = #tpu.dot_dimension_numbers<[1], [1], [0], [0], [0, 0, 1, 0], [], []>} : vector<64x8xf32>, vector<64x8xf32>, vector<64x64xf32> -> vector<64x64xf32>
    %cst_40 = arith.constant dense<0xFF800000> : vector<64xf32>
    %105 = vector.multi_reduction <maximumf>, %104, %cst_40 [1] : vector<64x64xf32> to vector<64xf32>
    %106 = vector.shape_cast %105 : vector<64xf32> to vector<64x1xf32>
    %107 = vector.broadcast %106 : vector<64x1xf32> to vector<64x64xf32>
    %108 = arith.subf %104, %107 : vector<64x64xf32>
    %109 = math.exp %108 : vector<64x64xf32>
    %cst_41 = arith.constant dense<0.000000e+00> : vector<64xf32>
    %110 = vector.multi_reduction <add>, %109, %cst_41 [1] : vector<64x64xf32> to vector<64xf32>
    %111 = vector.shape_cast %110 : vector<64xf32> to vector<64x1xf32>
    %cst_42 = arith.constant dense<0.000000e+00> : vector<64x8xf32>
    %112 = tpu.matmul %109, %103, %cst_42 {dimension_numbers = #tpu.dot_dimension_numbers<[1], [0], [0], [1], [0, 0, 1, 1], [], []>} : vector<64x64xf32>, vector<64x8xf32>, vector<64x8xf32> -> vector<64x8xf32>
    %113 = tpu.reciprocal %111 : vector<64x1xf32> -> vector<64x1xf32>
    %114 = vector.broadcast %113 : vector<64x1xf32> to vector<64x8xf32>
    %115 = arith.mulf %112, %114 : vector<64x8xf32>
    %116 = vector.extract_strided_slice %2 {offsets = [8, 0], sizes = [8, 32], strides = [1, 1]} : vector<32x32xf32> to vector<8x32xf32>
    %cst_43 = arith.constant dense<0.000000e+00> : vector<64x32xf32>
    %117 = tpu.matmul %115, %116, %cst_43 {dimension_numbers = #tpu.dot_dimension_numbers<[1], [0], [0], [1], [0, 0, 1, 1], [], []>} : vector<64x8xf32>, vector<8x32xf32>, vector<64x32xf32> -> vector<64x32xf32>
    %118 = arith.addf %100, %117 : vector<64x32xf32>
    %119 = vector.extract_strided_slice %83 {offsets = [0, 16], sizes = [64, 8], strides = [1, 1]} : vector<64x96xf32> to vector<64x8xf32>
    %120 = vector.extract_strided_slice %83 {offsets = [0, 48], sizes = [64, 8], strides = [1, 1]} : vector<64x96xf32> to vector<64x8xf32>
    %121 = vector.extract_strided_slice %83 {offsets = [0, 80], sizes = [64, 8], strides = [1, 1]} : vector<64x96xf32> to vector<64x8xf32>
    %cst_44 = arith.constant dense<0.000000e+00> : vector<64x64xf32>
    %122 = tpu.matmul %119, %120, %cst_44 {dimension_numbers = #tpu.dot_dimension_numbers<[1], [1], [0], [0], [0, 0, 1, 0], [], []>} : vector<64x8xf32>, vector<64x8xf32>, vector<64x64xf32> -> vector<64x64xf32>
    %cst_45 = arith.constant dense<0xFF800000> : vector<64xf32>
    %123 = vector.multi_reduction <maximumf>, %122, %cst_45 [1] : vector<64x64xf32> to vector<64xf32>
    %124 = vector.shape_cast %123 : vector<64xf32> to vector<64x1xf32>
    %125 = vector.broadcast %124 : vector<64x1xf32> to vector<64x64xf32>
    %126 = arith.subf %122, %125 : vector<64x64xf32>
    %127 = math.exp %126 : vector<64x64xf32>
    %cst_46 = arith.constant dense<0.000000e+00> : vector<64xf32>
    %128 = vector.multi_reduction <add>, %127, %cst_46 [1] : vector<64x64xf32> to vector<64xf32>
    %129 = vector.shape_cast %128 : vector<64xf32> to vector<64x1xf32>
    %cst_47 = arith.constant dense<0.000000e+00> : vector<64x8xf32>
    %130 = tpu.matmul %127, %121, %cst_47 {dimension_numbers = #tpu.dot_dimension_numbers<[1], [0], [0], [1], [0, 0, 1, 1], [], []>} : vector<64x64xf32>, vector<64x8xf32>, vector<64x8xf32> -> vector<64x8xf32>
    %131 = tpu.reciprocal %129 : vector<64x1xf32> -> vector<64x1xf32>
    %132 = vector.broadcast %131 : vector<64x1xf32> to vector<64x8xf32>
    %133 = arith.mulf %130, %132 : vector<64x8xf32>
    %134 = vector.extract_strided_slice %2 {offsets = [16, 0], sizes = [8, 32], strides = [1, 1]} : vector<32x32xf32> to vector<8x32xf32>
    %cst_48 = arith.constant dense<0.000000e+00> : vector<64x32xf32>
    %135 = tpu.matmul %133, %134, %cst_48 {dimension_numbers = #tpu.dot_dimension_numbers<[1], [0], [0], [1], [0, 0, 1, 1], [], []>} : vector<64x8xf32>, vector<8x32xf32>, vector<64x32xf32> -> vector<64x32xf32>
    %136 = arith.addf %118, %135 : vector<64x32xf32>
    %137 = vector.extract_strided_slice %83 {offsets = [0, 24], sizes = [64, 8], strides = [1, 1]} : vector<64x96xf32> to vector<64x8xf32>
    %138 = vector.extract_strided_slice %83 {offsets = [0, 56], sizes = [64, 8], strides = [1, 1]} : vector<64x96xf32> to vector<64x8xf32>
    %139 = vector.extract_strided_slice %83 {offsets = [0, 88], sizes = [64, 8], strides = [1, 1]} : vector<64x96xf32> to vector<64x8xf32>
    %cst_49 = arith.constant dense<0.000000e+00> : vector<64x64xf32>
    %140 = tpu.matmul %137, %138, %cst_49 {dimension_numbers = #tpu.dot_dimension_numbers<[1], [1], [0], [0], [0, 0, 1, 0], [], []>} : vector<64x8xf32>, vector<64x8xf32>, vector<64x64xf32> -> vector<64x64xf32>
    %cst_50 = arith.constant dense<0xFF800000> : vector<64xf32>
    %141 = vector.multi_reduction <maximumf>, %140, %cst_50 [1] : vector<64x64xf32> to vector<64xf32>
    %142 = vector.shape_cast %141 : vector<64xf32> to vector<64x1xf32>
    %143 = vector.broadcast %142 : vector<64x1xf32> to vector<64x64xf32>
    %144 = arith.subf %140, %143 : vector<64x64xf32>
    %145 = math.exp %144 : vector<64x64xf32>
    %cst_51 = arith.constant dense<0.000000e+00> : vector<64xf32>
    %146 = vector.multi_reduction <add>, %145, %cst_51 [1] : vector<64x64xf32> to vector<64xf32>
    %147 = vector.shape_cast %146 : vector<64xf32> to vector<64x1xf32>
    %cst_52 = arith.constant dense<0.000000e+00> : vector<64x8xf32>
    %148 = tpu.matmul %145, %139, %cst_52 {dimension_numbers = #tpu.dot_dimension_numbers<[1], [0], [0], [1], [0, 0, 1, 1], [], []>} : vector<64x64xf32>, vector<64x8xf32>, vector<64x8xf32> -> vector<64x8xf32>
    %149 = tpu.reciprocal %147 : vector<64x1xf32> -> vector<64x1xf32>
    %150 = vector.broadcast %149 : vector<64x1xf32> to vector<64x8xf32>
    %151 = arith.mulf %148, %150 : vector<64x8xf32>
    %152 = vector.extract_strided_slice %2 {offsets = [24, 0], sizes = [8, 32], strides = [1, 1]} : vector<32x32xf32> to vector<8x32xf32>
    %cst_53 = arith.constant dense<0.000000e+00> : vector<64x32xf32>
    %153 = tpu.matmul %151, %152, %cst_53 {dimension_numbers = #tpu.dot_dimension_numbers<[1], [0], [0], [1], [0, 0, 1, 1], [], []>} : vector<64x8xf32>, vector<8x32xf32>, vector<64x32xf32> -> vector<64x32xf32>
    %154 = arith.addf %136, %153 : vector<64x32xf32>
    %155 = tpu.concatenate %82, %154 in 0 : vector<64x32xf32>, vector<64x32xf32> -> vector<128x32xf32>
    %156 = vector.broadcast %3 : vector<1x32xf32> to vector<128x32xf32>
    %157 = arith.addf %155, %156 : vector<128x32xf32>
    %158 = vector.broadcast %4 : f32 to vector<128x32xf32>
    %159 = arith.mulf %158, %157 : vector<128x32xf32>
    %160 = arith.addf %159, %7 : vector<128x32xf32>
    %cst_54 = arith.constant dense<0.000000e+00> : vector<128xf32>
    %161 = vector.multi_reduction <add>, %160, %cst_54 [1] : vector<128x32xf32> to vector<128xf32>
    %162 = vector.shape_cast %161 : vector<128xf32> to vector<128x1xf32>
    %cst_55 = arith.constant 3.200000e+01 : f32
    %163 = vector.broadcast %cst_55 : f32 to vector<128x1xf32>
    %164 = arith.divf %162, %163 : vector<128x1xf32>
    %165 = vector.broadcast %164 : vector<128x1xf32> to vector<128x32xf32>
    %166 = arith.subf %160, %165 : vector<128x32xf32>
    %167 = arith.mulf %166, %166 : vector<128x32xf32>
    %cst_56 = arith.constant dense<0.000000e+00> : vector<128xf32>
    %168 = vector.multi_reduction <add>, %167, %cst_56 [1] : vector<128x32xf32> to vector<128xf32>
    %169 = vector.shape_cast %168 : vector<128xf32> to vector<128x1xf32>
    %cst_57 = arith.constant 3.200000e+01 : f32
    %170 = vector.broadcast %cst_57 : f32 to vector<128x1xf32>
    %171 = arith.divf %169, %170 : vector<128x1xf32>
    %172 = vector.broadcast %164 : vector<128x1xf32> to vector<128x32xf32>
    %173 = arith.subf %160, %172 : vector<128x32xf32>
    %cst_58 = arith.constant 9.99999974E-6 : f32
    %174 = vector.broadcast %cst_58 : f32 to vector<128x1xf32>
    %175 = arith.addf %171, %174 : vector<128x1xf32>
    %176 = math.rsqrt %175 : vector<128x1xf32>
    %177 = vector.broadcast %176 : vector<128x1xf32> to vector<128x32xf32>
    %178 = arith.mulf %173, %177 : vector<128x32xf32>
    %179 = vector.broadcast %5 : vector<1x32xf32> to vector<128x32xf32>
    %180 = arith.mulf %178, %179 : vector<128x32xf32>
    %181 = vector.broadcast %6 : vector<1x32xf32> to vector<128x32xf32>
    %182 = arith.addf %180, %181 : vector<128x32xf32>
    %c0_59 = arith.constant 0 : index
    %c0_60 = arith.constant 0 : index
    %183 = vector.load %arg9[%c0_59, %c0_60] : memref<128x32xf32, #tpu.memory_space<vmem>>, vector<128x32xf32>
    tpu.vector_store %arg9[%c0_59, %c0_60], %182 {strides = array<i32>} : memref<128x32xf32, #tpu.memory_space<vmem>>, vector<128x32xf32>,
    return
  }
  func.func @transform_0(%arg0: i32) -> (i32, i32) {
    %c0_i32 = arith.constant 0 : i32
    %c0_i32_0 = arith.constant 0 : i32
    return %arg0, %c0_i32 : i32, i32
  }
  func.func @transform_1(%arg0: i32) -> (i32, i32) {
    %c0_i32 = arith.constant 0 : i32
    %c0_i32_0 = arith.constant 0 : i32
    %c0_i32_1 = arith.constant 0 : i32
    return %c0_i32, %c0_i32_0 : i32, i32
  }
  func.func @transform_2(%arg0: i32) -> (i32, i32) {
    %c0_i32 = arith.constant 0 : i32
    %c0_i32_0 = arith.constant 0 : i32
    %c0_i32_1 = arith.constant 0 : i32
    return %c0_i32, %c0_i32_0 : i32, i32
  }
  func.func @transform_3(%arg0: i32) -> (i32, i32) {
    %c0_i32 = arith.constant 0 : i32
    %c0_i32_0 = arith.constant 0 : i32
    %c0_i32_1 = arith.constant 0 : i32
    return %c0_i32, %c0_i32_0 : i32, i32
  }
  func.func @transform_4(%arg0: i32) -> (i32, i32) {
    %c0_i32 = arith.constant 0 : i32
    %c0_i32_0 = arith.constant 0 : i32
    %c0_i32_1 = arith.constant 0 : i32
    return %c0_i32, %c0_i32_0 : i32, i32
  }
  func.func @transform_5(%arg0: i32) -> i32 {
    %c0_i32 = arith.constant 0 : i32
    %c0_i32_0 = arith.constant 0 : i32
    return %c0_i32 : i32
  }
  func.func @transform_6(%arg0: i32) -> (i32, i32) {
    %c0_i32 = arith.constant 0 : i32
    %c0_i32_0 = arith.constant 0 : i32
    %c0_i32_1 = arith.constant 0 : i32
    return %c0_i32, %c0_i32_0 : i32, i32
  }
  func.func @transform_7(%arg0: i32) -> (i32, i32) {
    %c0_i32 = arith.constant 0 : i32
    %c0_i32_0 = arith.constant 0 : i32
    %c0_i32_1 = arith.constant 0 : i32
    return %c0_i32, %c0_i32_0 : i32, i32
  }
  func.func @transform_8(%arg0: i32) -> (i32, i32) {
    %c0_i32 = arith.constant 0 : i32
    %c0_i32_0 = arith.constant 0 : i32
    return %arg0, %c0_i32 : i32, i32
  }
}

</mosaic_0001>

<llo_original>
// kernel: tpu_custom_call.1
$region0: #{tpu_custom_call.1}
  #allocation0 [shape = 'u32[]', space=smem, size = 0x4, offset = 0x4, fixed_abs, tag = 'smem constant byte address 0x4 - core index']
  #allocation1 [shape = 'u32[144,128]{1,0:T(1,128)}', space=vmem, size = 0x12000, scoped, tag = 'internal scratch']
  #allocation2 [shape = 'f32[1]{0:T(128)S(6)}', space=smem, size = 0x200, scoped, tag = 'scoped memory for tpu_custom_call.1']
  %s0 = inlined_call_operand.vmem [shape: f32[128,32], index: 0, kind: input, shape index: {}]
  %s1 = inlined_call_operand.vmem [shape: f32[32,96], index: 1, kind: input, shape index: {}]
  %s2 = inlined_call_operand.vmem [shape: f32[1,96], index: 2, kind: input, shape index: {}]
  %s3 = inlined_call_operand.vmem [shape: f32[32,32], index: 3, kind: input, shape index: {}]
  %s4 = inlined_call_operand.vmem [shape: f32[1,32], index: 4, kind: input, shape index: {}]
  %s5 = inlined_call_operand.<no memory space> [shape: f32[1], index: 5, kind: input, shape index: {}]
  %s6 = inlined_call_operand.vmem [shape: f32[1,32], index: 6, kind: input, shape index: {}]
  %s7 = inlined_call_operand.vmem [shape: f32[1,32], index: 7, kind: input, shape index: {}]
  %s8 = inlined_call_operand.vmem [shape: f32[128,32], index: 8, kind: output, shape index: {}]
  %s9 = sld [smem:[#allocation0]]
  $region42: #{tpu_custom_call.1} parent=0
    _
  %s11 = ssub.s32 1, %s9
  %s12 = scalar_select 0, %s11, %s9
  %13 = sst [smem:[#allocation2]] %s5
  // Predicated region
  $region2: #{tpu_custom_call.1} parent=0 // pred_check
    _
  $region3: #{tpu_custom_call.1} parent=0 // pred_check_branch
    %15 = sbr.rel (0) target = $region5
  $region4: #{tpu_custom_call.1} parent=0 // pred_region
    _
  $region5: #{tpu_custom_call.1} parent=0 // pred_fallthru
    _
  // Predicated region
  $region6: #{tpu_custom_call.1} parent=0 // pred_check
    _
  $region7: #{tpu_custom_call.1} parent=0 // pred_check_branch
    %17 = sbr.rel (0) target = $region9
  $region8: #{tpu_custom_call.1} parent=0 // pred_region
    _
  $region9: #{tpu_custom_call.1} parent=0 // pred_fallthru
    _
  // Predicated region
  $region10: #{tpu_custom_call.1} parent=0 // pred_check
    _
  $region11: #{tpu_custom_call.1} parent=0 // pred_check_branch
    %19 = sbr.rel (0) target = $region13
  $region12: #{tpu_custom_call.1} parent=0 // pred_region
    _
  $region13: #{tpu_custom_call.1} parent=0 // pred_fallthru
    _
  // Predicated region
  $region14: #{tpu_custom_call.1} parent=0 // pred_check
    _
  $region15: #{tpu_custom_call.1} parent=0 // pred_check_branch
    %21 = sbr.rel (0) target = $region17
  $region16: #{tpu_custom_call.1} parent=0 // pred_region
    _
  $region17: #{tpu_custom_call.1} parent=0 // pred_fallthru
    _
  // Predicated region
  $region18: #{tpu_custom_call.1} parent=0 // pred_check
    _
  $region19: #{tpu_custom_call.1} parent=0 // pred_check_branch
    %23 = sbr.rel (0) target = $region21
  $region20: #{tpu_custom_call.1} parent=0 // pred_region
    _
  $region21: #{tpu_custom_call.1} parent=0 // pred_fallthru
    _
  // Predicated region
  $region22: #{tpu_custom_call.1} parent=0 // pred_check
    _
  $region23: #{tpu_custom_call.1} parent=0 // pred_check_branch
    %25 = sbr.rel (0) target = $region25
  $region24: #{tpu_custom_call.1} parent=0 // pred_region
    _
  $region25: #{tpu_custom_call.1} parent=0 // pred_fallthru
    _
  // Predicated region
  $region26: #{tpu_custom_call.1} parent=0 // pred_check
    _
  $region27: #{tpu_custom_call.1} parent=0 // pred_check_branch
    %27 = sbr.rel (0) target = $region29
  $region28: #{tpu_custom_call.1} parent=0 // pred_region
    _
  $region29: #{tpu_custom_call.1} parent=0 // pred_fallthru
    _
  // Predicated region
  $region30: #{tpu_custom_call.1} parent=0 // pred_check
    _
  $region31: #{tpu_custom_call.1} parent=0 // pred_check_branch
    %29 = sbr.rel (0) target = $region33
  $region32: #{tpu_custom_call.1} parent=0 // pred_region
    _
  $region33: #{tpu_custom_call.1} parent=0 // pred_fallthru
    _
  %v30 = vld [vmem:[%s1] sm:$0xff]
  %v31 = vld [vmem:[%s1 + $0x8] sm:$0xff]
  %v32 = vld [vmem:[%s1 + $0x10] sm:$0xff]
  %v33 = vld [vmem:[%s1 + $0x18] sm:$0xff]
  %v34 = vld [vmem:[%s2] sm:$0x1]
  %v35 = vld [vmem:[%s3] sm:$0xff]
  %v36 = vld [vmem:[%s3 + $0x8] sm:$0xff]
  %v37 = vld [vmem:[%s3 + $0x10] sm:$0xff]
  %v38 = vld [vmem:[%s3 + $0x18] sm:$0xff]
  %v39 = vld [vmem:[%s4] sm:$0x1]
  %s40 = sld [smem:[#allocation2]]
  %v41 = vld [vmem:[%s6] sm:$0x1]
  %v42 = vld [vmem:[%s7] sm:$0x1]
  %v43 = vld [vmem:[%s0] sm:$0xff]
  %v44 = vld [vmem:[%s0 + $0x8] sm:$0xff]
  %v45 = vld [vmem:[%s0 + $0x10] sm:$0xff]
  %v46 = vld [vmem:[%s0 + $0x18] sm:$0xff]
  %v47 = vld [vmem:[%s0 + $0x20] sm:$0xff]
  %v48 = vld [vmem:[%s0 + $0x28] sm:$0xff]
  %v49 = vld [vmem:[%s0 + $0x30] sm:$0xff]
  %v50 = vld [vmem:[%s0 + $0x38] sm:$0xff]
  %v51 = vld [vmem:[%s0 + $0x40] sm:$0xff]
  %v52 = vld [vmem:[%s0 + $0x48] sm:$0xff]
  %v53 = vld [vmem:[%s0 + $0x50] sm:$0xff]
  %v54 = vld [vmem:[%s0 + $0x58] sm:$0xff]
  %v55 = vld [vmem:[%s0 + $0x60] sm:$0xff]
  %v56 = vld [vmem:[%s0 + $0x68] sm:$0xff]
  %v57 = vld [vmem:[%s0 + $0x70] sm:$0xff]
  %v58 = vld [vmem:[%s0 + $0x78] sm:$0xff]
  %v60 = vlaneseq
  %v61 = vshrl.u32 %v60, 7
  %v62 = vsub.s32 0, %v61
  %v63 = vrot.slane %v34, %v62
  %vm65 = vcmask 261120
  %v67 = vsel %vm65, %v43, 0
  %v70 = vsel %vm65, %v44, 0
  %v73 = vsel %vm65, %v45, 0
  %v76 = vsel %vm65, %v46, 0
  %v79 = vsel %vm65, %v47, 0
  %v82 = vsel %vm65, %v48, 0
  %v85 = vsel %vm65, %v49, 0
  %v88 = vsel %vm65, %v50, 0
  %v91 = vsel %vm65, %v51, 0
  %v94 = vsel %vm65, %v52, 0
  %v97 = vsel %vm65, %v53, 0
  %v100 = vsel %vm65, %v54, 0
  %v103 = vsel %vm65, %v55, 0
  %v106 = vsel %vm65, %v56, 0
  %v109 = vsel %vm65, %v57, 0
  %v112 = vsel %vm65, %v58, 0
  %114 = vmatprep.subr.mxu0 0.0
  %115 = vmatpush1.msra.mxu0 %v30
  %116 = vmatprep.subr.mxu0 0.0
  %117 = vmatpush1.msra.mxu0 %v31
  %118 = vmatprep.subr.mxu0 0.0
  %119 = vmatpush1.msra.mxu0 %v32
  %120 = vmatprep.subr.mxu0 0.0
  %121 = vmatpush1.msra.mxu0 %v33
  %122 = vmatprep.subr.mxu0 0.0
  %123 = vmatpush1.msra.mxu0 0.0
  %124 = vmatprep.subr.mxu0 0.0
  %125 = vmatpush1.msra.mxu0 0.0
  %126 = vmatprep.subr.mxu0 0.0
  %127 = vmatpush1.msra.mxu0 0.0
  %128 = vmatprep.subr.mxu0 0.0
  %129 = vmatpush1.msra.mxu0 0.0
  %130 = vmatprep.subr.mxu0 0.0
  %131 = vmatpush1.msra.mxu0 0.0
  %132 = vmatprep.subr.mxu0 0.0
  %133 = vmatpush1.msra.mxu0 0.0
  %134 = vmatprep.subr.mxu0 0.0
  %135 = vmatpush1.msra.mxu0 0.0
  %136 = vmatprep.subr.mxu0 0.0
  %137 = vmatpush1.msra.mxu0 0.0
  %138 = vmatprep.subr.mxu0 0.0
  %139 = vmatpush1.msra.mxu0 0.0
  %140 = vmatprep.subr.mxu0 0.0
  %141 = vmatpush1.msra.mxu0 0.0
  %142 = vmatprep.subr.mxu0 0.0
  %143 = vmatpush1.msra.mxu0 0.0
  %144 = vmatprep.subr.mxu0 0.0
  %145 = vmatpush1.msra.mxu0 0.0
  %146 = vmatprep.subr.mxu0 0.0
  %147 = vmatpush1.msra.mxu0 0.0
  %148 = vmatprep.subr.mxu0 0.0
  %149 = vmatpush1.msra.mxu0 0.0
  %150 = vmatprep.subr.mxu0 0.0
  %151 = vmatpush1.msra.mxu0 0.0
  %152 = vmatprep.subr.mxu0 0.0
  %153 = vmatpush1.msra.mxu0 0.0
  %154 = vmatprep.subr.mxu0 0.0
  %155 = vmatpush1.msra.mxu0 0.0
  %156 = vmatprep.subr.mxu0 0.0
  %157 = vmatpush1.msra.mxu0 0.0
  %158 = vmatprep.subr.mxu0 0.0
  %159 = vmatpush1.msra.mxu0 0.0
  %160 = vmatprep.subr.mxu0 0.0
  %161 = vmatpush1.msra.mxu0 0.0
  %162 = vmatprep.subr.mxu0 0.0
  %163 = vmatpush1.msra.mxu0 0.0
  %164 = vmatprep.subr.mxu0 0.0
  %165 = vmatpush1.msra.mxu0 0.0
  %166 = vmatprep.subr.mxu0 0.0
  %167 = vmatpush1.msra.mxu0 0.0
  %168 = vmatprep.subr.mxu0 0.0
  %169 = vmatpush1.msra.mxu0 0.0
  %170 = vmatprep.subr.mxu0 0.0
  %171 = vmatpush1.msra.mxu0 0.0
  %172 = vmatprep.subr.mxu0 0.0
  %173 = vmatpush1.msra.mxu0 0.0
  %174 = vmatprep.subr.mxu0 0.0
  %175 = vmatpush1.msra.mxu0 0.0
  %176 = vmatprep.subr.mxu0 0.0
  %177 = vmatpush1.msra.mxu0 0.0
  %178 = vmatprep.mubr.f32.mxu0 0.0
  %179 = vmatmul.mubr.f32.gmra.mrb[0].mxu0 %v67
  %v180 = vpop.f32.mrb[0].mxu0
  %v181 = vadd.f32 %v63, %v180
  %v182 = vpop.f32.mrb[0].mxu0
  %183 = vmatprep.mubr.f32.mxu0 0.0
  %184 = vmatmul.mubr.f32.gmra.mrb[0].mxu0 %v70
  %v185 = vpop.f32.mrb[0].mxu0
  %v186 = vadd.f32 %v63, %v185
  %v187 = vpop.f32.mrb[0].mxu0
  %188 = vmatprep.mubr.f32.mxu0 0.0
  %189 = vmatmul.mubr.f32.gmra.mrb[0].mxu0 %v73
  %v190 = vpop.f32.mrb[0].mxu0
  %v191 = vadd.f32 %v63, %v190
  %v192 = vpop.f32.mrb[0].mxu0
  %193 = vmatprep.mubr.f32.mxu0 0.0
  %194 = vmatmul.mubr.f32.gmra.mrb[0].mxu0 %v76
  %v195 = vpop.f32.mrb[0].mxu0
  %v196 = vadd.f32 %v63, %v195
  %v197 = vpop.f32.mrb[0].mxu0
  %198 = vmatprep.mubr.f32.mxu0 0.0
  %199 = vmatmul.mubr.f32.gmra.mrb[0].mxu0 %v79
  %v200 = vpop.f32.mrb[0].mxu0
  %v201 = vadd.f32 %v63, %v200
  %v202 = vpop.f32.mrb[0].mxu0
  %203 = vmatprep.mubr.f32.mxu0 0.0
  %204 = vmatmul.mubr.f32.gmra.mrb[0].mxu0 %v82
  %v205 = vpop.f32.mrb[0].mxu0
  %v206 = vadd.f32 %v63, %v205
  %v207 = vpop.f32.mrb[0].mxu0
  %208 = vmatprep.mubr.f32.mxu0 0.0
  %209 = vmatmul.mubr.f32.gmra.mrb[0].mxu0 %v85
  %v210 = vpop.f32.mrb[0].mxu0
  %v211 = vadd.f32 %v63, %v210
  %v212 = vpop.f32.mrb[0].mxu0
  %213 = vmatprep.mubr.f32.mxu0 0.0
  %214 = vmatmul.mubr.f32.gmra.mrb[0].mxu0 %v88
  %v215 = vpop.f32.mrb[0].mxu0
  %v216 = vadd.f32 %v63, %v215
  %v217 = vpop.f32.mrb[0].mxu0
  %218 = vmatprep.mubr.f32.mxu0 0.0
  %219 = vmatmul.mubr.f32.gmra.mrb[0].mxu0 %v91
  %v220 = vpop.f32.mrb[0].mxu0
  %v221 = vadd.f32 %v63, %v220
  %v222 = vpop.f32.mrb[0].mxu0
  %223 = vmatprep.mubr.f32.mxu0 0.0
  %224 = vmatmul.mubr.f32.gmra.mrb[0].mxu0 %v94
  %v225 = vpop.f32.mrb[0].mxu0
  %v226 = vadd.f32 %v63, %v225
  %v227 = vpop.f32.mrb[0].mxu0
  %228 = vmatprep.mubr.f32.mxu0 0.0
  %229 = vmatmul.mubr.f32.gmra.mrb[0].mxu0 %v97
  %v230 = vpop.f32.mrb[0].mxu0
  %v231 = vadd.f32 %v63, %v230
  %v232 = vpop.f32.mrb[0].mxu0
  %233 = vmatprep.mubr.f32.mxu0 0.0
  %234 = vmatmul.mubr.f32.gmra.mrb[0].mxu0 %v100
  %v235 = vpop.f32.mrb[0].mxu0
  %v236 = vadd.f32 %v63, %v235
  %v237 = vpop.f32.mrb[0].mxu0
  %238 = vmatprep.mubr.f32.mxu0 0.0
  %239 = vmatmul.mubr.f32.gmra.mrb[0].mxu0 %v103
  %v240 = vpop.f32.mrb[0].mxu0
  %v241 = vadd.f32 %v63, %v240
  %v242 = vpop.f32.mrb[0].mxu0
  %243 = vmatprep.mubr.f32.mxu0 0.0
  %244 = vmatmul.mubr.f32.gmra.mrb[0].mxu0 %v106
  %v245 = vpop.f32.mrb[0].mxu0
  %v246 = vadd.f32 %v63, %v245
  %v247 = vpop.f32.mrb[0].mxu0
  %248 = vmatprep.mubr.f32.mxu0 0.0
  %249 = vmatmul.mubr.f32.gmra.mrb[0].mxu0 %v109
  %v250 = vpop.f32.mrb[0].mxu0
  %v251 = vadd.f32 %v63, %v250
  %v252 = vpop.f32.mrb[0].mxu0
  %253 = vmatprep.mubr.f32.mxu0 0.0
  %254 = vmatmul.mubr.f32.gmra.mrb[0].mxu0 %v112
  %v255 = vpop.f32.mrb[0].mxu0
  %v256 = vadd.f32 %v63, %v255
  %v257 = vpop.f32.mrb[0].mxu0
  %258 = vdwg.mxu0
  %267 = vrot.lane.b32.xlu0 %v181, 96
  %v268 = vpop.permute.xlu0 %267
  %269 = vrot.lane.b32.xlu0 %v186, 96
  %v270 = vpop.permute.xlu0 %269
  %271 = vrot.lane.b32.xlu0 %v191, 96
  %v272 = vpop.permute.xlu0 %271
  %273 = vrot.lane.b32.xlu0 %v196, 96
  %v274 = vpop.permute.xlu0 %273
  %275 = vrot.lane.b32.xlu0 %v201, 96
  %v276 = vpop.permute.xlu0 %275
  %277 = vrot.lane.b32.xlu0 %v206, 96
  %v278 = vpop.permute.xlu0 %277
  %279 = vrot.lane.b32.xlu0 %v211, 96
  %v280 = vpop.permute.xlu0 %279
  %281 = vrot.lane.b32.xlu0 %v216, 96
  %v282 = vpop.permute.xlu0 %281
  %vm283 = vcmask 64512
  %v284 = vsel %vm283, %v181, 0
  %v286 = vsel %vm283, %v186, 0
  %v288 = vsel %vm283, %v191, 0
  %v290 = vsel %vm283, %v196, 0
  %v292 = vsel %vm283, %v201, 0
  %v294 = vsel %vm283, %v206, 0
  %v296 = vsel %vm283, %v211, 0
  %v298 = vsel %vm283, %v216, 0
  %v300 = vsel %vm283, %v268, 0
  %v302 = vsel %vm283, %v270, 0
  %v304 = vsel %vm283, %v272, 0
  %v306 = vsel %vm283, %v274, 0
  %v308 = vsel %vm283, %v276, 0
  %v310 = vsel %vm283, %v278, 0
  %v312 = vsel %vm283, %v280, 0
  %v314 = vsel %vm283, %v282, 0
  %316 = vmatprep.subr.mxu0 0.0
  %317 = vmatpush1.xpose.msra.mxu0 %v300
  %318 = vmatprep.subr.mxu0 0.0
  %319 = vmatpush1.xpose.msra.mxu0 %v302
  %320 = vmatprep.subr.mxu0 0.0
  %321 = vmatpush1.xpose.msra.mxu0 %v304
  %322 = vmatprep.subr.mxu0 0.0
  %323 = vmatpush1.xpose.msra.mxu0 %v306
  %324 = vmatprep.subr.mxu0 0.0
  %325 = vmatpush1.xpose.msra.mxu0 %v308
  %326 = vmatprep.subr.mxu0 0.0
  %327 = vmatpush1.xpose.msra.mxu0 %v310
  %328 = vmatprep.subr.mxu0 0.0
  %329 = vmatpush1.xpose.msra.mxu0 %v312
  %330 = vmatprep.subr.mxu0 0.0
  %331 = vmatpush1.xpose.msra.mxu0 %v314
  %332 = vmatprep.subr.mxu0 0.0
  %333 = vmatpush1.xpose.msra.mxu0 0.0
  %334 = vmatprep.subr.mxu0 0.0
  %335 = vmatpush1.xpose.msra.mxu0 0.0
  %336 = vmatprep.subr.mxu0 0.0
  %337 = vmatpush1.xpose.msra.mxu0 0.0
  %338 = vmatprep.subr.mxu0 0.0
  %339 = vmatpush1.xpose.msra.mxu0 0.0
  %340 = vmatprep.subr.mxu0 0.0
  %341 = vmatpush1.xpose.msra.mxu0 0.0
  %342 = vmatprep.subr.mxu0 0.0
  %343 = vmatpush1.xpose.msra.mxu0 0.0
  %344 = vmatprep.subr.mxu0 0.0
  %345 = vmatpush1.xpose.msra.mxu0 0.0
  %346 = vmatprep.subr.mxu0 0.0
  %347 = vmatpush1.xpose.msra.mxu0 0.0
  %348 = vmatprep.subr.mxu0 0.0
  %349 = vmatpush1.xpose.msra.mxu0 0.0
  %350 = vmatprep.subr.mxu0 0.0
  %351 = vmatpush1.xpose.msra.mxu0 0.0
  %352 = vmatprep.subr.mxu0 0.0
  %353 = vmatpush1.xpose.msra.mxu0 0.0
  %354 = vmatprep.subr.mxu0 0.0
  %355 = vmatpush1.xpose.msra.mxu0 0.0
  %356 = vmatprep.subr.mxu0 0.0
  %357 = vmatpush1.xpose.msra.mxu0 0.0
  %358 = vmatprep.subr.mxu0 0.0
  %359 = vmatpush1.xpose.msra.mxu0 0.0
  %360 = vmatprep.subr.mxu0 0.0
  %361 = vmatpush1.xpose.msra.mxu0 0.0
  %362 = vmatprep.subr.mxu0 0.0
  %363 = vmatpush1.xpose.msra.mxu0 0.0
  %364 = vmatprep.subr.mxu0 0.0
  %365 = vmatpush1.xpose.msra.mxu0 0.0
  %366 = vmatprep.subr.mxu0 0.0
  %367 = vmatpush1.xpose.msra.mxu0 0.0
  %368 = vmatprep.subr.mxu0 0.0
  %369 = vmatpush1.xpose.msra.mxu0 0.0
  %370 = vmatprep.subr.mxu0 0.0
  %371 = vmatpush1.xpose.msra.mxu0 0.0
  %372 = vmatprep.subr.mxu0 0.0
  %373 = vmatpush1.xpose.msra.mxu0 0.0
  %374 = vmatprep.subr.mxu0 0.0
  %375 = vmatpush1.xpose.msra.mxu0 0.0
  %376 = vmatprep.subr.mxu0 0.0
  %377 = vmatpush1.xpose.msra.mxu0 0.0
  %378 = vmatprep.subr.mxu0 0.0
  %379 = vmatpush1.xpose.msra.mxu0 0.0
  %380 = vmatprep.mubr.f32.mxu0 0.0
  %381 = vmatmul.mubr.f32.gmra.mrb[0].mxu0 %v284
  %v382 = vpop.f32.mrb[0].mxu0
  %v383 = vadd.f32 0.0, %v382
  %v384 = vpop.f32.mrb[0].mxu0
  %385 = vmatprep.mubr.f32.mxu0 0.0
  %386 = vmatmul.mubr.f32.gmra.mrb[0].mxu0 %v286
  %v387 = vpop.f32.mrb[0].mxu0
  %v388 = vadd.f32 0.0, %v387
  %v389 = vpop.f32.mrb[0].mxu0
  %390 = vmatprep.mubr.f32.mxu0 0.0
  %391 = vmatmul.mubr.f32.gmra.mrb[0].mxu0 %v288
  %v392 = vpop.f32.mrb[0].mxu0
  %v393 = vadd.f32 0.0, %v392
  %v394 = vpop.f32.mrb[0].mxu0
  %395 = vmatprep.mubr.f32.mxu0 0.0
  %396 = vmatmul.mubr.f32.gmra.mrb[0].mxu0 %v290
  %v397 = vpop.f32.mrb[0].mxu0
  %v398 = vadd.f32 0.0, %v397
  %v399 = vpop.f32.mrb[0].mxu0
  %400 = vmatprep.mubr.f32.mxu0 0.0
  %401 = vmatmul.mubr.f32.gmra.mrb[0].mxu0 %v292
  %v402 = vpop.f32.mrb[0].mxu0
  %v403 = vadd.f32 0.0, %v402
  %v404 = vpop.f32.mrb[0].mxu0
  %405 = vmatprep.mubr.f32.mxu0 0.0
  %406 = vmatmul.mubr.f32.gmra.mrb[0].mxu0 %v294
  %v407 = vpop.f32.mrb[0].mxu0
  %v408 = vadd.f32 0.0, %v407
  %v409 = vpop.f32.mrb[0].mxu0
  %410 = vmatprep.mubr.f32.mxu0 0.0
  %411 = vmatmul.mubr.f32.gmra.mrb[0].mxu0 %v296
  %v412 = vpop.f32.mrb[0].mxu0
  %v413 = vadd.f32 0.0, %v412
  %v414 = vpop.f32.mrb[0].mxu0
  %415 = vmatprep.mubr.f32.mxu0 0.0
  %416 = vmatmul.mubr.f32.gmra.mrb[0].mxu0 %v298
  %v417 = vpop.f32.mrb[0].mxu0
  %v418 = vadd.f32 0.0, %v417
  %v419 = vpop.f32.mrb[0].mxu0
  %420 = vdwg.mxu0
  %vm421 = vcmask 523264
  %v422 = vsel %vm421, %v383, -inf
  %423 = vmax.xlane.f32.xlu0 %v422
  %v424 = vpop.xlane.xlu0 %423
  %v425 = vsel %vm421, %v388, -inf
  %426 = vmax.xlane.f32.xlu0 %v425
  %v427 = vpop.xlane.xlu0 %426
  %v428 = vsel %vm421, %v393, -inf
  %429 = vmax.xlane.f32.xlu0 %v428
  %v430 = vpop.xlane.xlu0 %429
  %v431 = vsel %vm421, %v398, -inf
  %432 = vmax.xlane.f32.xlu0 %v431
  %v433 = vpop.xlane.xlu0 %432
  %v434 = vsel %vm421, %v403, -inf
  %435 = vmax.xlane.f32.xlu0 %v434
  %v436 = vpop.xlane.xlu0 %435
  %v437 = vsel %vm421, %v408, -inf
  %438 = vmax.xlane.f32.xlu0 %v437
  %v439 = vpop.xlane.xlu0 %438
  %v440 = vsel %vm421, %v413, -inf
  %441 = vmax.xlane.f32.xlu0 %v440
  %v442 = vpop.xlane.xlu0 %441
  %v443 = vsel %vm421, %v418, -inf
  %444 = vmax.xlane.f32.xlu0 %v443
  %v445 = vpop.xlane.xlu0 %444
  %v446 = vsub.f32 %v383, %v424
  %v447 = vsub.f32 %v388, %v427
  %v448 = vsub.f32 %v393, %v430
  %v449 = vsub.f32 %v398, %v433
  %v450 = vsub.f32 %v403, %v436
  %v451 = vsub.f32 %v408, %v439
  %v452 = vsub.f32 %v413, %v442
  %v453 = vsub.f32 %v418, %v445
  %v454 = vmul.f32 %v446, 1.442695
  %v455 = vpow.pop %v454
  %v456 = vmul.f32 %v447, 1.442695
  %v457 = vpow.pop %v456
  %v458 = vmul.f32 %v448, 1.442695
  %v459 = vpow.pop %v458
  %v460 = vmul.f32 %v449, 1.442695
  %v461 = vpow.pop %v460
  %v462 = vmul.f32 %v450, 1.442695
  %v463 = vpow.pop %v462
  %v464 = vmul.f32 %v451, 1.442695
  %v465 = vpow.pop %v464
  %v466 = vmul.f32 %v452, 1.442695
  %v467 = vpow.pop %v466
  %v468 = vmul.f32 %v453, 1.442695
  %v469 = vpow.pop %v468
  %v470 = vsel %vm421, %v455, 0.0
  %471 = vadd.xlane.f32.xlu0 %v470
  %v472 = vpop.xlane.xlu0 %471
  %v473 = vsel %vm421, %v457, 0.0
  %474 = vadd.xlane.f32.xlu0 %v473
  %v475 = vpop.xlane.xlu0 %474
  %v476 = vsel %vm421, %v459, 0.0
  %477 = vadd.xlane.f32.xlu0 %v476
  %v478 = vpop.xlane.xlu0 %477
  %v479 = vsel %vm421, %v461, 0.0
  %480 = vadd.xlane.f32.xlu0 %v479
  %v481 = vpop.xlane.xlu0 %480
  %v482 = vsel %vm421, %v463, 0.0
  %483 = vadd.xlane.f32.xlu0 %v482
  %v484 = vpop.xlane.xlu0 %483
  %v485 = vsel %vm421, %v465, 0.0
  %486 = vadd.xlane.f32.xlu0 %v485
  %v487 = vpop.xlane.xlu0 %486
  %v488 = vsel %vm421, %v467, 0.0
  %489 = vadd.xlane.f32.xlu0 %v488
  %v490 = vpop.xlane.xlu0 %489
  %v491 = vsel %vm421, %v469, 0.0
  %492 = vadd.xlane.f32.xlu0 %v491
  %v493 = vpop.xlane.xlu0 %492
  %494 = vrot.lane.b32.xlu0 %v181, 64
  %v495 = vpop.permute.xlu0 %494
  %496 = vrot.lane.b32.xlu0 %v186, 64
  %v497 = vpop.permute.xlu0 %496
  %498 = vrot.lane.b32.xlu0 %v191, 64
  %v499 = vpop.permute.xlu0 %498
  %500 = vrot.lane.b32.xlu0 %v196, 64
  %v501 = vpop.permute.xlu0 %500
  %502 = vrot.lane.b32.xlu0 %v201, 64
  %v503 = vpop.permute.xlu0 %502
  %504 = vrot.lane.b32.xlu0 %v206, 64
  %v505 = vpop.permute.xlu0 %504
  %506 = vrot.lane.b32.xlu0 %v211, 64
  %v507 = vpop.permute.xlu0 %506
  %508 = vrot.lane.b32.xlu0 %v216, 64
  %v509 = vpop.permute.xlu0 %508
  %v519 = vsel %vm421, %v455, 0
  %v522 = vsel %vm421, %v457, 0
  %v525 = vsel %vm421, %v459, 0
  %v528 = vsel %vm421, %v461, 0
  %v531 = vsel %vm421, %v463, 0
  %v534 = vsel %vm421, %v465, 0
  %v537 = vsel %vm421, %v467, 0
  %v540 = vsel %vm421, %v469, 0
  %542 = vmatprep.subr.mxu0 0.0
  %543 = vmatpush1.msra.mxu0 %v495
  %544 = vmatprep.subr.mxu0 0.0
  %545 = vmatpush1.msra.mxu0 %v497
  %546 = vmatprep.subr.mxu0 0.0
  %547 = vmatpush1.msra.mxu0 %v499
  %548 = vmatprep.subr.mxu0 0.0
  %549 = vmatpush1.msra.mxu0 %v501
  %550 = vmatprep.subr.mxu0 0.0
  %551 = vmatpush1.msra.mxu0 %v503
  %552 = vmatprep.subr.mxu0 0.0
  %553 = vmatpush1.msra.mxu0 %v505
  %554 = vmatprep.subr.mxu0 0.0
  %555 = vmatpush1.msra.mxu0 %v507
  %556 = vmatprep.subr.mxu0 0.0
  %557 = vmatpush1.msra.mxu0 %v509
  %558 = vmatprep.subr.mxu0 0.0
  %559 = vmatpush1.msra.mxu0 0.0
  %560 = vmatprep.subr.mxu0 0.0
  %561 = vmatpush1.msra.mxu0 0.0
  %562 = vmatprep.subr.mxu0 0.0
  %563 = vmatpush1.msra.mxu0 0.0
  %564 = vmatprep.subr.mxu0 0.0
  %565 = vmatpush1.msra.mxu0 0.0
  %566 = vmatprep.subr.mxu0 0.0
  %567 = vmatpush1.msra.mxu0 0.0
  %568 = vmatprep.subr.mxu0 0.0
  %569 = vmatpush1.msra.mxu0 0.0
  %570 = vmatprep.subr.mxu0 0.0
  %571 = vmatpush1.msra.mxu0 0.0
  %572 = vmatprep.subr.mxu0 0.0
  %573 = vmatpush1.msra.mxu0 0.0
  %574 = vmatprep.subr.mxu0 0.0
  %575 = vmatpush1.msra.mxu0 0.0
  %576 = vmatprep.subr.mxu0 0.0
  %577 = vmatpush1.msra.mxu0 0.0
  %578 = vmatprep.subr.mxu0 0.0
  %579 = vmatpush1.msra.mxu0 0.0
  %580 = vmatprep.subr.mxu0 0.0
  %581 = vmatpush1.msra.mxu0 0.0
  %582 = vmatprep.subr.mxu0 0.0
  %583 = vmatpush1.msra.mxu0 0.0
  %584 = vmatprep.subr.mxu0 0.0
  %585 = vmatpush1.msra.mxu0 0.0
  %586 = vmatprep.subr.mxu0 0.0
  %587 = vmatpush1.msra.mxu0 0.0
  %588 = vmatprep.subr.mxu0 0.0
  %589 = vmatpush1.msra.mxu0 0.0
  %590 = vmatprep.subr.mxu0 0.0
  %591 = vmatpush1.msra.mxu0 0.0
  %592 = vmatprep.subr.mxu0 0.0
  %593 = vmatpush1.msra.mxu0 0.0
  %594 = vmatprep.subr.mxu0 0.0
  %595 = vmatpush1.msra.mxu0 0.0
  %596 = vmatprep.subr.mxu0 0.0
  %597 = vmatpush1.msra.mxu0 0.0
  %598 = vmatprep.subr.mxu0 0.0
  %599 = vmatpush1.msra.mxu0 0.0
  %600 = vmatprep.subr.mxu0 0.0
  %601 = vmatpush1.msra.mxu0 0.0
  %602 = vmatprep.subr.mxu0 0.0
  %603 = vmatpush1.msra.mxu0 0.0
  %604 = vmatprep.subr.mxu0 0.0
  %605 = vmatpush1.msra.mxu0 0.0
  %606 = vmatprep.mubr.f32.mxu0 0.0
  %607 = vmatmul.mubr.f32.gmra.mrb[0].mxu0 %v519
  %v608 = vpop.f32.mrb[0].mxu0
  %v609 = vadd.f32 0.0, %v608
  %v610 = vpop.f32.mrb[0].mxu0
  %611 = vmatprep.mubr.f32.mxu0 0.0
  %612 = vmatmul.mubr.f32.gmra.mrb[0].mxu0 %v522
  %v613 = vpop.f32.mrb[0].mxu0
  %v614 = vadd.f32 0.0, %v613
  %v615 = vpop.f32.mrb[0].mxu0
  %616 = vmatprep.mubr.f32.mxu0 0.0
  %617 = vmatmul.mubr.f32.gmra.mrb[0].mxu0 %v525
  %v618 = vpop.f32.mrb[0].mxu0
  %v619 = vadd.f32 0.0, %v618
  %v620 = vpop.f32.mrb[0].mxu0
  %621 = vmatprep.mubr.f32.mxu0 0.0
  %622 = vmatmul.mubr.f32.gmra.mrb[0].mxu0 %v528
  %v623 = vpop.f32.mrb[0].mxu0
  %v624 = vadd.f32 0.0, %v623
  %v625 = vpop.f32.mrb[0].mxu0
  %626 = vmatprep.mubr.f32.mxu0 0.0
  %627 = vmatmul.mubr.f32.gmra.mrb[0].mxu0 %v531
  %v628 = vpop.f32.mrb[0].mxu0
  %v629 = vadd.f32 0.0, %v628
  %v630 = vpop.f32.mrb[0].mxu0
  %631 = vmatprep.mubr.f32.mxu0 0.0
  %632 = vmatmul.mubr.f32.gmra.mrb[0].mxu0 %v534
  %v633 = vpop.f32.mrb[0].mxu0
  %v634 = vadd.f32 0.0, %v633
  %v635 = vpop.f32.mrb[0].mxu0
  %636 = vmatprep.mubr.f32.mxu0 0.0
  %637 = vmatmul.mubr.f32.gmra.mrb[0].mxu0 %v537
  %v638 = vpop.f32.mrb[0].mxu0
  %v639 = vadd.f32 0.0, %v638
  %v640 = vpop.f32.mrb[0].mxu0
  %641 = vmatprep.mubr.f32.mxu0 0.0
  %642 = vmatmul.mubr.f32.gmra.mrb[0].mxu0 %v540
  %v643 = vpop.f32.mrb[0].mxu0
  %v644 = vadd.f32 0.0, %v643
  %v645 = vpop.f32.mrb[0].mxu0
  %646 = vdwg.mxu0
  %v647 = vrcp.pop %v472
  %v648 = vrcp.pop %v475
  %v649 = vrcp.pop %v478
  %v650 = vrcp.pop %v481
  %v651 = vrcp.pop %v484
  %v652 = vrcp.pop %v487
  %v653 = vrcp.pop %v490
  %v654 = vrcp.pop %v493
  %v655 = vmul.f32 %v609, %v647
  %v656 = vmul.f32 %v614, %v648
  %v657 = vmul.f32 %v619, %v649
  %v658 = vmul.f32 %v624, %v650
  %v659 = vmul.f32 %v629, %v651
  %v660 = vmul.f32 %v634, %v652
  %v661 = vmul.f32 %v639, %v653
  %v662 = vmul.f32 %v644, %v654
  %663 = vrot.lane.b32.xlu0 %v181, 120
  %v664 = vpop.permute.xlu0 %663
  %665 = vrot.lane.b32.xlu0 %v186, 120
  %v666 = vpop.permute.xlu0 %665
  %667 = vrot.lane.b32.xlu0 %v191, 120
  %v668 = vpop.permute.xlu0 %667
  %669 = vrot.lane.b32.xlu0 %v196, 120
  %v670 = vpop.permute.xlu0 %669
  %671 = vrot.lane.b32.xlu0 %v201, 120
  %v672 = vpop.permute.xlu0 %671
  %673 = vrot.lane.b32.xlu0 %v206, 120
  %v674 = vpop.permute.xlu0 %673
  %675 = vrot.lane.b32.xlu0 %v211, 120
  %v676 = vpop.permute.xlu0 %675
  %677 = vrot.lane.b32.xlu0 %v216, 120
  %v678 = vpop.permute.xlu0 %677
  %679 = vrot.lane.b32.xlu0 %v181, 88
  %v680 = vpop.permute.xlu0 %679
  %681 = vrot.lane.b32.xlu0 %v186, 88
  %v682 = vpop.permute.xlu0 %681
  %683 = vrot.lane.b32.xlu0 %v191, 88
  %v684 = vpop.permute.xlu0 %683
  %685 = vrot.lane.b32.xlu0 %v196, 88
  %v686 = vpop.permute.xlu0 %685
  %687 = vrot.lane.b32.xlu0 %v201, 88
  %v688 = vpop.permute.xlu0 %687
  %689 = vrot.lane.b32.xlu0 %v206, 88
  %v690 = vpop.permute.xlu0 %689
  %691 = vrot.lane.b32.xlu0 %v211, 88
  %v692 = vpop.permute.xlu0 %691
  %693 = vrot.lane.b32.xlu0 %v216, 88
  %v694 = vpop.permute.xlu0 %693
  %v695 = vsel %vm283, %v664, 0
  %v697 = vsel %vm283, %v666, 0
  %v699 = vsel %vm283, %v668, 0
  %v701 = vsel %vm283, %v670, 0
  %v703 = vsel %vm283, %v672, 0
  %v705 = vsel %vm283, %v674, 0
  %v707 = vsel %vm283, %v676, 0
  %v709 = vsel %vm283, %v678, 0
  %v711 = vsel %vm283, %v680, 0
  %v713 = vsel %vm283, %v682, 0
  %v715 = vsel %vm283, %v684, 0
  %v717 = vsel %vm283, %v686, 0
  %v719 = vsel %vm283, %v688, 0
  %v721 = vsel %vm283, %v690, 0
  %v723 = vsel %vm283, %v692, 0
  %v725 = vsel %vm283, %v694, 0
  %727 = vmatprep.subr.mxu0 0.0
  %728 = vmatpush1.xpose.msra.mxu0 %v711
  %729 = vmatprep.subr.mxu0 0.0
  %730 = vmatpush1.xpose.msra.mxu0 %v713
  %731 = vmatprep.subr.mxu0 0.0
  %732 = vmatpush1.xpose.msra.mxu0 %v715
  %733 = vmatprep.subr.mxu0 0.0
  %734 = vmatpush1.xpose.msra.mxu0 %v717
  %735 = vmatprep.subr.mxu0 0.0
  %736 = vmatpush1.xpose.msra.mxu0 %v719
  %737 = vmatprep.subr.mxu0 0.0
  %738 = vmatpush1.xpose.msra.mxu0 %v721
  %739 = vmatprep.subr.mxu0 0.0
  %740 = vmatpush1.xpose.msra.mxu0 %v723
  %741 = vmatprep.subr.mxu0 0.0
  %742 = vmatpush1.xpose.msra.mxu0 %v725
  %743 = vmatprep.subr.mxu0 0.0
  %744 = vmatpush1.xpose.msra.mxu0 0.0
  %745 = vmatprep.subr.mxu0 0.0
  %746 = vmatpush1.xpose.msra.mxu0 0.0
  %747 = vmatprep.subr.mxu0 0.0
  %748 = vmatpush1.xpose.msra.mxu0 0.0
  %749 = vmatprep.subr.mxu0 0.0
  %750 = vmatpush1.xpose.msra.mxu0 0.0
  %751 = vmatprep.subr.mxu0 0.0
  %752 = vmatpush1.xpose.msra.mxu0 0.0
  %753 = vmatprep.subr.mxu0 0.0
  %754 = vmatpush1.xpose.msra.mxu0 0.0
  %755 = vmatprep.subr.mxu0 0.0
  %756 = vmatpush1.xpose.msra.mxu0 0.0
  %757 = vmatprep.subr.mxu0 0.0
  %758 = vmatpush1.xpose.msra.mxu0 0.0
  %759 = vmatprep.subr.mxu0 0.0
  %760 = vmatpush1.xpose.msra.mxu0 0.0
  %761 = vmatprep.subr.mxu0 0.0
  %762 = vmatpush1.xpose.msra.mxu0 0.0
  %763 = vmatprep.subr.mxu0 0.0
  %764 = vmatpush1.xpose.msra.mxu0 0.0
  %765 = vmatprep.subr.mxu0 0.0
  %766 = vmatpush1.xpose.msra.mxu0 0.0
  %767 = vmatprep.subr.mxu0 0.0
  %768 = vmatpush1.xpose.msra.mxu0 0.0
  %769 = vmatprep.subr.mxu0 0.0
  %770 = vmatpush1.xpose.msra.mxu0 0.0
  %771 = vmatprep.subr.mxu0 0.0
  %772 = vmatpush1.xpose.msra.mxu0 0.0
  %773 = vmatprep.subr.mxu0 0.0
  %774 = vmatpush1.xpose.msra.mxu0 0.0
  %775 = vmatprep.subr.mxu0 0.0
  %776 = vmatpush1.xpose.msra.mxu0 0.0
  %777 = vmatprep.subr.mxu0 0.0
  %778 = vmatpush1.xpose.msra.mxu0 0.0
  %779 = vmatprep.subr.mxu0 0.0
  %780 = vmatpush1.xpose.msra.mxu0 0.0
  %781 = vmatprep.subr.mxu0 0.0
  %782 = vmatpush1.xpose.msra.mxu0 0.0
  %783 = vmatprep.subr.mxu0 0.0
  %784 = vmatpush1.xpose.msra.mxu0 0.0
  %785 = vmatprep.subr.mxu0 0.0
  %786 = vmatpush1.xpose.msra.mxu0 0.0
  %787 = vmatprep.subr.mxu0 0.0
  %788 = vmatpush1.xpose.msra.mxu0 0.0
  %789 = vmatprep.subr.mxu0 0.0
  %790 = vmatpush1.xpose.msra.mxu0 0.0
  %791 = vmatprep.mubr.f32.mxu0 0.0
  %792 = vmatmul.mubr.f32.gmra.mrb[0].mxu0 %v695
  %v793 = vpop.f32.mrb[0].mxu0
  %v794 = vadd.f32 0.0, %v793
  %v795 = vpop.f32.mrb[0].mxu0
  %796 = vmatprep.mubr.f32.mxu0 0.0
  %797 = vmatmul.mubr.f32.gmra.mrb[0].mxu0 %v697
  %v798 = vpop.f32.mrb[0].mxu0
  %v799 = vadd.f32 0.0, %v798
  %v800 = vpop.f32.mrb[0].mxu0
  %801 = vmatprep.mubr.f32.mxu0 0.0
  %802 = vmatmul.mubr.f32.gmra.mrb[0].mxu0 %v699
  %v803 = vpop.f32.mrb[0].mxu0
  %v804 = vadd.f32 0.0, %v803
  %v805 = vpop.f32.mrb[0].mxu0
  %806 = vmatprep.mubr.f32.mxu0 0.0
  %807 = vmatmul.mubr.f32.gmra.mrb[0].mxu0 %v701
  %v808 = vpop.f32.mrb[0].mxu0
  %v809 = vadd.f32 0.0, %v808
  %v810 = vpop.f32.mrb[0].mxu0
  %811 = vmatprep.mubr.f32.mxu0 0.0
  %812 = vmatmul.mubr.f32.gmra.mrb[0].mxu0 %v703
  %v813 = vpop.f32.mrb[0].mxu0
  %v814 = vadd.f32 0.0, %v813
  %v815 = vpop.f32.mrb[0].mxu0
  %816 = vmatprep.mubr.f32.mxu0 0.0
  %817 = vmatmul.mubr.f32.gmra.mrb[0].mxu0 %v705
  %v818 = vpop.f32.mrb[0].mxu0
  %v819 = vadd.f32 0.0, %v818
  %v820 = vpop.f32.mrb[0].mxu0
  %821 = vmatprep.mubr.f32.mxu0 0.0
  %822 = vmatmul.mubr.f32.gmra.mrb[0].mxu0 %v707
  %v823 = vpop.f32.mrb[0].mxu0
  %v824 = vadd.f32 0.0, %v823
  %v825 = vpop.f32.mrb[0].mxu0
  %826 = vmatprep.mubr.f32.mxu0 0.0
  %827 = vmatmul.mubr.f32.gmra.mrb[0].mxu0 %v709
  %v828 = vpop.f32.mrb[0].mxu0
  %v829 = vadd.f32 0.0, %v828
  %v830 = vpop.f32.mrb[0].mxu0
  %831 = vdwg.mxu0
  %v832 = vsel %vm421, %v794, -inf
  %833 = vmax.xlane.f32.xlu0 %v832
  %v834 = vpop.xlane.xlu0 %833
  %v835 = vsel %vm421, %v799, -inf
  %836 = vmax.xlane.f32.xlu0 %v835
  %v837 = vpop.xlane.xlu0 %836
  %v838 = vsel %vm421, %v804, -inf
  %839 = vmax.xlane.f32.xlu0 %v838
  %v840 = vpop.xlane.xlu0 %839
  %v841 = vsel %vm421, %v809, -inf
  %842 = vmax.xlane.f32.xlu0 %v841
  %v843 = vpop.xlane.xlu0 %842
  %v844 = vsel %vm421, %v814, -inf
  %845 = vmax.xlane.f32.xlu0 %v844
  %v846 = vpop.xlane.xlu0 %845
  %v847 = vsel %vm421, %v819, -inf
  %848 = vmax.xlane.f32.xlu0 %v847
  %v849 = vpop.xlane.xlu0 %848
  %v850 = vsel %vm421, %v824, -inf
  %851 = vmax.xlane.f32.xlu0 %v850
  %v852 = vpop.xlane.xlu0 %851
  %v853 = vsel %vm421, %v829, -inf
  %854 = vmax.xlane.f32.xlu0 %v853
  %v855 = vpop.xlane.xlu0 %854
  %v856 = vsub.f32 %v794, %v834
  %v857 = vsub.f32 %v799, %v837
  %v858 = vsub.f32 %v804, %v840
  %v859 = vsub.f32 %v809, %v843
  %v860 = vsub.f32 %v814, %v846
  %v861 = vsub.f32 %v819, %v849
  %v862 = vsub.f32 %v824, %v852
  %v863 = vsub.f32 %v829, %v855
  %v864 = vmul.f32 %v856, 1.442695
  %v865 = vpow.pop %v864
  %v866 = vmul.f32 %v857, 1.442695
  %v867 = vpow.pop %v866
  %v868 = vmul.f32 %v858, 1.442695
  %v869 = vpow.pop %v868
  %v870 = vmul.f32 %v859, 1.442695
  %v871 = vpow.pop %v870
  %v872 = vmul.f32 %v860, 1.442695
  %v873 = vpow.pop %v872
  %v874 = vmul.f32 %v861, 1.442695
  %v875 = vpow.pop %v874
  %v876 = vmul.f32 %v862, 1.442695
  %v877 = vpow.pop %v876
  %v878 = vmul.f32 %v863, 1.442695
  %v879 = vpow.pop %v878
  %v880 = vsel %vm421, %v865, 0.0
  %881 = vadd.xlane.f32.xlu0 %v880
  %v882 = vpop.xlane.xlu0 %881
  %v883 = vsel %vm421, %v867, 0.0
  %884 = vadd.xlane.f32.xlu0 %v883
  %v885 = vpop.xlane.xlu0 %884
  %v886 = vsel %vm421, %v869, 0.0
  %887 = vadd.xlane.f32.xlu0 %v886
  %v888 = vpop.xlane.xlu0 %887
  %v889 = vsel %vm421, %v871, 0.0
  %890 = vadd.xlane.f32.xlu0 %v889
  %v891 = vpop.xlane.xlu0 %890
  %v892 = vsel %vm421, %v873, 0.0
  %893 = vadd.xlane.f32.xlu0 %v892
  %v894 = vpop.xlane.xlu0 %893
  %v895 = vsel %vm421, %v875, 0.0
  %896 = vadd.xlane.f32.xlu0 %v895
  %v897 = vpop.xlane.xlu0 %896
  %v898 = vsel %vm421, %v877, 0.0
  %899 = vadd.xlane.f32.xlu0 %v898
  %v900 = vpop.xlane.xlu0 %899
  %v901 = vsel %vm421, %v879, 0.0
  %902 = vadd.xlane.f32.xlu0 %v901
  %v903 = vpop.xlane.xlu0 %902
  %904 = vrot.lane.b32.xlu0 %v181, 56
  %v905 = vpop.permute.xlu0 %904
  %906 = vrot.lane.b32.xlu0 %v186, 56
  %v907 = vpop.permute.xlu0 %906
  %908 = vrot.lane.b32.xlu0 %v191, 56
  %v909 = vpop.permute.xlu0 %908
  %910 = vrot.lane.b32.xlu0 %v196, 56
  %v911 = vpop.permute.xlu0 %910
  %912 = vrot.lane.b32.xlu0 %v201, 56
  %v913 = vpop.permute.xlu0 %912
  %914 = vrot.lane.b32.xlu0 %v206, 56
  %v915 = vpop.permute.xlu0 %914
  %916 = vrot.lane.b32.xlu0 %v211, 56
  %v917 = vpop.permute.xlu0 %916
  %918 = vrot.lane.b32.xlu0 %v216, 56
  %v919 = vpop.permute.xlu0 %918
  %v929 = vsel %vm421, %v865, 0
  %v932 = vsel %vm421, %v867, 0
  %v935 = vsel %vm421, %v869, 0
  %v938 = vsel %vm421, %v871, 0
  %v941 = vsel %vm421, %v873, 0
  %v944 = vsel %vm421, %v875, 0
  %v947 = vsel %vm421, %v877, 0
  %v950 = vsel %vm421, %v879, 0
  %952 = vmatprep.subr.mxu0 0.0
  %953 = vmatpush1.msra.mxu0 %v905
  %954 = vmatprep.subr.mxu0 0.0
  %955 = vmatpush1.msra.mxu0 %v907
  %956 = vmatprep.subr.mxu0 0.0
  %957 = vmatpush1.msra.mxu0 %v909
  %958 = vmatprep.subr.mxu0 0.0
  %959 = vmatpush1.msra.mxu0 %v911
  %960 = vmatprep.subr.mxu0 0.0
  %961 = vmatpush1.msra.mxu0 %v913
  %962 = vmatprep.subr.mxu0 0.0
  %963 = vmatpush1.msra.mxu0 %v915
  %964 = vmatprep.subr.mxu0 0.0
  %965 = vmatpush1.msra.mxu0 %v917
  %966 = vmatprep.subr.mxu0 0.0
  %967 = vmatpush1.msra.mxu0 %v919
  %968 = vmatprep.subr.mxu0 0.0
  %969 = vmatpush1.msra.mxu0 0.0
  %970 = vmatprep.subr.mxu0 0.0
  %971 = vmatpush1.msra.mxu0 0.0
  %972 = vmatprep.subr.mxu0 0.0
  %973 = vmatpush1.msra.mxu0 0.0
  %974 = vmatprep.subr.mxu0 0.0
  %975 = vmatpush1.msra.mxu0 0.0
  %976 = vmatprep.subr.mxu0 0.0
  %977 = vmatpush1.msra.mxu0 0.0
  %978 = vmatprep.subr.mxu0 0.0
  %979 = vmatpush1.msra.mxu0 0.0
  %980 = vmatprep.subr.mxu0 0.0
  %981 = vmatpush1.msra.mxu0 0.0
  %982 = vmatprep.subr.mxu0 0.0
  %983 = vmatpush1.msra.mxu0 0.0
  %984 = vmatprep.subr.mxu0 0.0
  %985 = vmatpush1.msra.mxu0 0.0
  %986 = vmatprep.subr.mxu0 0.0
  %987 = vmatpush1.msra.mxu0 0.0
  %988 = vmatprep.subr.mxu0 0.0
  %989 = vmatpush1.msra.mxu0 0.0
  %990 = vmatprep.subr.mxu0 0.0
  %991 = vmatpush1.msra.mxu0 0.0
  %992 = vmatprep.subr.mxu0 0.0
  %993 = vmatpush1.msra.mxu0 0.0
  %994 = vmatprep.subr.mxu0 0.0
  %995 = vmatpush1.msra.mxu0 0.0
  %996 = vmatprep.subr.mxu0 0.0
  %997 = vmatpush1.msra.mxu0 0.0
  %998 = vmatprep.subr.mxu0 0.0
  %999 = vmatpush1.msra.mxu0 0.0
  %1000 = vmatprep.subr.mxu0 0.0
  %1001 = vmatpush1.msra.mxu0 0.0
  %1002 = vmatprep.subr.mxu0 0.0
  %1003 = vmatpush1.msra.mxu0 0.0
  %1004 = vmatprep.subr.mxu0 0.0
  %1005 = vmatpush1.msra.mxu0 0.0
  %1006 = vmatprep.subr.mxu0 0.0
  %1007 = vmatpush1.msra.mxu0 0.0
  %1008 = vmatprep.subr.mxu0 0.0
  %1009 = vmatpush1.msra.mxu0 0.0
  %1010 = vmatprep.subr.mxu0 0.0
  %1011 = vmatpush1.msra.mxu0 0.0
  %1012 = vmatprep.subr.mxu0 0.0
  %1013 = vmatpush1.msra.mxu0 0.0
  %1014 = vmatprep.subr.mxu0 0.0
  %1015 = vmatpush1.msra.mxu0 0.0
  %1016 = vmatprep.mubr.f32.mxu0 0.0
  %1017 = vmatmul.mubr.f32.gmra.mrb[0].mxu0 %v929
  %v1018 = vpop.f32.mrb[0].mxu0
  %v1019 = vadd.f32 0.0, %v1018
  %v1020 = vpop.f32.mrb[0].mxu0
  %1021 = vmatprep.mubr.f32.mxu0 0.0
  %1022 = vmatmul.mubr.f32.gmra.mrb[0].mxu0 %v932
  %v1023 = vpop.f32.mrb[0].mxu0
  %v1024 = vadd.f32 0.0, %v1023
  %v1025 = vpop.f32.mrb[0].mxu0
  %1026 = vmatprep.mubr.f32.mxu0 0.0
  %1027 = vmatmul.mubr.f32.gmra.mrb[0].mxu0 %v935
  %v1028 = vpop.f32.mrb[0].mxu0
  %v1029 = vadd.f32 0.0, %v1028
  %v1030 = vpop.f32.mrb[0].mxu0
  %1031 = vmatprep.mubr.f32.mxu0 0.0
  %1032 = vmatmul.mubr.f32.gmra.mrb[0].mxu0 %v938
  %v1033 = vpop.f32.mrb[0].mxu0
  %v1034 = vadd.f32 0.0, %v1033
  %v1035 = vpop.f32.mrb[0].mxu0
  %1036 = vmatprep.mubr.f32.mxu0 0.0
  %1037 = vmatmul.mubr.f32.gmra.mrb[0].mxu0 %v941
  %v1038 = vpop.f32.mrb[0].mxu0
  %v1039 = vadd.f32 0.0, %v1038
  %v1040 = vpop.f32.mrb[0].mxu0
  %1041 = vmatprep.mubr.f32.mxu0 0.0
  %1042 = vmatmul.mubr.f32.gmra.mrb[0].mxu0 %v944
  %v1043 = vpop.f32.mrb[0].mxu0
  %v1044 = vadd.f32 0.0, %v1043
  %v1045 = vpop.f32.mrb[0].mxu0
  %1046 = vmatprep.mubr.f32.mxu0 0.0
  %1047 = vmatmul.mubr.f32.gmra.mrb[0].mxu0 %v947
  %v1048 = vpop.f32.mrb[0].mxu0
  %v1049 = vadd.f32 0.0, %v1048
  %v1050 = vpop.f32.mrb[0].mxu0
  %1051 = vmatprep.mubr.f32.mxu0 0.0
  %1052 = vmatmul.mubr.f32.gmra.mrb[0].mxu0 %v950
  %v1053 = vpop.f32.mrb[0].mxu0
  %v1054 = vadd.f32 0.0, %v1053
  %v1055 = vpop.f32.mrb[0].mxu0
  %1056 = vdwg.mxu0
  %v1057 = vrcp.pop %v882
  %v1058 = vrcp.pop %v885
  %v1059 = vrcp.pop %v888
  %v1060 = vrcp.pop %v891
  %v1061 = vrcp.pop %v894
  %v1062 = vrcp.pop %v897
  %v1063 = vrcp.pop %v900
  %v1064 = vrcp.pop %v903
  %v1065 = vmul.f32 %v1019, %v1057
  %v1066 = vmul.f32 %v1024, %v1058
  %v1067 = vmul.f32 %v1029, %v1059
  %v1068 = vmul.f32 %v1034, %v1060
  %v1069 = vmul.f32 %v1039, %v1061
  %v1070 = vmul.f32 %v1044, %v1062
  %v1071 = vmul.f32 %v1049, %v1063
  %v1072 = vmul.f32 %v1054, %v1064
  %v1074 = vsel %vm283, %v1065, 0
  %v1077 = vsel %vm283, %v1066, 0
  %v1080 = vsel %vm283, %v1067, 0
  %v1083 = vsel %vm283, %v1068, 0
  %v1086 = vsel %vm283, %v1069, 0
  %v1089 = vsel %vm283, %v1070, 0
  %v1092 = vsel %vm283, %v1071, 0
  %v1095 = vsel %vm283, %v1072, 0
  %1097 = vmatprep.subr.mxu0 0.0
  %1098 = vmatpush1.msra.mxu0 %v36
  %1099 = vmatprep.subr.mxu0 0.0
  %1100 = vmatpush1.msra.mxu0 0.0
  %1101 = vmatprep.subr.mxu0 0.0
  %1102 = vmatpush1.msra.mxu0 0.0
  %1103 = vmatprep.subr.mxu0 0.0
  %1104 = vmatpush1.msra.mxu0 0.0
  %1105 = vmatprep.subr.mxu0 0.0
  %1106 = vmatpush1.msra.mxu0 0.0
  %1107 = vmatprep.subr.mxu0 0.0
  %1108 = vmatpush1.msra.mxu0 0.0
  %1109 = vmatprep.subr.mxu0 0.0
  %1110 = vmatpush1.msra.mxu0 0.0
  %1111 = vmatprep.subr.mxu0 0.0
  %1112 = vmatpush1.msra.mxu0 0.0
  %1113 = vmatprep.subr.mxu0 0.0
  %1114 = vmatpush1.msra.mxu0 0.0
  %1115 = vmatprep.subr.mxu0 0.0
  %1116 = vmatpush1.msra.mxu0 0.0
  %1117 = vmatprep.subr.mxu0 0.0
  %1118 = vmatpush1.msra.mxu0 0.0
  %1119 = vmatprep.subr.mxu0 0.0
  %1120 = vmatpush1.msra.mxu0 0.0
  %1121 = vmatprep.subr.mxu0 0.0
  %1122 = vmatpush1.msra.mxu0 0.0
  %1123 = vmatprep.subr.mxu0 0.0
  %1124 = vmatpush1.msra.mxu0 0.0
  %1125 = vmatprep.subr.mxu0 0.0
  %1126 = vmatpush1.msra.mxu0 0.0
  %1127 = vmatprep.subr.mxu0 0.0
  %1128 = vmatpush1.msra.mxu0 0.0
  %1129 = vmatprep.subr.mxu0 0.0
  %1130 = vmatpush1.msra.mxu0 0.0
  %1131 = vmatprep.subr.mxu0 0.0
  %1132 = vmatpush1.msra.mxu0 0.0
  %1133 = vmatprep.subr.mxu0 0.0
  %1134 = vmatpush1.msra.mxu0 0.0
  %1135 = vmatprep.subr.mxu0 0.0
  %1136 = vmatpush1.msra.mxu0 0.0
  %1137 = vmatprep.subr.mxu0 0.0
  %1138 = vmatpush1.msra.mxu0 0.0
  %1139 = vmatprep.subr.mxu0 0.0
  %1140 = vmatpush1.msra.mxu0 0.0
  %1141 = vmatprep.subr.mxu0 0.0
  %1142 = vmatpush1.msra.mxu0 0.0
  %1143 = vmatprep.subr.mxu0 0.0
  %1144 = vmatpush1.msra.mxu0 0.0
  %1145 = vmatprep.subr.mxu0 0.0
  %1146 = vmatpush1.msra.mxu0 0.0
  %1147 = vmatprep.subr.mxu0 0.0
  %1148 = vmatpush1.msra.mxu0 0.0
  %1149 = vmatprep.subr.mxu0 0.0
  %1150 = vmatpush1.msra.mxu0 0.0
  %1151 = vmatprep.subr.mxu0 0.0
  %1152 = vmatpush1.msra.mxu0 0.0
  %1153 = vmatprep.subr.mxu0 0.0
  %1154 = vmatpush1.msra.mxu0 0.0
  %1155 = vmatprep.subr.mxu0 0.0
  %1156 = vmatpush1.msra.mxu0 0.0
  %1157 = vmatprep.subr.mxu0 0.0
  %1158 = vmatpush1.msra.mxu0 0.0
  %1159 = vmatprep.subr.mxu0 0.0
  %1160 = vmatpush1.msra.mxu0 0.0
  %1161 = vmatprep.mubr.f32.mxu0 0.0
  %1162 = vmatmul.mubr.f32.gmra.mrb[0].mxu0 %v1074
  %v1163 = vpop.f32.mrb[0].mxu0
  %v1164 = vadd.f32 0.0, %v1163
  %v1165 = vpop.f32.mrb[0].mxu0
  %1166 = vmatprep.mubr.f32.mxu0 0.0
  %1167 = vmatmul.mubr.f32.gmra.mrb[0].mxu0 %v1077
  %v1168 = vpop.f32.mrb[0].mxu0
  %v1169 = vadd.f32 0.0, %v1168
  %v1170 = vpop.f32.mrb[0].mxu0
  %1171 = vmatprep.mubr.f32.mxu0 0.0
  %1172 = vmatmul.mubr.f32.gmra.mrb[0].mxu0 %v1080
  %v1173 = vpop.f32.mrb[0].mxu0
  %v1174 = vadd.f32 0.0, %v1173
  %v1175 = vpop.f32.mrb[0].mxu0
  %1176 = vmatprep.mubr.f32.mxu0 0.0
  %1177 = vmatmul.mubr.f32.gmra.mrb[0].mxu0 %v1083
  %v1178 = vpop.f32.mrb[0].mxu0
  %v1179 = vadd.f32 0.0, %v1178
  %v1180 = vpop.f32.mrb[0].mxu0
  %1181 = vmatprep.mubr.f32.mxu0 0.0
  %1182 = vmatmul.mubr.f32.gmra.mrb[0].mxu0 %v1086
  %v1183 = vpop.f32.mrb[0].mxu0
  %v1184 = vadd.f32 0.0, %v1183
  %v1185 = vpop.f32.mrb[0].mxu0
  %1186 = vmatprep.mubr.f32.mxu0 0.0
  %1187 = vmatmul.mubr.f32.gmra.mrb[0].mxu0 %v1089
  %v1188 = vpop.f32.mrb[0].mxu0
  %v1189 = vadd.f32 0.0, %v1188
  %v1190 = vpop.f32.mrb[0].mxu0
  %1191 = vmatprep.mubr.f32.mxu0 0.0
  %1192 = vmatmul.mubr.f32.gmra.mrb[0].mxu0 %v1092
  %v1193 = vpop.f32.mrb[0].mxu0
  %v1194 = vadd.f32 0.0, %v1193
  %v1195 = vpop.f32.mrb[0].mxu0
  %1196 = vmatprep.mubr.f32.mxu0 0.0
  %1197 = vmatmul.mubr.f32.gmra.mrb[0].mxu0 %v1095
  %v1198 = vpop.f32.mrb[0].mxu0
  %v1199 = vadd.f32 0.0, %v1198
  %v1200 = vpop.f32.mrb[0].mxu0
  %1201 = vdwg.mxu0
  %v1203 = vsel %vm283, %v655, 0
  %v1206 = vsel %vm283, %v656, 0
  %v1209 = vsel %vm283, %v657, 0
  %v1212 = vsel %vm283, %v658, 0
  %v1215 = vsel %vm283, %v659, 0
  %v1218 = vsel %vm283, %v660, 0
  %v1221 = vsel %vm283, %v661, 0
  %v1224 = vsel %vm283, %v662, 0
  %1226 = vmatprep.subr.mxu0 0.0
  %1227 = vmatpush1.msra.mxu0 %v35
  %1228 = vmatprep.subr.mxu0 0.0
  %1229 = vmatpush1.msra.mxu0 0.0
  %1230 = vmatprep.subr.mxu0 0.0
  %1231 = vmatpush1.msra.mxu0 0.0
  %1232 = vmatprep.subr.mxu0 0.0
  %1233 = vmatpush1.msra.mxu0 0.0
  %1234 = vmatprep.subr.mxu0 0.0
  %1235 = vmatpush1.msra.mxu0 0.0
  %1236 = vmatprep.subr.mxu0 0.0
  %1237 = vmatpush1.msra.mxu0 0.0
  %1238 = vmatprep.subr.mxu0 0.0
  %1239 = vmatpush1.msra.mxu0 0.0
  %1240 = vmatprep.subr.mxu0 0.0
  %1241 = vmatpush1.msra.mxu0 0.0
  %1242 = vmatprep.subr.mxu0 0.0
  %1243 = vmatpush1.msra.mxu0 0.0
  %1244 = vmatprep.subr.mxu0 0.0
  %1245 = vmatpush1.msra.mxu0 0.0
  %1246 = vmatprep.subr.mxu0 0.0
  %1247 = vmatpush1.msra.mxu0 0.0
  %1248 = vmatprep.subr.mxu0 0.0
  %1249 = vmatpush1.msra.mxu0 0.0
  %1250 = vmatprep.subr.mxu0 0.0
  %1251 = vmatpush1.msra.mxu0 0.0
  %1252 = vmatprep.subr.mxu0 0.0
  %1253 = vmatpush1.msra.mxu0 0.0
  %1254 = vmatprep.subr.mxu0 0.0
  %1255 = vmatpush1.msra.mxu0 0.0
  %1256 = vmatprep.subr.mxu0 0.0
  %1257 = vmatpush1.msra.mxu0 0.0
  %1258 = vmatprep.subr.mxu0 0.0
  %1259 = vmatpush1.msra.mxu0 0.0
  %1260 = vmatprep.subr.mxu0 0.0
  %1261 = vmatpush1.msra.mxu0 0.0
  %1262 = vmatprep.subr.mxu0 0.0
  %1263 = vmatpush1.msra.mxu0 0.0
  %1264 = vmatprep.subr.mxu0 0.0
  %1265 = vmatpush1.msra.mxu0 0.0
  %1266 = vmatprep.subr.mxu0 0.0
  %1267 = vmatpush1.msra.mxu0 0.0
  %1268 = vmatprep.subr.mxu0 0.0
  %1269 = vmatpush1.msra.mxu0 0.0
  %1270 = vmatprep.subr.mxu0 0.0
  %1271 = vmatpush1.msra.mxu0 0.0
  %1272 = vmatprep.subr.mxu0 0.0
  %1273 = vmatpush1.msra.mxu0 0.0
  %1274 = vmatprep.subr.mxu0 0.0
  %1275 = vmatpush1.msra.mxu0 0.0
  %1276 = vmatprep.subr.mxu0 0.0
  %1277 = vmatpush1.msra.mxu0 0.0
  %1278 = vmatprep.subr.mxu0 0.0
  %1279 = vmatpush1.msra.mxu0 0.0
  %1280 = vmatprep.subr.mxu0 0.0
  %1281 = vmatpush1.msra.mxu0 0.0
  %1282 = vmatprep.subr.mxu0 0.0
  %1283 = vmatpush1.msra.mxu0 0.0
  %1284 = vmatprep.subr.mxu0 0.0
  %1285 = vmatpush1.msra.mxu0 0.0
  %1286 = vmatprep.subr.mxu0 0.0
  %1287 = vmatpush1.msra.mxu0 0.0
  %1288 = vmatprep.subr.mxu0 0.0
  %1289 = vmatpush1.msra.mxu0 0.0
  %1290 = vmatprep.mubr.f32.mxu0 0.0
  %1291 = vmatmul.mubr.f32.gmra.mrb[0].mxu0 %v1203
  %v1292 = vpop.f32.mrb[0].mxu0
  %v1293 = vadd.f32 %v1164, %v1292
  %v1294 = vpop.f32.mrb[0].mxu0
  %1295 = vmatprep.mubr.f32.mxu0 0.0
  %1296 = vmatmul.mubr.f32.gmra.mrb[0].mxu0 %v1206
  %v1297 = vpop.f32.mrb[0].mxu0
  %v1298 = vadd.f32 %v1169, %v1297
  %v1299 = vpop.f32.mrb[0].mxu0
  %1300 = vmatprep.mubr.f32.mxu0 0.0
  %1301 = vmatmul.mubr.f32.gmra.mrb[0].mxu0 %v1209
  %v1302 = vpop.f32.mrb[0].mxu0
  %v1303 = vadd.f32 %v1174, %v1302
  %v1304 = vpop.f32.mrb[0].mxu0
  %1305 = vmatprep.mubr.f32.mxu0 0.0
  %1306 = vmatmul.mubr.f32.gmra.mrb[0].mxu0 %v1212
  %v1307 = vpop.f32.mrb[0].mxu0
  %v1308 = vadd.f32 %v1179, %v1307
  %v1309 = vpop.f32.mrb[0].mxu0
  %1310 = vmatprep.mubr.f32.mxu0 0.0
  %1311 = vmatmul.mubr.f32.gmra.mrb[0].mxu0 %v1215
  %v1312 = vpop.f32.mrb[0].mxu0
  %v1313 = vadd.f32 %v1184, %v1312
  %v1314 = vpop.f32.mrb[0].mxu0
  %1315 = vmatprep.mubr.f32.mxu0 0.0
  %1316 = vmatmul.mubr.f32.gmra.mrb[0].mxu0 %v1218
  %v1317 = vpop.f32.mrb[0].mxu0
  %v1318 = vadd.f32 %v1189, %v1317
  %v1319 = vpop.f32.mrb[0].mxu0
  %1320 = vmatprep.mubr.f32.mxu0 0.0
  %1321 = vmatmul.mubr.f32.gmra.mrb[0].mxu0 %v1221
  %v1322 = vpop.f32.mrb[0].mxu0
  %v1323 = vadd.f32 %v1194, %v1322
  %v1324 = vpop.f32.mrb[0].mxu0
  %1325 = vmatprep.mubr.f32.mxu0 0.0
  %1326 = vmatmul.mubr.f32.gmra.mrb[0].mxu0 %v1224
  %v1327 = vpop.f32.mrb[0].mxu0
  %v1328 = vadd.f32 %v1199, %v1327
  %v1329 = vpop.f32.mrb[0].mxu0
  %1330 = vdwg.mxu0
  %1331 = vrot.lane.b32.xlu0 %v181, 112
  %v1332 = vpop.permute.xlu0 %1331
  %1333 = vrot.lane.b32.xlu0 %v186, 112
  %v1334 = vpop.permute.xlu0 %1333
  %1335 = vrot.lane.b32.xlu0 %v191, 112
  %v1336 = vpop.permute.xlu0 %1335
  %1337 = vrot.lane.b32.xlu0 %v196, 112
  %v1338 = vpop.permute.xlu0 %1337
  %1339 = vrot.lane.b32.xlu0 %v201, 112
  %v1340 = vpop.permute.xlu0 %1339
  %1341 = vrot.lane.b32.xlu0 %v206, 112
  %v1342 = vpop.permute.xlu0 %1341
  %1343 = vrot.lane.b32.xlu0 %v211, 112
  %v1344 = vpop.permute.xlu0 %1343
  %1345 = vrot.lane.b32.xlu0 %v216, 112
  %v1346 = vpop.permute.xlu0 %1345
  %1347 = vrot.lane.b32.xlu0 %v181, 80
  %v1348 = vpop.permute.xlu0 %1347
  %1349 = vrot.lane.b32.xlu0 %v186, 80
  %v1350 = vpop.permute.xlu0 %1349
  %1351 = vrot.lane.b32.xlu0 %v191, 80
  %v1352 = vpop.permute.xlu0 %1351
  %1353 = vrot.lane.b32.xlu0 %v196, 80
  %v1354 = vpop.permute.xlu0 %1353
  %1355 = vrot.lane.b32.xlu0 %v201, 80
  %v1356 = vpop.permute.xlu0 %1355
  %1357 = vrot.lane.b32.xlu0 %v206, 80
  %v1358 = vpop.permute.xlu0 %1357
  %1359 = vrot.lane.b32.xlu0 %v211, 80
  %v1360 = vpop.permute.xlu0 %1359
  %1361 = vrot.lane.b32.xlu0 %v216, 80
  %v1362 = vpop.permute.xlu0 %1361
  %v1363 = vsel %vm283, %v1332, 0
  %v1365 = vsel %vm283, %v1334, 0
  %v1367 = vsel %vm283, %v1336, 0
  %v1369 = vsel %vm283, %v1338, 0
  %v1371 = vsel %vm283, %v1340, 0
  %v1373 = vsel %vm283, %v1342, 0
  %v1375 = vsel %vm283, %v1344, 0
  %v1377 = vsel %vm283, %v1346, 0
  %v1379 = vsel %vm283, %v1348, 0
  %v1381 = vsel %vm283, %v1350, 0
  %v1383 = vsel %vm283, %v1352, 0
  %v1385 = vsel %vm283, %v1354, 0
  %v1387 = vsel %vm283, %v1356, 0
  %v1389 = vsel %vm283, %v1358, 0
  %v1391 = vsel %vm283, %v1360, 0
  %v1393 = vsel %vm283, %v1362, 0
  %1395 = vmatprep.subr.mxu0 0.0
  %1396 = vmatpush1.xpose.msra.mxu0 %v1379
  %1397 = vmatprep.subr.mxu0 0.0
  %1398 = vmatpush1.xpose.msra.mxu0 %v1381
  %1399 = vmatprep.subr.mxu0 0.0
  %1400 = vmatpush1.xpose.msra.mxu0 %v1383
  %1401 = vmatprep.subr.mxu0 0.0
  %1402 = vmatpush1.xpose.msra.mxu0 %v1385
  %1403 = vmatprep.subr.mxu0 0.0
  %1404 = vmatpush1.xpose.msra.mxu0 %v1387
  %1405 = vmatprep.subr.mxu0 0.0
  %1406 = vmatpush1.xpose.msra.mxu0 %v1389
  %1407 = vmatprep.subr.mxu0 0.0
  %1408 = vmatpush1.xpose.msra.mxu0 %v1391
  %1409 = vmatprep.subr.mxu0 0.0
  %1410 = vmatpush1.xpose.msra.mxu0 %v1393
  %1411 = vmatprep.subr.mxu0 0.0
  %1412 = vmatpush1.xpose.msra.mxu0 0.0
  %1413 = vmatprep.subr.mxu0 0.0
  %1414 = vmatpush1.xpose.msra.mxu0 0.0
  %1415 = vmatprep.subr.mxu0 0.0
  %1416 = vmatpush1.xpose.msra.mxu0 0.0
  %1417 = vmatprep.subr.mxu0 0.0
  %1418 = vmatpush1.xpose.msra.mxu0 0.0
  %1419 = vmatprep.subr.mxu0 0.0
  %1420 = vmatpush1.xpose.msra.mxu0 0.0
  %1421 = vmatprep.subr.mxu0 0.0
  %1422 = vmatpush1.xpose.msra.mxu0 0.0
  %1423 = vmatprep.subr.mxu0 0.0
  %1424 = vmatpush1.xpose.msra.mxu0 0.0
  %1425 = vmatprep.subr.mxu0 0.0
  %1426 = vmatpush1.xpose.msra.mxu0 0.0
  %1427 = vmatprep.subr.mxu0 0.0
  %1428 = vmatpush1.xpose.msra.mxu0 0.0
  %1429 = vmatprep.subr.mxu0 0.0
  %1430 = vmatpush1.xpose.msra.mxu0 0.0
  %1431 = vmatprep.subr.mxu0 0.0
  %1432 = vmatpush1.xpose.msra.mxu0 0.0
  %1433 = vmatprep.subr.mxu0 0.0
  %1434 = vmatpush1.xpose.msra.mxu0 0.0
  %1435 = vmatprep.subr.mxu0 0.0
  %1436 = vmatpush1.xpose.msra.mxu0 0.0
  %1437 = vmatprep.subr.mxu0 0.0
  %1438 = vmatpush1.xpose.msra.mxu0 0.0
  %1439 = vmatprep.subr.mxu0 0.0
  %1440 = vmatpush1.xpose.msra.mxu0 0.0
  %1441 = vmatprep.subr.mxu0 0.0
  %1442 = vmatpush1.xpose.msra.mxu0 0.0
  %1443 = vmatprep.subr.mxu0 0.0
  %1444 = vmatpush1.xpose.msra.mxu0 0.0
  %1445 = vmatprep.subr.mxu0 0.0
  %1446 = vmatpush1.xpose.msra.mxu0 0.0
  %1447 = vmatprep.subr.mxu0 0.0
  %1448 = vmatpush1.xpose.msra.mxu0 0.0
  %1449 = vmatprep.subr.mxu0 0.0
  %1450 = vmatpush1.xpose.msra.mxu0 0.0
  %1451 = vmatprep.subr.mxu0 0.0
  %1452 = vmatpush1.xpose.msra.mxu0 0.0
  %1453 = vmatprep.subr.mxu0 0.0
  %1454 = vmatpush1.xpose.msra.mxu0 0.0
  %1455 = vmatprep.subr.mxu0 0.0
  %1456 = vmatpush1.xpose.msra.mxu0 0.0
  %1457 = vmatprep.subr.mxu0 0.0
  %1458 = vmatpush1.xpose.msra.mxu0 0.0
  %1459 = vmatprep.mubr.f32.mxu0 0.0
  %1460 = vmatmul.mubr.f32.gmra.mrb[0].mxu0 %v1363
  %v1461 = vpop.f32.mrb[0].mxu0
  %v1462 = vadd.f32 0.0, %v1461
  %v1463 = vpop.f32.mrb[0].mxu0
  %1464 = vmatprep.mubr.f32.mxu0 0.0
  %1465 = vmatmul.mubr.f32.gmra.mrb[0].mxu0 %v1365
  %v1466 = vpop.f32.mrb[0].mxu0
  %v1467 = vadd.f32 0.0, %v1466
  %v1468 = vpop.f32.mrb[0].mxu0
  %1469 = vmatprep.mubr.f32.mxu0 0.0
  %1470 = vmatmul.mubr.f32.gmra.mrb[0].mxu0 %v1367
  %v1471 = vpop.f32.mrb[0].mxu0
  %v1472 = vadd.f32 0.0, %v1471
  %v1473 = vpop.f32.mrb[0].mxu0
  %1474 = vmatprep.mubr.f32.mxu0 0.0
  %1475 = vmatmul.mubr.f32.gmra.mrb[0].mxu0 %v1369
  %v1476 = vpop.f32.mrb[0].mxu0
  %v1477 = vadd.f32 0.0, %v1476
  %v1478 = vpop.f32.mrb[0].mxu0
  %1479 = vmatprep.mubr.f32.mxu0 0.0
  %1480 = vmatmul.mubr.f32.gmra.mrb[0].mxu0 %v1371
  %v1481 = vpop.f32.mrb[0].mxu0
  %v1482 = vadd.f32 0.0, %v1481
  %v1483 = vpop.f32.mrb[0].mxu0
  %1484 = vmatprep.mubr.f32.mxu0 0.0
  %1485 = vmatmul.mubr.f32.gmra.mrb[0].mxu0 %v1373
  %v1486 = vpop.f32.mrb[0].mxu0
  %v1487 = vadd.f32 0.0, %v1486
  %v1488 = vpop.f32.mrb[0].mxu0
  %1489 = vmatprep.mubr.f32.mxu0 0.0
  %1490 = vmatmul.mubr.f32.gmra.mrb[0].mxu0 %v1375
  %v1491 = vpop.f32.mrb[0].mxu0
  %v1492 = vadd.f32 0.0, %v1491
  %v1493 = vpop.f32.mrb[0].mxu0
  %1494 = vmatprep.mubr.f32.mxu0 0.0
  %1495 = vmatmul.mubr.f32.gmra.mrb[0].mxu0 %v1377
  %v1496 = vpop.f32.mrb[0].mxu0
  %v1497 = vadd.f32 0.0, %v1496
  %v1498 = vpop.f32.mrb[0].mxu0
  %1499 = vdwg.mxu0
  %v1500 = vsel %vm421, %v1462, -inf
  %1501 = vmax.xlane.f32.xlu0 %v1500
  %v1502 = vpop.xlane.xlu0 %1501
  %v1503 = vsel %vm421, %v1467, -inf
  %1504 = vmax.xlane.f32.xlu0 %v1503
  %v1505 = vpop.xlane.xlu0 %1504
  %v1506 = vsel %vm421, %v1472, -inf
  %1507 = vmax.xlane.f32.xlu0 %v1506
  %v1508 = vpop.xlane.xlu0 %1507
  %v1509 = vsel %vm421, %v1477, -inf
  %1510 = vmax.xlane.f32.xlu0 %v1509
  %v1511 = vpop.xlane.xlu0 %1510
  %v1512 = vsel %vm421, %v1482, -inf
  %1513 = vmax.xlane.f32.xlu0 %v1512
  %v1514 = vpop.xlane.xlu0 %1513
  %v1515 = vsel %vm421, %v1487, -inf
  %1516 = vmax.xlane.f32.xlu0 %v1515
  %v1517 = vpop.xlane.xlu0 %1516
  %v1518 = vsel %vm421, %v1492, -inf
  %1519 = vmax.xlane.f32.xlu0 %v1518
  %v1520 = vpop.xlane.xlu0 %1519
  %v1521 = vsel %vm421, %v1497, -inf
  %1522 = vmax.xlane.f32.xlu0 %v1521
  %v1523 = vpop.xlane.xlu0 %1522
  %v1524 = vsub.f32 %v1462, %v1502
  %v1525 = vsub.f32 %v1467, %v1505
  %v1526 = vsub.f32 %v1472, %v1508
  %v1527 = vsub.f32 %v1477, %v1511
  %v1528 = vsub.f32 %v1482, %v1514
  %v1529 = vsub.f32 %v1487, %v1517
  %v1530 = vsub.f32 %v1492, %v1520
  %v1531 = vsub.f32 %v1497, %v1523
  %v1532 = vmul.f32 %v1524, 1.442695
  %v1533 = vpow.pop %v1532
  %v1534 = vmul.f32 %v1525, 1.442695
  %v1535 = vpow.pop %v1534
  %v1536 = vmul.f32 %v1526, 1.442695
  %v1537 = vpow.pop %v1536
  %v1538 = vmul.f32 %v1527, 1.442695
  %v1539 = vpow.pop %v1538
  %v1540 = vmul.f32 %v1528, 1.442695
  %v1541 = vpow.pop %v1540
  %v1542 = vmul.f32 %v1529, 1.442695
  %v1543 = vpow.pop %v1542
  %v1544 = vmul.f32 %v1530, 1.442695
  %v1545 = vpow.pop %v1544
  %v1546 = vmul.f32 %v1531, 1.442695
  %v1547 = vpow.pop %v1546
  %v1548 = vsel %vm421, %v1533, 0.0
  %1549 = vadd.xlane.f32.xlu0 %v1548
  %v1550 = vpop.xlane.xlu0 %1549
  %v1551 = vsel %vm421, %v1535, 0.0
  %1552 = vadd.xlane.f32.xlu0 %v1551
  %v1553 = vpop.xlane.xlu0 %1552
  %v1554 = vsel %vm421, %v1537, 0.0
  %1555 = vadd.xlane.f32.xlu0 %v1554
  %v1556 = vpop.xlane.xlu0 %1555
  %v1557 = vsel %vm421, %v1539, 0.0
  %1558 = vadd.xlane.f32.xlu0 %v1557
  %v1559 = vpop.xlane.xlu0 %1558
  %v1560 = vsel %vm421, %v1541, 0.0
  %1561 = vadd.xlane.f32.xlu0 %v1560
  %v1562 = vpop.xlane.xlu0 %1561
  %v1563 = vsel %vm421, %v1543, 0.0
  %1564 = vadd.xlane.f32.xlu0 %v1563
  %v1565 = vpop.xlane.xlu0 %1564
  %v1566 = vsel %vm421, %v1545, 0.0
  %1567 = vadd.xlane.f32.xlu0 %v1566
  %v1568 = vpop.xlane.xlu0 %1567
  %v1569 = vsel %vm421, %v1547, 0.0
  %1570 = vadd.xlane.f32.xlu0 %v1569
  %v1571 = vpop.xlane.xlu0 %1570
  %1572 = vrot.lane.b32.xlu0 %v181, 48
  %v1573 = vpop.permute.xlu0 %1572
  %1574 = vrot.lane.b32.xlu0 %v186, 48
  %v1575 = vpop.permute.xlu0 %1574
  %1576 = vrot.lane.b32.xlu0 %v191, 48
  %v1577 = vpop.permute.xlu0 %1576
  %1578 = vrot.lane.b32.xlu0 %v196, 48
  %v1579 = vpop.permute.xlu0 %1578
  %1580 = vrot.lane.b32.xlu0 %v201, 48
  %v1581 = vpop.permute.xlu0 %1580
  %1582 = vrot.lane.b32.xlu0 %v206, 48
  %v1583 = vpop.permute.xlu0 %1582
  %1584 = vrot.lane.b32.xlu0 %v211, 48
  %v1585 = vpop.permute.xlu0 %1584
  %1586 = vrot.lane.b32.xlu0 %v216, 48
  %v1587 = vpop.permute.xlu0 %1586
  %v1597 = vsel %vm421, %v1533, 0
  %v1600 = vsel %vm421, %v1535, 0
  %v1603 = vsel %vm421, %v1537, 0
  %v1606 = vsel %vm421, %v1539, 0
  %v1609 = vsel %vm421, %v1541, 0
  %v1612 = vsel %vm421, %v1543, 0
  %v1615 = vsel %vm421, %v1545, 0
  %v1618 = vsel %vm421, %v1547, 0
  %1620 = vmatprep.subr.mxu0 0.0
  %1621 = vmatpush1.msra.mxu0 %v1573
  %1622 = vmatprep.subr.mxu0 0.0
  %1623 = vmatpush1.msra.mxu0 %v1575
  %1624 = vmatprep.subr.mxu0 0.0
  %1625 = vmatpush1.msra.mxu0 %v1577
  %1626 = vmatprep.subr.mxu0 0.0
  %1627 = vmatpush1.msra.mxu0 %v1579
  %1628 = vmatprep.subr.mxu0 0.0
  %1629 = vmatpush1.msra.mxu0 %v1581
  %1630 = vmatprep.subr.mxu0 0.0
  %1631 = vmatpush1.msra.mxu0 %v1583
  %1632 = vmatprep.subr.mxu0 0.0
  %1633 = vmatpush1.msra.mxu0 %v1585
  %1634 = vmatprep.subr.mxu0 0.0
  %1635 = vmatpush1.msra.mxu0 %v1587
  %1636 = vmatprep.subr.mxu0 0.0
  %1637 = vmatpush1.msra.mxu0 0.0
  %1638 = vmatprep.subr.mxu0 0.0
  %1639 = vmatpush1.msra.mxu0 0.0
  %1640 = vmatprep.subr.mxu0 0.0
  %1641 = vmatpush1.msra.mxu0 0.0
  %1642 = vmatprep.subr.mxu0 0.0
  %1643 = vmatpush1.msra.mxu0 0.0
  %1644 = vmatprep.subr.mxu0 0.0
  %1645 = vmatpush1.msra.mxu0 0.0
  %1646 = vmatprep.subr.mxu0 0.0
  %1647 = vmatpush1.msra.mxu0 0.0
  %1648 = vmatprep.subr.mxu0 0.0
  %1649 = vmatpush1.msra.mxu0 0.0
  %1650 = vmatprep.subr.mxu0 0.0
  %1651 = vmatpush1.msra.mxu0 0.0
  %1652 = vmatprep.subr.mxu0 0.0
  %1653 = vmatpush1.msra.mxu0 0.0
  %1654 = vmatprep.subr.mxu0 0.0
  %1655 = vmatpush1.msra.mxu0 0.0
  %1656 = vmatprep.subr.mxu0 0.0
  %1657 = vmatpush1.msra.mxu0 0.0
  %1658 = vmatprep.subr.mxu0 0.0
  %1659 = vmatpush1.msra.mxu0 0.0
  %1660 = vmatprep.subr.mxu0 0.0
  %1661 = vmatpush1.msra.mxu0 0.0
  %1662 = vmatprep.subr.mxu0 0.0
  %1663 = vmatpush1.msra.mxu0 0.0
  %1664 = vmatprep.subr.mxu0 0.0
  %1665 = vmatpush1.msra.mxu0 0.0
  %1666 = vmatprep.subr.mxu0 0.0
  %1667 = vmatpush1.msra.mxu0 0.0
  %1668 = vmatprep.subr.mxu0 0.0
  %1669 = vmatpush1.msra.mxu0 0.0
  %1670 = vmatprep.subr.mxu0 0.0
  %1671 = vmatpush1.msra.mxu0 0.0
  %1672 = vmatprep.subr.mxu0 0.0
  %1673 = vmatpush1.msra.mxu0 0.0
  %1674 = vmatprep.subr.mxu0 0.0
  %1675 = vmatpush1.msra.mxu0 0.0
  %1676 = vmatprep.subr.mxu0 0.0
  %1677 = vmatpush1.msra.mxu0 0.0
  %1678 = vmatprep.subr.mxu0 0.0
  %1679 = vmatpush1.msra.mxu0 0.0
  %1680 = vmatprep.subr.mxu0 0.0
  %1681 = vmatpush1.msra.mxu0 0.0
  %1682 = vmatprep.subr.mxu0 0.0
  %1683 = vmatpush1.msra.mxu0 0.0
  %1684 = vmatprep.mubr.f32.mxu0 0.0
  %1685 = vmatmul.mubr.f32.gmra.mrb[0].mxu0 %v1597
  %v1686 = vpop.f32.mrb[0].mxu0
  %v1687 = vadd.f32 0.0, %v1686
  %v1688 = vpop.f32.mrb[0].mxu0
  %1689 = vmatprep.mubr.f32.mxu0 0.0
  %1690 = vmatmul.mubr.f32.gmra.mrb[0].mxu0 %v1600
  %v1691 = vpop.f32.mrb[0].mxu0
  %v1692 = vadd.f32 0.0, %v1691
  %v1693 = vpop.f32.mrb[0].mxu0
  %1694 = vmatprep.mubr.f32.mxu0 0.0
  %1695 = vmatmul.mubr.f32.gmra.mrb[0].mxu0 %v1603
  %v1696 = vpop.f32.mrb[0].mxu0
  %v1697 = vadd.f32 0.0, %v1696
  %v1698 = vpop.f32.mrb[0].mxu0
  %1699 = vmatprep.mubr.f32.mxu0 0.0
  %1700 = vmatmul.mubr.f32.gmra.mrb[0].mxu0 %v1606
  %v1701 = vpop.f32.mrb[0].mxu0
  %v1702 = vadd.f32 0.0, %v1701
  %v1703 = vpop.f32.mrb[0].mxu0
  %1704 = vmatprep.mubr.f32.mxu0 0.0
  %1705 = vmatmul.mubr.f32.gmra.mrb[0].mxu0 %v1609
  %v1706 = vpop.f32.mrb[0].mxu0
  %v1707 = vadd.f32 0.0, %v1706
  %v1708 = vpop.f32.mrb[0].mxu0
  %1709 = vmatprep.mubr.f32.mxu0 0.0
  %1710 = vmatmul.mubr.f32.gmra.mrb[0].mxu0 %v1612
  %v1711 = vpop.f32.mrb[0].mxu0
  %v1712 = vadd.f32 0.0, %v1711
  %v1713 = vpop.f32.mrb[0].mxu0
  %1714 = vmatprep.mubr.f32.mxu0 0.0
  %1715 = vmatmul.mubr.f32.gmra.mrb[0].mxu0 %v1615
  %v1716 = vpop.f32.mrb[0].mxu0
  %v1717 = vadd.f32 0.0, %v1716
  %v1718 = vpop.f32.mrb[0].mxu0
  %1719 = vmatprep.mubr.f32.mxu0 0.0
  %1720 = vmatmul.mubr.f32.gmra.mrb[0].mxu0 %v1618
  %v1721 = vpop.f32.mrb[0].mxu0
  %v1722 = vadd.f32 0.0, %v1721
  %v1723 = vpop.f32.mrb[0].mxu0
  %1724 = vdwg.mxu0
  %v1725 = vrcp.pop %v1550
  %v1726 = vrcp.pop %v1553
  %v1727 = vrcp.pop %v1556
  %v1728 = vrcp.pop %v1559
  %v1729 = vrcp.pop %v1562
  %v1730 = vrcp.pop %v1565
  %v1731 = vrcp.pop %v1568
  %v1732 = vrcp.pop %v1571
  %v1733 = vmul.f32 %v1687, %v1725
  %v1734 = vmul.f32 %v1692, %v1726
  %v1735 = vmul.f32 %v1697, %v1727
  %v1736 = vmul.f32 %v1702, %v1728
  %v1737 = vmul.f32 %v1707, %v1729
  %v1738 = vmul.f32 %v1712, %v1730
  %v1739 = vmul.f32 %v1717, %v1731
  %v1740 = vmul.f32 %v1722, %v1732
  %v1742 = vsel %vm283, %v1733, 0
  %v1745 = vsel %vm283, %v1734, 0
  %v1748 = vsel %vm283, %v1735, 0
  %v1751 = vsel %vm283, %v1736, 0
  %v1754 = vsel %vm283, %v1737, 0
  %v1757 = vsel %vm283, %v1738, 0
  %v1760 = vsel %vm283, %v1739, 0
  %v1763 = vsel %vm283, %v1740, 0
  %1765 = vmatprep.subr.mxu0 0.0
  %1766 = vmatpush1.msra.mxu0 %v37
  %1767 = vmatprep.subr.mxu0 0.0
  %1768 = vmatpush1.msra.mxu0 0.0
  %1769 = vmatprep.subr.mxu0 0.0
  %1770 = vmatpush1.msra.mxu0 0.0
  %1771 = vmatprep.subr.mxu0 0.0
  %1772 = vmatpush1.msra.mxu0 0.0
  %1773 = vmatprep.subr.mxu0 0.0
  %1774 = vmatpush1.msra.mxu0 0.0
  %1775 = vmatprep.subr.mxu0 0.0
  %1776 = vmatpush1.msra.mxu0 0.0
  %1777 = vmatprep.subr.mxu0 0.0
  %1778 = vmatpush1.msra.mxu0 0.0
  %1779 = vmatprep.subr.mxu0 0.0
  %1780 = vmatpush1.msra.mxu0 0.0
  %1781 = vmatprep.subr.mxu0 0.0
  %1782 = vmatpush1.msra.mxu0 0.0
  %1783 = vmatprep.subr.mxu0 0.0
  %1784 = vmatpush1.msra.mxu0 0.0
  %1785 = vmatprep.subr.mxu0 0.0
  %1786 = vmatpush1.msra.mxu0 0.0
  %1787 = vmatprep.subr.mxu0 0.0
  %1788 = vmatpush1.msra.mxu0 0.0
  %1789 = vmatprep.subr.mxu0 0.0
  %1790 = vmatpush1.msra.mxu0 0.0
  %1791 = vmatprep.subr.mxu0 0.0
  %1792 = vmatpush1.msra.mxu0 0.0
  %1793 = vmatprep.subr.mxu0 0.0
  %1794 = vmatpush1.msra.mxu0 0.0
  %1795 = vmatprep.subr.mxu0 0.0
  %1796 = vmatpush1.msra.mxu0 0.0
  %1797 = vmatprep.subr.mxu0 0.0
  %1798 = vmatpush1.msra.mxu0 0.0
  %1799 = vmatprep.subr.mxu0 0.0
  %1800 = vmatpush1.msra.mxu0 0.0
  %1801 = vmatprep.subr.mxu0 0.0
  %1802 = vmatpush1.msra.mxu0 0.0
  %1803 = vmatprep.subr.mxu0 0.0
  %1804 = vmatpush1.msra.mxu0 0.0
  %1805 = vmatprep.subr.mxu0 0.0
  %1806 = vmatpush1.msra.mxu0 0.0
  %1807 = vmatprep.subr.mxu0 0.0
  %1808 = vmatpush1.msra.mxu0 0.0
  %1809 = vmatprep.subr.mxu0 0.0
  %1810 = vmatpush1.msra.mxu0 0.0
  %1811 = vmatprep.subr.mxu0 0.0
  %1812 = vmatpush1.msra.mxu0 0.0
  %1813 = vmatprep.subr.mxu0 0.0
  %1814 = vmatpush1.msra.mxu0 0.0
  %1815 = vmatprep.subr.mxu0 0.0
  %1816 = vmatpush1.msra.mxu0 0.0
  %1817 = vmatprep.subr.mxu0 0.0
  %1818 = vmatpush1.msra.mxu0 0.0
  %1819 = vmatprep.subr.mxu0 0.0
  %1820 = vmatpush1.msra.mxu0 0.0
  %1821 = vmatprep.subr.mxu0 0.0
  %1822 = vmatpush1.msra.mxu0 0.0
  %1823 = vmatprep.subr.mxu0 0.0
  %1824 = vmatpush1.msra.mxu0 0.0
  %1825 = vmatprep.subr.mxu0 0.0
  %1826 = vmatpush1.msra.mxu0 0.0
  %1827 = vmatprep.subr.mxu0 0.0
  %1828 = vmatpush1.msra.mxu0 0.0
  %1829 = vmatprep.mubr.f32.mxu0 0.0
  %1830 = vmatmul.mubr.f32.gmra.mrb[0].mxu0 %v1742
  %v1831 = vpop.f32.mrb[0].mxu0
  %v1832 = vadd.f32 0.0, %v1831
  %v1833 = vpop.f32.mrb[0].mxu0
  %1834 = vmatprep.mubr.f32.mxu0 0.0
  %1835 = vmatmul.mubr.f32.gmra.mrb[0].mxu0 %v1745
  %v1836 = vpop.f32.mrb[0].mxu0
  %v1837 = vadd.f32 0.0, %v1836
  %v1838 = vpop.f32.mrb[0].mxu0
  %1839 = vmatprep.mubr.f32.mxu0 0.0
  %1840 = vmatmul.mubr.f32.gmra.mrb[0].mxu0 %v1748
  %v1841 = vpop.f32.mrb[0].mxu0
  %v1842 = vadd.f32 0.0, %v1841
  %v1843 = vpop.f32.mrb[0].mxu0
  %1844 = vmatprep.mubr.f32.mxu0 0.0
  %1845 = vmatmul.mubr.f32.gmra.mrb[0].mxu0 %v1751
  %v1846 = vpop.f32.mrb[0].mxu0
  %v1847 = vadd.f32 0.0, %v1846
  %v1848 = vpop.f32.mrb[0].mxu0
  %1849 = vmatprep.mubr.f32.mxu0 0.0
  %1850 = vmatmul.mubr.f32.gmra.mrb[0].mxu0 %v1754
  %v1851 = vpop.f32.mrb[0].mxu0
  %v1852 = vadd.f32 0.0, %v1851
  %v1853 = vpop.f32.mrb[0].mxu0
  %1854 = vmatprep.mubr.f32.mxu0 0.0
  %1855 = vmatmul.mubr.f32.gmra.mrb[0].mxu0 %v1757
  %v1856 = vpop.f32.mrb[0].mxu0
  %v1857 = vadd.f32 0.0, %v1856
  %v1858 = vpop.f32.mrb[0].mxu0
  %1859 = vmatprep.mubr.f32.mxu0 0.0
  %1860 = vmatmul.mubr.f32.gmra.mrb[0].mxu0 %v1760
  %v1861 = vpop.f32.mrb[0].mxu0
  %v1862 = vadd.f32 0.0, %v1861
  %v1863 = vpop.f32.mrb[0].mxu0
  %1864 = vmatprep.mubr.f32.mxu0 0.0
  %1865 = vmatmul.mubr.f32.gmra.mrb[0].mxu0 %v1763
  %v1866 = vpop.f32.mrb[0].mxu0
  %v1867 = vadd.f32 0.0, %v1866
  %v1868 = vpop.f32.mrb[0].mxu0
  %1869 = vdwg.mxu0
  %v1870 = vadd.f32 %v1293, %v1832
  %v1871 = vadd.f32 %v1298, %v1837
  %v1872 = vadd.f32 %v1303, %v1842
  %v1873 = vadd.f32 %v1308, %v1847
  %v1874 = vadd.f32 %v1313, %v1852
  %v1875 = vadd.f32 %v1318, %v1857
  %v1876 = vadd.f32 %v1323, %v1862
  %v1877 = vadd.f32 %v1328, %v1867
  %1878 = vrot.lane.b32.xlu0 %v181, 104
  %v1879 = vpop.permute.xlu0 %1878
  %1880 = vrot.lane.b32.xlu0 %v186, 104
  %v1881 = vpop.permute.xlu0 %1880
  %1882 = vrot.lane.b32.xlu0 %v191, 104
  %v1883 = vpop.permute.xlu0 %1882
  %1884 = vrot.lane.b32.xlu0 %v196, 104
  %v1885 = vpop.permute.xlu0 %1884
  %1886 = vrot.lane.b32.xlu0 %v201, 104
  %v1887 = vpop.permute.xlu0 %1886
  %1888 = vrot.lane.b32.xlu0 %v206, 104
  %v1889 = vpop.permute.xlu0 %1888
  %1890 = vrot.lane.b32.xlu0 %v211, 104
  %v1891 = vpop.permute.xlu0 %1890
  %1892 = vrot.lane.b32.xlu0 %v216, 104
  %v1893 = vpop.permute.xlu0 %1892
  %1894 = vrot.lane.b32.xlu0 %v181, 72
  %v1895 = vpop.permute.xlu0 %1894
  %1896 = vrot.lane.b32.xlu0 %v186, 72
  %v1897 = vpop.permute.xlu0 %1896
  %1898 = vrot.lane.b32.xlu0 %v191, 72
  %v1899 = vpop.permute.xlu0 %1898
  %1900 = vrot.lane.b32.xlu0 %v196, 72
  %v1901 = vpop.permute.xlu0 %1900
  %1902 = vrot.lane.b32.xlu0 %v201, 72
  %v1903 = vpop.permute.xlu0 %1902
  %1904 = vrot.lane.b32.xlu0 %v206, 72
  %v1905 = vpop.permute.xlu0 %1904
  %1906 = vrot.lane.b32.xlu0 %v211, 72
  %v1907 = vpop.permute.xlu0 %1906
  %1908 = vrot.lane.b32.xlu0 %v216, 72
  %v1909 = vpop.permute.xlu0 %1908
  %v1910 = vsel %vm283, %v1879, 0
  %v1912 = vsel %vm283, %v1881, 0
  %v1914 = vsel %vm283, %v1883, 0
  %v1916 = vsel %vm283, %v1885, 0
  %v1918 = vsel %vm283, %v1887, 0
  %v1920 = vsel %vm283, %v1889, 0
  %v1922 = vsel %vm283, %v1891, 0
  %v1924 = vsel %vm283, %v1893, 0
  %v1926 = vsel %vm283, %v1895, 0
  %v1928 = vsel %vm283, %v1897, 0
  %v1930 = vsel %vm283, %v1899, 0
  %v1932 = vsel %vm283, %v1901, 0
  %v1934 = vsel %vm283, %v1903, 0
  %v1936 = vsel %vm283, %v1905, 0
  %v1938 = vsel %vm283, %v1907, 0
  %v1940 = vsel %vm283, %v1909, 0
  %1942 = vmatprep.subr.mxu0 0.0
  %1943 = vmatpush1.xpose.msra.mxu0 %v1926
  %1944 = vmatprep.subr.mxu0 0.0
  %1945 = vmatpush1.xpose.msra.mxu0 %v1928
  %1946 = vmatprep.subr.mxu0 0.0
  %1947 = vmatpush1.xpose.msra.mxu0 %v1930
  %1948 = vmatprep.subr.mxu0 0.0
  %1949 = vmatpush1.xpose.msra.mxu0 %v1932
  %1950 = vmatprep.subr.mxu0 0.0
  %1951 = vmatpush1.xpose.msra.mxu0 %v1934
  %1952 = vmatprep.subr.mxu0 0.0
  %1953 = vmatpush1.xpose.msra.mxu0 %v1936
  %1954 = vmatprep.subr.mxu0 0.0
  %1955 = vmatpush1.xpose.msra.mxu0 %v1938
  %1956 = vmatprep.subr.mxu0 0.0
  %1957 = vmatpush1.xpose.msra.mxu0 %v1940
  %1958 = vmatprep.subr.mxu0 0.0
  %1959 = vmatpush1.xpose.msra.mxu0 0.0
  %1960 = vmatprep.subr.mxu0 0.0
  %1961 = vmatpush1.xpose.msra.mxu0 0.0
  %1962 = vmatprep.subr.mxu0 0.0
  %1963 = vmatpush1.xpose.msra.mxu0 0.0
  %1964 = vmatprep.subr.mxu0 0.0
  %1965 = vmatpush1.xpose.msra.mxu0 0.0
  %1966 = vmatprep.subr.mxu0 0.0
  %1967 = vmatpush1.xpose.msra.mxu0 0.0
  %1968 = vmatprep.subr.mxu0 0.0
  %1969 = vmatpush1.xpose.msra.mxu0 0.0
  %1970 = vmatprep.subr.mxu0 0.0
  %1971 = vmatpush1.xpose.msra.mxu0 0.0
  %1972 = vmatprep.subr.mxu0 0.0
  %1973 = vmatpush1.xpose.msra.mxu0 0.0
  %1974 = vmatprep.subr.mxu0 0.0
  %1975 = vmatpush1.xpose.msra.mxu0 0.0
  %1976 = vmatprep.subr.mxu0 0.0
  %1977 = vmatpush1.xpose.msra.mxu0 0.0
  %1978 = vmatprep.subr.mxu0 0.0
  %1979 = vmatpush1.xpose.msra.mxu0 0.0
  %1980 = vmatprep.subr.mxu0 0.0
  %1981 = vmatpush1.xpose.msra.mxu0 0.0
  %1982 = vmatprep.subr.mxu0 0.0
  %1983 = vmatpush1.xpose.msra.mxu0 0.0
  %1984 = vmatprep.subr.mxu0 0.0
  %1985 = vmatpush1.xpose.msra.mxu0 0.0
  %1986 = vmatprep.subr.mxu0 0.0
  %1987 = vmatpush1.xpose.msra.mxu0 0.0
  %1988 = vmatprep.subr.mxu0 0.0
  %1989 = vmatpush1.xpose.msra.mxu0 0.0
  %1990 = vmatprep.subr.mxu0 0.0
  %1991 = vmatpush1.xpose.msra.mxu0 0.0
  %1992 = vmatprep.subr.mxu0 0.0
  %1993 = vmatpush1.xpose.msra.mxu0 0.0
  %1994 = vmatprep.subr.mxu0 0.0
  %1995 = vmatpush1.xpose.msra.mxu0 0.0
  %1996 = vmatprep.subr.mxu0 0.0
  %1997 = vmatpush1.xpose.msra.mxu0 0.0
  %1998 = vmatprep.subr.mxu0 0.0
  %1999 = vmatpush1.xpose.msra.mxu0 0.0
  %2000 = vmatprep.subr.mxu0 0.0
  %2001 = vmatpush1.xpose.msra.mxu0 0.0
  %2002 = vmatprep.subr.mxu0 0.0
  %2003 = vmatpush1.xpose.msra.mxu0 0.0
  %2004 = vmatprep.subr.mxu0 0.0
  %2005 = vmatpush1.xpose.msra.mxu0 0.0
  %2006 = vmatprep.mubr.f32.mxu0 0.0
  %2007 = vmatmul.mubr.f32.gmra.mrb[0].mxu0 %v1910
  %v2008 = vpop.f32.mrb[0].mxu0
  %v2009 = vadd.f32 0.0, %v2008
  %v2010 = vpop.f32.mrb[0].mxu0
  %2011 = vmatprep.mubr.f32.mxu0 0.0
  %2012 = vmatmul.mubr.f32.gmra.mrb[0].mxu0 %v1912
  %v2013 = vpop.f32.mrb[0].mxu0
  %v2014 = vadd.f32 0.0, %v2013
  %v2015 = vpop.f32.mrb[0].mxu0
  %2016 = vmatprep.mubr.f32.mxu0 0.0
  %2017 = vmatmul.mubr.f32.gmra.mrb[0].mxu0 %v1914
  %v2018 = vpop.f32.mrb[0].mxu0
  %v2019 = vadd.f32 0.0, %v2018
  %v2020 = vpop.f32.mrb[0].mxu0
  %2021 = vmatprep.mubr.f32.mxu0 0.0
  %2022 = vmatmul.mubr.f32.gmra.mrb[0].mxu0 %v1916
  %v2023 = vpop.f32.mrb[0].mxu0
  %v2024 = vadd.f32 0.0, %v2023
  %v2025 = vpop.f32.mrb[0].mxu0
  %2026 = vmatprep.mubr.f32.mxu0 0.0
  %2027 = vmatmul.mubr.f32.gmra.mrb[0].mxu0 %v1918
  %v2028 = vpop.f32.mrb[0].mxu0
  %v2029 = vadd.f32 0.0, %v2028
  %v2030 = vpop.f32.mrb[0].mxu0
  %2031 = vmatprep.mubr.f32.mxu0 0.0
  %2032 = vmatmul.mubr.f32.gmra.mrb[0].mxu0 %v1920
  %v2033 = vpop.f32.mrb[0].mxu0
  %v2034 = vadd.f32 0.0, %v2033
  %v2035 = vpop.f32.mrb[0].mxu0
  %2036 = vmatprep.mubr.f32.mxu0 0.0
  %2037 = vmatmul.mubr.f32.gmra.mrb[0].mxu0 %v1922
  %v2038 = vpop.f32.mrb[0].mxu0
  %v2039 = vadd.f32 0.0, %v2038
  %v2040 = vpop.f32.mrb[0].mxu0
  %2041 = vmatprep.mubr.f32.mxu0 0.0
  %2042 = vmatmul.mubr.f32.gmra.mrb[0].mxu0 %v1924
  %v2043 = vpop.f32.mrb[0].mxu0
  %v2044 = vadd.f32 0.0, %v2043
  %v2045 = vpop.f32.mrb[0].mxu0
  %2046 = vdwg.mxu0
  %v2047 = vsel %vm421, %v2009, -inf
  %2048 = vmax.xlane.f32.xlu0 %v2047
  %v2049 = vpop.xlane.xlu0 %2048
  %v2050 = vsel %vm421, %v2014, -inf
  %2051 = vmax.xlane.f32.xlu0 %v2050
  %v2052 = vpop.xlane.xlu0 %2051
  %v2053 = vsel %vm421, %v2019, -inf
  %2054 = vmax.xlane.f32.xlu0 %v2053
  %v2055 = vpop.xlane.xlu0 %2054
  %v2056 = vsel %vm421, %v2024, -inf
  %2057 = vmax.xlane.f32.xlu0 %v2056
  %v2058 = vpop.xlane.xlu0 %2057
  %v2059 = vsel %vm421, %v2029, -inf
  %2060 = vmax.xlane.f32.xlu0 %v2059
  %v2061 = vpop.xlane.xlu0 %2060
  %v2062 = vsel %vm421, %v2034, -inf
  %2063 = vmax.xlane.f32.xlu0 %v2062
  %v2064 = vpop.xlane.xlu0 %2063
  %v2065 = vsel %vm421, %v2039, -inf
  %2066 = vmax.xlane.f32.xlu0 %v2065
  %v2067 = vpop.xlane.xlu0 %2066
  %v2068 = vsel %vm421, %v2044, -inf
  %2069 = vmax.xlane.f32.xlu0 %v2068
  %v2070 = vpop.xlane.xlu0 %2069
  %v2071 = vsub.f32 %v2009, %v2049
  %v2072 = vsub.f32 %v2014, %v2052
  %v2073 = vsub.f32 %v2019, %v2055
  %v2074 = vsub.f32 %v2024, %v2058
  %v2075 = vsub.f32 %v2029, %v2061
  %v2076 = vsub.f32 %v2034, %v2064
  %v2077 = vsub.f32 %v2039, %v2067
  %v2078 = vsub.f32 %v2044, %v2070
  %v2079 = vmul.f32 %v2071, 1.442695
  %v2080 = vpow.pop %v2079
  %v2081 = vmul.f32 %v2072, 1.442695
  %v2082 = vpow.pop %v2081
  %v2083 = vmul.f32 %v2073, 1.442695
  %v2084 = vpow.pop %v2083
  %v2085 = vmul.f32 %v2074, 1.442695
  %v2086 = vpow.pop %v2085
  %v2087 = vmul.f32 %v2075, 1.442695
  %v2088 = vpow.pop %v2087
  %v2089 = vmul.f32 %v2076, 1.442695
  %v2090 = vpow.pop %v2089
  %v2091 = vmul.f32 %v2077, 1.442695
  %v2092 = vpow.pop %v2091
  %v2093 = vmul.f32 %v2078, 1.442695
  %v2094 = vpow.pop %v2093
  %v2095 = vsel %vm421, %v2080, 0.0
  %2096 = vadd.xlane.f32.xlu0 %v2095
  %v2097 = vpop.xlane.xlu0 %2096
  %v2098 = vsel %vm421, %v2082, 0.0
  %2099 = vadd.xlane.f32.xlu0 %v2098
  %v2100 = vpop.xlane.xlu0 %2099
  %v2101 = vsel %vm421, %v2084, 0.0
  %2102 = vadd.xlane.f32.xlu0 %v2101
  %v2103 = vpop.xlane.xlu0 %2102
  %v2104 = vsel %vm421, %v2086, 0.0
  %2105 = vadd.xlane.f32.xlu0 %v2104
  %v2106 = vpop.xlane.xlu0 %2105
  %v2107 = vsel %vm421, %v2088, 0.0
  %2108 = vadd.xlane.f32.xlu0 %v2107
  %v2109 = vpop.xlane.xlu0 %2108
  %v2110 = vsel %vm421, %v2090, 0.0
  %2111 = vadd.xlane.f32.xlu0 %v2110
  %v2112 = vpop.xlane.xlu0 %2111
  %v2113 = vsel %vm421, %v2092, 0.0
  %2114 = vadd.xlane.f32.xlu0 %v2113
  %v2115 = vpop.xlane.xlu0 %2114
  %v2116 = vsel %vm421, %v2094, 0.0
  %2117 = vadd.xlane.f32.xlu0 %v2116
  %v2118 = vpop.xlane.xlu0 %2117
  %2119 = vrot.lane.b32.xlu0 %v181, 40
  %v2120 = vpop.permute.xlu0 %2119
  %2121 = vrot.lane.b32.xlu0 %v186, 40
  %v2122 = vpop.permute.xlu0 %2121
  %2123 = vrot.lane.b32.xlu0 %v191, 40
  %v2124 = vpop.permute.xlu0 %2123
  %2125 = vrot.lane.b32.xlu0 %v196, 40
  %v2126 = vpop.permute.xlu0 %2125
  %2127 = vrot.lane.b32.xlu0 %v201, 40
  %v2128 = vpop.permute.xlu0 %2127
  %2129 = vrot.lane.b32.xlu0 %v206, 40
  %v2130 = vpop.permute.xlu0 %2129
  %2131 = vrot.lane.b32.xlu0 %v211, 40
  %v2132 = vpop.permute.xlu0 %2131
  %2133 = vrot.lane.b32.xlu0 %v216, 40
  %v2134 = vpop.permute.xlu0 %2133
  %v2144 = vsel %vm421, %v2080, 0
  %v2147 = vsel %vm421, %v2082, 0
  %v2150 = vsel %vm421, %v2084, 0
  %v2153 = vsel %vm421, %v2086, 0
  %v2156 = vsel %vm421, %v2088, 0
  %v2159 = vsel %vm421, %v2090, 0
  %v2162 = vsel %vm421, %v2092, 0
  %v2165 = vsel %vm421, %v2094, 0
  %2167 = vmatprep.subr.mxu0 0.0
  %2168 = vmatpush1.msra.mxu0 %v2120
  %2169 = vmatprep.subr.mxu0 0.0
  %2170 = vmatpush1.msra.mxu0 %v2122
  %2171 = vmatprep.subr.mxu0 0.0
  %2172 = vmatpush1.msra.mxu0 %v2124
  %2173 = vmatprep.subr.mxu0 0.0
  %2174 = vmatpush1.msra.mxu0 %v2126
  %2175 = vmatprep.subr.mxu0 0.0
  %2176 = vmatpush1.msra.mxu0 %v2128
  %2177 = vmatprep.subr.mxu0 0.0
  %2178 = vmatpush1.msra.mxu0 %v2130
  %2179 = vmatprep.subr.mxu0 0.0
  %2180 = vmatpush1.msra.mxu0 %v2132
  %2181 = vmatprep.subr.mxu0 0.0
  %2182 = vmatpush1.msra.mxu0 %v2134
  %2183 = vmatprep.subr.mxu0 0.0
  %2184 = vmatpush1.msra.mxu0 0.0
  %2185 = vmatprep.subr.mxu0 0.0
  %2186 = vmatpush1.msra.mxu0 0.0
  %2187 = vmatprep.subr.mxu0 0.0
  %2188 = vmatpush1.msra.mxu0 0.0
  %2189 = vmatprep.subr.mxu0 0.0
  %2190 = vmatpush1.msra.mxu0 0.0
  %2191 = vmatprep.subr.mxu0 0.0
  %2192 = vmatpush1.msra.mxu0 0.0
  %2193 = vmatprep.subr.mxu0 0.0
  %2194 = vmatpush1.msra.mxu0 0.0
  %2195 = vmatprep.subr.mxu0 0.0
  %2196 = vmatpush1.msra.mxu0 0.0
  %2197 = vmatprep.subr.mxu0 0.0
  %2198 = vmatpush1.msra.mxu0 0.0
  %2199 = vmatprep.subr.mxu0 0.0
  %2200 = vmatpush1.msra.mxu0 0.0
  %2201 = vmatprep.subr.mxu0 0.0
  %2202 = vmatpush1.msra.mxu0 0.0
  %2203 = vmatprep.subr.mxu0 0.0
  %2204 = vmatpush1.msra.mxu0 0.0
  %2205 = vmatprep.subr.mxu0 0.0
  %2206 = vmatpush1.msra.mxu0 0.0
  %2207 = vmatprep.subr.mxu0 0.0
  %2208 = vmatpush1.msra.mxu0 0.0
  %2209 = vmatprep.subr.mxu0 0.0
  %2210 = vmatpush1.msra.mxu0 0.0
  %2211 = vmatprep.subr.mxu0 0.0
  %2212 = vmatpush1.msra.mxu0 0.0
  %2213 = vmatprep.subr.mxu0 0.0
  %2214 = vmatpush1.msra.mxu0 0.0
  %2215 = vmatprep.subr.mxu0 0.0
  %2216 = vmatpush1.msra.mxu0 0.0
  %2217 = vmatprep.subr.mxu0 0.0
  %2218 = vmatpush1.msra.mxu0 0.0
  %2219 = vmatprep.subr.mxu0 0.0
  %2220 = vmatpush1.msra.mxu0 0.0
  %2221 = vmatprep.subr.mxu0 0.0
  %2222 = vmatpush1.msra.mxu0 0.0
  %2223 = vmatprep.subr.mxu0 0.0
  %2224 = vmatpush1.msra.mxu0 0.0
  %2225 = vmatprep.subr.mxu0 0.0
  %2226 = vmatpush1.msra.mxu0 0.0
  %2227 = vmatprep.subr.mxu0 0.0
  %2228 = vmatpush1.msra.mxu0 0.0
  %2229 = vmatprep.subr.mxu0 0.0
  %2230 = vmatpush1.msra.mxu0 0.0
  %2231 = vmatprep.mubr.f32.mxu0 0.0
  %2232 = vmatmul.mubr.f32.gmra.mrb[0].mxu0 %v2144
  %v2233 = vpop.f32.mrb[0].mxu0
  %v2234 = vadd.f32 0.0, %v2233
  %v2235 = vpop.f32.mrb[0].mxu0
  %2236 = vmatprep.mubr.f32.mxu0 0.0
  %2237 = vmatmul.mubr.f32.gmra.mrb[0].mxu0 %v2147
  %v2238 = vpop.f32.mrb[0].mxu0
  %v2239 = vadd.f32 0.0, %v2238
  %v2240 = vpop.f32.mrb[0].mxu0
  %2241 = vmatprep.mubr.f32.mxu0 0.0
  %2242 = vmatmul.mubr.f32.gmra.mrb[0].mxu0 %v2150
  %v2243 = vpop.f32.mrb[0].mxu0
  %v2244 = vadd.f32 0.0, %v2243
  %v2245 = vpop.f32.mrb[0].mxu0
  %2246 = vmatprep.mubr.f32.mxu0 0.0
  %2247 = vmatmul.mubr.f32.gmra.mrb[0].mxu0 %v2153
  %v2248 = vpop.f32.mrb[0].mxu0
  %v2249 = vadd.f32 0.0, %v2248
  %v2250 = vpop.f32.mrb[0].mxu0
  %2251 = vmatprep.mubr.f32.mxu0 0.0
  %2252 = vmatmul.mubr.f32.gmra.mrb[0].mxu0 %v2156
  %v2253 = vpop.f32.mrb[0].mxu0
  %v2254 = vadd.f32 0.0, %v2253
  %v2255 = vpop.f32.mrb[0].mxu0
  %2256 = vmatprep.mubr.f32.mxu0 0.0
  %2257 = vmatmul.mubr.f32.gmra.mrb[0].mxu0 %v2159
  %v2258 = vpop.f32.mrb[0].mxu0
  %v2259 = vadd.f32 0.0, %v2258
  %v2260 = vpop.f32.mrb[0].mxu0
  %2261 = vmatprep.mubr.f32.mxu0 0.0
  %2262 = vmatmul.mubr.f32.gmra.mrb[0].mxu0 %v2162
  %v2263 = vpop.f32.mrb[0].mxu0
  %v2264 = vadd.f32 0.0, %v2263
  %v2265 = vpop.f32.mrb[0].mxu0
  %2266 = vmatprep.mubr.f32.mxu0 0.0
  %2267 = vmatmul.mubr.f32.gmra.mrb[0].mxu0 %v2165
  %v2268 = vpop.f32.mrb[0].mxu0
  %v2269 = vadd.f32 0.0, %v2268
  %v2270 = vpop.f32.mrb[0].mxu0
  %2271 = vdwg.mxu0
  %v2272 = vrcp.pop %v2097
  %v2273 = vrcp.pop %v2100
  %v2274 = vrcp.pop %v2103
  %v2275 = vrcp.pop %v2106
  %v2276 = vrcp.pop %v2109
  %v2277 = vrcp.pop %v2112
  %v2278 = vrcp.pop %v2115
  %v2279 = vrcp.pop %v2118
  %v2280 = vmul.f32 %v2234, %v2272
  %v2281 = vmul.f32 %v2239, %v2273
  %v2282 = vmul.f32 %v2244, %v2274
  %v2283 = vmul.f32 %v2249, %v2275
  %v2284 = vmul.f32 %v2254, %v2276
  %v2285 = vmul.f32 %v2259, %v2277
  %v2286 = vmul.f32 %v2264, %v2278
  %v2287 = vmul.f32 %v2269, %v2279
  %v2289 = vsel %vm283, %v2280, 0
  %v2292 = vsel %vm283, %v2281, 0
  %v2295 = vsel %vm283, %v2282, 0
  %v2298 = vsel %vm283, %v2283, 0
  %v2301 = vsel %vm283, %v2284, 0
  %v2304 = vsel %vm283, %v2285, 0
  %v2307 = vsel %vm283, %v2286, 0
  %v2310 = vsel %vm283, %v2287, 0
  %2312 = vmatprep.subr.mxu0 0.0
  %2313 = vmatpush1.msra.mxu0 %v38
  %2314 = vmatprep.subr.mxu0 0.0
  %2315 = vmatpush1.msra.mxu0 0.0
  %2316 = vmatprep.subr.mxu0 0.0
  %2317 = vmatpush1.msra.mxu0 0.0
  %2318 = vmatprep.subr.mxu0 0.0
  %2319 = vmatpush1.msra.mxu0 0.0
  %2320 = vmatprep.subr.mxu0 0.0
  %2321 = vmatpush1.msra.mxu0 0.0
  %2322 = vmatprep.subr.mxu0 0.0
  %2323 = vmatpush1.msra.mxu0 0.0
  %2324 = vmatprep.subr.mxu0 0.0
  %2325 = vmatpush1.msra.mxu0 0.0
  %2326 = vmatprep.subr.mxu0 0.0
  %2327 = vmatpush1.msra.mxu0 0.0
  %2328 = vmatprep.subr.mxu0 0.0
  %2329 = vmatpush1.msra.mxu0 0.0
  %2330 = vmatprep.subr.mxu0 0.0
  %2331 = vmatpush1.msra.mxu0 0.0
  %2332 = vmatprep.subr.mxu0 0.0
  %2333 = vmatpush1.msra.mxu0 0.0
  %2334 = vmatprep.subr.mxu0 0.0
  %2335 = vmatpush1.msra.mxu0 0.0
  %2336 = vmatprep.subr.mxu0 0.0
  %2337 = vmatpush1.msra.mxu0 0.0
  %2338 = vmatprep.subr.mxu0 0.0
  %2339 = vmatpush1.msra.mxu0 0.0
  %2340 = vmatprep.subr.mxu0 0.0
  %2341 = vmatpush1.msra.mxu0 0.0
  %2342 = vmatprep.subr.mxu0 0.0
  %2343 = vmatpush1.msra.mxu0 0.0
  %2344 = vmatprep.subr.mxu0 0.0
  %2345 = vmatpush1.msra.mxu0 0.0
  %2346 = vmatprep.subr.mxu0 0.0
  %2347 = vmatpush1.msra.mxu0 0.0
  %2348 = vmatprep.subr.mxu0 0.0
  %2349 = vmatpush1.msra.mxu0 0.0
  %2350 = vmatprep.subr.mxu0 0.0
  %2351 = vmatpush1.msra.mxu0 0.0
  %2352 = vmatprep.subr.mxu0 0.0
  %2353 = vmatpush1.msra.mxu0 0.0
  %2354 = vmatprep.subr.mxu0 0.0
  %2355 = vmatpush1.msra.mxu0 0.0
  %2356 = vmatprep.subr.mxu0 0.0
  %2357 = vmatpush1.msra.mxu0 0.0
  %2358 = vmatprep.subr.mxu0 0.0
  %2359 = vmatpush1.msra.mxu0 0.0
  %2360 = vmatprep.subr.mxu0 0.0
  %2361 = vmatpush1.msra.mxu0 0.0
  %2362 = vmatprep.subr.mxu0 0.0
  %2363 = vmatpush1.msra.mxu0 0.0
  %2364 = vmatprep.subr.mxu0 0.0
  %2365 = vmatpush1.msra.mxu0 0.0
  %2366 = vmatprep.subr.mxu0 0.0
  %2367 = vmatpush1.msra.mxu0 0.0
  %2368 = vmatprep.subr.mxu0 0.0
  %2369 = vmatpush1.msra.mxu0 0.0
  %2370 = vmatprep.subr.mxu0 0.0
  %2371 = vmatpush1.msra.mxu0 0.0
  %2372 = vmatprep.subr.mxu0 0.0
  %2373 = vmatpush1.msra.mxu0 0.0
  %2374 = vmatprep.subr.mxu0 0.0
  %2375 = vmatpush1.msra.mxu0 0.0
  %2376 = vmatprep.mubr.f32.mxu0 0.0
  %2377 = vmatmul.mubr.f32.gmra.mrb[0].mxu0 %v2289
  %v2378 = vpop.f32.mrb[0].mxu0
  %v2379 = vadd.f32 0.0, %v2378
  %v2380 = vpop.f32.mrb[0].mxu0
  %2381 = vmatprep.mubr.f32.mxu0 0.0
  %2382 = vmatmul.mubr.f32.gmra.mrb[0].mxu0 %v2292
  %v2383 = vpop.f32.mrb[0].mxu0
  %v2384 = vadd.f32 0.0, %v2383
  %v2385 = vpop.f32.mrb[0].mxu0
  %2386 = vmatprep.mubr.f32.mxu0 0.0
  %2387 = vmatmul.mubr.f32.gmra.mrb[0].mxu0 %v2295
  %v2388 = vpop.f32.mrb[0].mxu0
  %v2389 = vadd.f32 0.0, %v2388
  %v2390 = vpop.f32.mrb[0].mxu0
  %2391 = vmatprep.mubr.f32.mxu0 0.0
  %2392 = vmatmul.mubr.f32.gmra.mrb[0].mxu0 %v2298
  %v2393 = vpop.f32.mrb[0].mxu0
  %v2394 = vadd.f32 0.0, %v2393
  %v2395 = vpop.f32.mrb[0].mxu0
  %2396 = vmatprep.mubr.f32.mxu0 0.0
  %2397 = vmatmul.mubr.f32.gmra.mrb[0].mxu0 %v2301
  %v2398 = vpop.f32.mrb[0].mxu0
  %v2399 = vadd.f32 0.0, %v2398
  %v2400 = vpop.f32.mrb[0].mxu0
  %2401 = vmatprep.mubr.f32.mxu0 0.0
  %2402 = vmatmul.mubr.f32.gmra.mrb[0].mxu0 %v2304
  %v2403 = vpop.f32.mrb[0].mxu0
  %v2404 = vadd.f32 0.0, %v2403
  %v2405 = vpop.f32.mrb[0].mxu0
  %2406 = vmatprep.mubr.f32.mxu0 0.0
  %2407 = vmatmul.mubr.f32.gmra.mrb[0].mxu0 %v2307
  %v2408 = vpop.f32.mrb[0].mxu0
  %v2409 = vadd.f32 0.0, %v2408
  %v2410 = vpop.f32.mrb[0].mxu0
  %2411 = vmatprep.mubr.f32.mxu0 0.0
  %2412 = vmatmul.mubr.f32.gmra.mrb[0].mxu0 %v2310
  %v2413 = vpop.f32.mrb[0].mxu0
  %v2414 = vadd.f32 0.0, %v2413
  %v2415 = vpop.f32.mrb[0].mxu0
  %2416 = vdwg.mxu0
  %v2417 = vadd.f32 %v1870, %v2379
  %v2418 = vadd.f32 %v1871, %v2384
  %v2419 = vadd.f32 %v1872, %v2389
  %v2420 = vadd.f32 %v1873, %v2394
  %v2421 = vadd.f32 %v1874, %v2399
  %v2422 = vadd.f32 %v1875, %v2404
  %v2423 = vadd.f32 %v1876, %v2409
  %v2424 = vadd.f32 %v1877, %v2414
  %2433 = vrot.lane.b32.xlu0 %v221, 96
  %v2434 = vpop.permute.xlu0 %2433
  %2435 = vrot.lane.b32.xlu0 %v226, 96
  %v2436 = vpop.permute.xlu0 %2435
  %2437 = vrot.lane.b32.xlu0 %v231, 96
  %v2438 = vpop.permute.xlu0 %2437
  %2439 = vrot.lane.b32.xlu0 %v236, 96
  %v2440 = vpop.permute.xlu0 %2439
  %2441 = vrot.lane.b32.xlu0 %v241, 96
  %v2442 = vpop.permute.xlu0 %2441
  %2443 = vrot.lane.b32.xlu0 %v246, 96
  %v2444 = vpop.permute.xlu0 %2443
  %2445 = vrot.lane.b32.xlu0 %v251, 96
  %v2446 = vpop.permute.xlu0 %2445
  %2447 = vrot.lane.b32.xlu0 %v256, 96
  %v2448 = vpop.permute.xlu0 %2447
  %v2449 = vsel %vm283, %v221, 0
  %v2451 = vsel %vm283, %v226, 0
  %v2453 = vsel %vm283, %v231, 0
  %v2455 = vsel %vm283, %v236, 0
  %v2457 = vsel %vm283, %v241, 0
  %v2459 = vsel %vm283, %v246, 0
  %v2461 = vsel %vm283, %v251, 0
  %v2463 = vsel %vm283, %v256, 0
  %v2465 = vsel %vm283, %v2434, 0
  %v2467 = vsel %vm283, %v2436, 0
  %v2469 = vsel %vm283, %v2438, 0
  %v2471 = vsel %vm283, %v2440, 0
  %v2473 = vsel %vm283, %v2442, 0
  %v2475 = vsel %vm283, %v2444, 0
  %v2477 = vsel %vm283, %v2446, 0
  %v2479 = vsel %vm283, %v2448, 0
  %2481 = vmatprep.subr.mxu0 0.0
  %2482 = vmatpush1.xpose.msra.mxu0 %v2465
  %2483 = vmatprep.subr.mxu0 0.0
  %2484 = vmatpush1.xpose.msra.mxu0 %v2467
  %2485 = vmatprep.subr.mxu0 0.0
  %2486 = vmatpush1.xpose.msra.mxu0 %v2469
  %2487 = vmatprep.subr.mxu0 0.0
  %2488 = vmatpush1.xpose.msra.mxu0 %v2471
  %2489 = vmatprep.subr.mxu0 0.0
  %2490 = vmatpush1.xpose.msra.mxu0 %v2473
  %2491 = vmatprep.subr.mxu0 0.0
  %2492 = vmatpush1.xpose.msra.mxu0 %v2475
  %2493 = vmatprep.subr.mxu0 0.0
  %2494 = vmatpush1.xpose.msra.mxu0 %v2477
  %2495 = vmatprep.subr.mxu0 0.0
  %2496 = vmatpush1.xpose.msra.mxu0 %v2479
  %2497 = vmatprep.subr.mxu0 0.0
  %2498 = vmatpush1.xpose.msra.mxu0 0.0
  %2499 = vmatprep.subr.mxu0 0.0
  %2500 = vmatpush1.xpose.msra.mxu0 0.0
  %2501 = vmatprep.subr.mxu0 0.0
  %2502 = vmatpush1.xpose.msra.mxu0 0.0
  %2503 = vmatprep.subr.mxu0 0.0
  %2504 = vmatpush1.xpose.msra.mxu0 0.0
  %2505 = vmatprep.subr.mxu0 0.0
  %2506 = vmatpush1.xpose.msra.mxu0 0.0
  %2507 = vmatprep.subr.mxu0 0.0
  %2508 = vmatpush1.xpose.msra.mxu0 0.0
  %2509 = vmatprep.subr.mxu0 0.0
  %2510 = vmatpush1.xpose.msra.mxu0 0.0
  %2511 = vmatprep.subr.mxu0 0.0
  %2512 = vmatpush1.xpose.msra.mxu0 0.0
  %2513 = vmatprep.subr.mxu0 0.0
  %2514 = vmatpush1.xpose.msra.mxu0 0.0
  %2515 = vmatprep.subr.mxu0 0.0
  %2516 = vmatpush1.xpose.msra.mxu0 0.0
  %2517 = vmatprep.subr.mxu0 0.0
  %2518 = vmatpush1.xpose.msra.mxu0 0.0
  %2519 = vmatprep.subr.mxu0 0.0
  %2520 = vmatpush1.xpose.msra.mxu0 0.0
  %2521 = vmatprep.subr.mxu0 0.0
  %2522 = vmatpush1.xpose.msra.mxu0 0.0
  %2523 = vmatprep.subr.mxu0 0.0
  %2524 = vmatpush1.xpose.msra.mxu0 0.0
  %2525 = vmatprep.subr.mxu0 0.0
  %2526 = vmatpush1.xpose.msra.mxu0 0.0
  %2527 = vmatprep.subr.mxu0 0.0
  %2528 = vmatpush1.xpose.msra.mxu0 0.0
  %2529 = vmatprep.subr.mxu0 0.0
  %2530 = vmatpush1.xpose.msra.mxu0 0.0
  %2531 = vmatprep.subr.mxu0 0.0
  %2532 = vmatpush1.xpose.msra.mxu0 0.0
  %2533 = vmatprep.subr.mxu0 0.0
  %2534 = vmatpush1.xpose.msra.mxu0 0.0
  %2535 = vmatprep.subr.mxu0 0.0
  %2536 = vmatpush1.xpose.msra.mxu0 0.0
  %2537 = vmatprep.subr.mxu0 0.0
  %2538 = vmatpush1.xpose.msra.mxu0 0.0
  %2539 = vmatprep.subr.mxu0 0.0
  %2540 = vmatpush1.xpose.msra.mxu0 0.0
  %2541 = vmatprep.subr.mxu0 0.0
  %2542 = vmatpush1.xpose.msra.mxu0 0.0
  %2543 = vmatprep.subr.mxu0 0.0
  %2544 = vmatpush1.xpose.msra.mxu0 0.0
  %2545 = vmatprep.mubr.f32.mxu0 0.0
  %2546 = vmatmul.mubr.f32.gmra.mrb[0].mxu0 %v2449
  %v2547 = vpop.f32.mrb[0].mxu0
  %v2548 = vadd.f32 0.0, %v2547
  %v2549 = vpop.f32.mrb[0].mxu0
  %2550 = vmatprep.mubr.f32.mxu0 0.0
  %2551 = vmatmul.mubr.f32.gmra.mrb[0].mxu0 %v2451
  %v2552 = vpop.f32.mrb[0].mxu0
  %v2553 = vadd.f32 0.0, %v2552
  %v2554 = vpop.f32.mrb[0].mxu0
  %2555 = vmatprep.mubr.f32.mxu0 0.0
  %2556 = vmatmul.mubr.f32.gmra.mrb[0].mxu0 %v2453
  %v2557 = vpop.f32.mrb[0].mxu0
  %v2558 = vadd.f32 0.0, %v2557
  %v2559 = vpop.f32.mrb[0].mxu0
  %2560 = vmatprep.mubr.f32.mxu0 0.0
  %2561 = vmatmul.mubr.f32.gmra.mrb[0].mxu0 %v2455
  %v2562 = vpop.f32.mrb[0].mxu0
  %v2563 = vadd.f32 0.0, %v2562
  %v2564 = vpop.f32.mrb[0].mxu0
  %2565 = vmatprep.mubr.f32.mxu0 0.0
  %2566 = vmatmul.mubr.f32.gmra.mrb[0].mxu0 %v2457
  %v2567 = vpop.f32.mrb[0].mxu0
  %v2568 = vadd.f32 0.0, %v2567
  %v2569 = vpop.f32.mrb[0].mxu0
  %2570 = vmatprep.mubr.f32.mxu0 0.0
  %2571 = vmatmul.mubr.f32.gmra.mrb[0].mxu0 %v2459
  %v2572 = vpop.f32.mrb[0].mxu0
  %v2573 = vadd.f32 0.0, %v2572
  %v2574 = vpop.f32.mrb[0].mxu0
  %2575 = vmatprep.mubr.f32.mxu0 0.0
  %2576 = vmatmul.mubr.f32.gmra.mrb[0].mxu0 %v2461
  %v2577 = vpop.f32.mrb[0].mxu0
  %v2578 = vadd.f32 0.0, %v2577
  %v2579 = vpop.f32.mrb[0].mxu0
  %2580 = vmatprep.mubr.f32.mxu0 0.0
  %2581 = vmatmul.mubr.f32.gmra.mrb[0].mxu0 %v2463
  %v2582 = vpop.f32.mrb[0].mxu0
  %v2583 = vadd.f32 0.0, %v2582
  %v2584 = vpop.f32.mrb[0].mxu0
  %2585 = vdwg.mxu0
  %v2586 = vsel %vm421, %v2548, -inf
  %2587 = vmax.xlane.f32.xlu0 %v2586
  %v2588 = vpop.xlane.xlu0 %2587
  %v2589 = vsel %vm421, %v2553, -inf
  %2590 = vmax.xlane.f32.xlu0 %v2589
  %v2591 = vpop.xlane.xlu0 %2590
  %v2592 = vsel %vm421, %v2558, -inf
  %2593 = vmax.xlane.f32.xlu0 %v2592
  %v2594 = vpop.xlane.xlu0 %2593
  %v2595 = vsel %vm421, %v2563, -inf
  %2596 = vmax.xlane.f32.xlu0 %v2595
  %v2597 = vpop.xlane.xlu0 %2596
  %v2598 = vsel %vm421, %v2568, -inf
  %2599 = vmax.xlane.f32.xlu0 %v2598
  %v2600 = vpop.xlane.xlu0 %2599
  %v2601 = vsel %vm421, %v2573, -inf
  %2602 = vmax.xlane.f32.xlu0 %v2601
  %v2603 = vpop.xlane.xlu0 %2602
  %v2604 = vsel %vm421, %v2578, -inf
  %2605 = vmax.xlane.f32.xlu0 %v2604
  %v2606 = vpop.xlane.xlu0 %2605
  %v2607 = vsel %vm421, %v2583, -inf
  %2608 = vmax.xlane.f32.xlu0 %v2607
  %v2609 = vpop.xlane.xlu0 %2608
  %v2610 = vsub.f32 %v2548, %v2588
  %v2611 = vsub.f32 %v2553, %v2591
  %v2612 = vsub.f32 %v2558, %v2594
  %v2613 = vsub.f32 %v2563, %v2597
  %v2614 = vsub.f32 %v2568, %v2600
  %v2615 = vsub.f32 %v2573, %v2603
  %v2616 = vsub.f32 %v2578, %v2606
  %v2617 = vsub.f32 %v2583, %v2609
  %v2618 = vmul.f32 %v2610, 1.442695
  %v2619 = vpow.pop %v2618
  %v2620 = vmul.f32 %v2611, 1.442695
  %v2621 = vpow.pop %v2620
  %v2622 = vmul.f32 %v2612, 1.442695
  %v2623 = vpow.pop %v2622
  %v2624 = vmul.f32 %v2613, 1.442695
  %v2625 = vpow.pop %v2624
  %v2626 = vmul.f32 %v2614, 1.442695
  %v2627 = vpow.pop %v2626
  %v2628 = vmul.f32 %v2615, 1.442695
  %v2629 = vpow.pop %v2628
  %v2630 = vmul.f32 %v2616, 1.442695
  %v2631 = vpow.pop %v2630
  %v2632 = vmul.f32 %v2617, 1.442695
  %v2633 = vpow.pop %v2632
  %v2634 = vsel %vm421, %v2619, 0.0
  %2635 = vadd.xlane.f32.xlu0 %v2634
  %v2636 = vpop.xlane.xlu0 %2635
  %v2637 = vsel %vm421, %v2621, 0.0
  %2638 = vadd.xlane.f32.xlu0 %v2637
  %v2639 = vpop.xlane.xlu0 %2638
  %v2640 = vsel %vm421, %v2623, 0.0
  %2641 = vadd.xlane.f32.xlu0 %v2640
  %v2642 = vpop.xlane.xlu0 %2641
  %v2643 = vsel %vm421, %v2625, 0.0
  %2644 = vadd.xlane.f32.xlu0 %v2643
  %v2645 = vpop.xlane.xlu0 %2644
  %v2646 = vsel %vm421, %v2627, 0.0
  %2647 = vadd.xlane.f32.xlu0 %v2646
  %v2648 = vpop.xlane.xlu0 %2647
  %v2649 = vsel %vm421, %v2629, 0.0
  %2650 = vadd.xlane.f32.xlu0 %v2649
  %v2651 = vpop.xlane.xlu0 %2650
  %v2652 = vsel %vm421, %v2631, 0.0
  %2653 = vadd.xlane.f32.xlu0 %v2652
  %v2654 = vpop.xlane.xlu0 %2653
  %v2655 = vsel %vm421, %v2633, 0.0
  %2656 = vadd.xlane.f32.xlu0 %v2655
  %v2657 = vpop.xlane.xlu0 %2656
  %2658 = vrot.lane.b32.xlu0 %v221, 64
  %v2659 = vpop.permute.xlu0 %2658
  %2660 = vrot.lane.b32.xlu0 %v226, 64
  %v2661 = vpop.permute.xlu0 %2660
  %2662 = vrot.lane.b32.xlu0 %v231, 64
  %v2663 = vpop.permute.xlu0 %2662
  %2664 = vrot.lane.b32.xlu0 %v236, 64
  %v2665 = vpop.permute.xlu0 %2664
  %2666 = vrot.lane.b32.xlu0 %v241, 64
  %v2667 = vpop.permute.xlu0 %2666
  %2668 = vrot.lane.b32.xlu0 %v246, 64
  %v2669 = vpop.permute.xlu0 %2668
  %2670 = vrot.lane.b32.xlu0 %v251, 64
  %v2671 = vpop.permute.xlu0 %2670
  %2672 = vrot.lane.b32.xlu0 %v256, 64
  %v2673 = vpop.permute.xlu0 %2672
  %v2683 = vsel %vm421, %v2619, 0
  %v2686 = vsel %vm421, %v2621, 0
  %v2689 = vsel %vm421, %v2623, 0
  %v2692 = vsel %vm421, %v2625, 0
  %v2695 = vsel %vm421, %v2627, 0
  %v2698 = vsel %vm421, %v2629, 0
  %v2701 = vsel %vm421, %v2631, 0
  %v2704 = vsel %vm421, %v2633, 0
  %2706 = vmatprep.subr.mxu0 0.0
  %2707 = vmatpush1.msra.mxu0 %v2659
  %2708 = vmatprep.subr.mxu0 0.0
  %2709 = vmatpush1.msra.mxu0 %v2661
  %2710 = vmatprep.subr.mxu0 0.0
  %2711 = vmatpush1.msra.mxu0 %v2663
  %2712 = vmatprep.subr.mxu0 0.0
  %2713 = vmatpush1.msra.mxu0 %v2665
  %2714 = vmatprep.subr.mxu0 0.0
  %2715 = vmatpush1.msra.mxu0 %v2667
  %2716 = vmatprep.subr.mxu0 0.0
  %2717 = vmatpush1.msra.mxu0 %v2669
  %2718 = vmatprep.subr.mxu0 0.0
  %2719 = vmatpush1.msra.mxu0 %v2671
  %2720 = vmatprep.subr.mxu0 0.0
  %2721 = vmatpush1.msra.mxu0 %v2673
  %2722 = vmatprep.subr.mxu0 0.0
  %2723 = vmatpush1.msra.mxu0 0.0
  %2724 = vmatprep.subr.mxu0 0.0
  %2725 = vmatpush1.msra.mxu0 0.0
  %2726 = vmatprep.subr.mxu0 0.0
  %2727 = vmatpush1.msra.mxu0 0.0
  %2728 = vmatprep.subr.mxu0 0.0
  %2729 = vmatpush1.msra.mxu0 0.0
  %2730 = vmatprep.subr.mxu0 0.0
  %2731 = vmatpush1.msra.mxu0 0.0
  %2732 = vmatprep.subr.mxu0 0.0
  %2733 = vmatpush1.msra.mxu0 0.0
  %2734 = vmatprep.subr.mxu0 0.0
  %2735 = vmatpush1.msra.mxu0 0.0
  %2736 = vmatprep.subr.mxu0 0.0
  %2737 = vmatpush1.msra.mxu0 0.0
  %2738 = vmatprep.subr.mxu0 0.0
  %2739 = vmatpush1.msra.mxu0 0.0
  %2740 = vmatprep.subr.mxu0 0.0
  %2741 = vmatpush1.msra.mxu0 0.0
  %2742 = vmatprep.subr.mxu0 0.0
  %2743 = vmatpush1.msra.mxu0 0.0
  %2744 = vmatprep.subr.mxu0 0.0
  %2745 = vmatpush1.msra.mxu0 0.0
  %2746 = vmatprep.subr.mxu0 0.0
  %2747 = vmatpush1.msra.mxu0 0.0
  %2748 = vmatprep.subr.mxu0 0.0
  %2749 = vmatpush1.msra.mxu0 0.0
  %2750 = vmatprep.subr.mxu0 0.0
  %2751 = vmatpush1.msra.mxu0 0.0
  %2752 = vmatprep.subr.mxu0 0.0
  %2753 = vmatpush1.msra.mxu0 0.0
  %2754 = vmatprep.subr.mxu0 0.0
  %2755 = vmatpush1.msra.mxu0 0.0
  %2756 = vmatprep.subr.mxu0 0.0
  %2757 = vmatpush1.msra.mxu0 0.0
  %2758 = vmatprep.subr.mxu0 0.0
  %2759 = vmatpush1.msra.mxu0 0.0
  %2760 = vmatprep.subr.mxu0 0.0
  %2761 = vmatpush1.msra.mxu0 0.0
  %2762 = vmatprep.subr.mxu0 0.0
  %2763 = vmatpush1.msra.mxu0 0.0
  %2764 = vmatprep.subr.mxu0 0.0
  %2765 = vmatpush1.msra.mxu0 0.0
  %2766 = vmatprep.subr.mxu0 0.0
  %2767 = vmatpush1.msra.mxu0 0.0
  %2768 = vmatprep.subr.mxu0 0.0
  %2769 = vmatpush1.msra.mxu0 0.0
  %2770 = vmatprep.mubr.f32.mxu0 0.0
  %2771 = vmatmul.mubr.f32.gmra.mrb[0].mxu0 %v2683
  %v2772 = vpop.f32.mrb[0].mxu0
  %v2773 = vadd.f32 0.0, %v2772
  %v2774 = vpop.f32.mrb[0].mxu0
  %2775 = vmatprep.mubr.f32.mxu0 0.0
  %2776 = vmatmul.mubr.f32.gmra.mrb[0].mxu0 %v2686
  %v2777 = vpop.f32.mrb[0].mxu0
  %v2778 = vadd.f32 0.0, %v2777
  %v2779 = vpop.f32.mrb[0].mxu0
  %2780 = vmatprep.mubr.f32.mxu0 0.0
  %2781 = vmatmul.mubr.f32.gmra.mrb[0].mxu0 %v2689
  %v2782 = vpop.f32.mrb[0].mxu0
  %v2783 = vadd.f32 0.0, %v2782
  %v2784 = vpop.f32.mrb[0].mxu0
  %2785 = vmatprep.mubr.f32.mxu0 0.0
  %2786 = vmatmul.mubr.f32.gmra.mrb[0].mxu0 %v2692
  %v2787 = vpop.f32.mrb[0].mxu0
  %v2788 = vadd.f32 0.0, %v2787
  %v2789 = vpop.f32.mrb[0].mxu0
  %2790 = vmatprep.mubr.f32.mxu0 0.0
  %2791 = vmatmul.mubr.f32.gmra.mrb[0].mxu0 %v2695
  %v2792 = vpop.f32.mrb[0].mxu0
  %v2793 = vadd.f32 0.0, %v2792
  %v2794 = vpop.f32.mrb[0].mxu0
  %2795 = vmatprep.mubr.f32.mxu0 0.0
  %2796 = vmatmul.mubr.f32.gmra.mrb[0].mxu0 %v2698
  %v2797 = vpop.f32.mrb[0].mxu0
  %v2798 = vadd.f32 0.0, %v2797
  %v2799 = vpop.f32.mrb[0].mxu0
  %2800 = vmatprep.mubr.f32.mxu0 0.0
  %2801 = vmatmul.mubr.f32.gmra.mrb[0].mxu0 %v2701
  %v2802 = vpop.f32.mrb[0].mxu0
  %v2803 = vadd.f32 0.0, %v2802
  %v2804 = vpop.f32.mrb[0].mxu0
  %2805 = vmatprep.mubr.f32.mxu0 0.0
  %2806 = vmatmul.mubr.f32.gmra.mrb[0].mxu0 %v2704
  %v2807 = vpop.f32.mrb[0].mxu0
  %v2808 = vadd.f32 0.0, %v2807
  %v2809 = vpop.f32.mrb[0].mxu0
  %2810 = vdwg.mxu0
  %v2811 = vrcp.pop %v2636
  %v2812 = vrcp.pop %v2639
  %v2813 = vrcp.pop %v2642
  %v2814 = vrcp.pop %v2645
  %v2815 = vrcp.pop %v2648
  %v2816 = vrcp.pop %v2651
  %v2817 = vrcp.pop %v2654
  %v2818 = vrcp.pop %v2657
  %v2819 = vmul.f32 %v2773, %v2811
  %v2820 = vmul.f32 %v2778, %v2812
  %v2821 = vmul.f32 %v2783, %v2813
  %v2822 = vmul.f32 %v2788, %v2814
  %v2823 = vmul.f32 %v2793, %v2815
  %v2824 = vmul.f32 %v2798, %v2816
  %v2825 = vmul.f32 %v2803, %v2817
  %v2826 = vmul.f32 %v2808, %v2818
  %2827 = vrot.lane.b32.xlu0 %v221, 120
  %v2828 = vpop.permute.xlu0 %2827
  %2829 = vrot.lane.b32.xlu0 %v226, 120
  %v2830 = vpop.permute.xlu0 %2829
  %2831 = vrot.lane.b32.xlu0 %v231, 120
  %v2832 = vpop.permute.xlu0 %2831
  %2833 = vrot.lane.b32.xlu0 %v236, 120
  %v2834 = vpop.permute.xlu0 %2833
  %2835 = vrot.lane.b32.xlu0 %v241, 120
  %v2836 = vpop.permute.xlu0 %2835
  %2837 = vrot.lane.b32.xlu0 %v246, 120
  %v2838 = vpop.permute.xlu0 %2837
  %2839 = vrot.lane.b32.xlu0 %v251, 120
  %v2840 = vpop.permute.xlu0 %2839
  %2841 = vrot.lane.b32.xlu0 %v256, 120
  %v2842 = vpop.permute.xlu0 %2841
  %2843 = vrot.lane.b32.xlu0 %v221, 88
  %v2844 = vpop.permute.xlu0 %2843
  %2845 = vrot.lane.b32.xlu0 %v226, 88
  %v2846 = vpop.permute.xlu0 %2845
  %2847 = vrot.lane.b32.xlu0 %v231, 88
  %v2848 = vpop.permute.xlu0 %2847
  %2849 = vrot.lane.b32.xlu0 %v236, 88
  %v2850 = vpop.permute.xlu0 %2849
  %2851 = vrot.lane.b32.xlu0 %v241, 88
  %v2852 = vpop.permute.xlu0 %2851
  %2853 = vrot.lane.b32.xlu0 %v246, 88
  %v2854 = vpop.permute.xlu0 %2853
  %2855 = vrot.lane.b32.xlu0 %v251, 88
  %v2856 = vpop.permute.xlu0 %2855
  %2857 = vrot.lane.b32.xlu0 %v256, 88
  %v2858 = vpop.permute.xlu0 %2857
  %v2859 = vsel %vm283, %v2828, 0
  %v2861 = vsel %vm283, %v2830, 0
  %v2863 = vsel %vm283, %v2832, 0
  %v2865 = vsel %vm283, %v2834, 0
  %v2867 = vsel %vm283, %v2836, 0
  %v2869 = vsel %vm283, %v2838, 0
  %v2871 = vsel %vm283, %v2840, 0
  %v2873 = vsel %vm283, %v2842, 0
  %v2875 = vsel %vm283, %v2844, 0
  %v2877 = vsel %vm283, %v2846, 0
  %v2879 = vsel %vm283, %v2848, 0
  %v2881 = vsel %vm283, %v2850, 0
  %v2883 = vsel %vm283, %v2852, 0
  %v2885 = vsel %vm283, %v2854, 0
  %v2887 = vsel %vm283, %v2856, 0
  %v2889 = vsel %vm283, %v2858, 0
  %2891 = vmatprep.subr.mxu0 0.0
  %2892 = vmatpush1.xpose.msra.mxu0 %v2875
  %2893 = vmatprep.subr.mxu0 0.0
  %2894 = vmatpush1.xpose.msra.mxu0 %v2877
  %2895 = vmatprep.subr.mxu0 0.0
  %2896 = vmatpush1.xpose.msra.mxu0 %v2879
  %2897 = vmatprep.subr.mxu0 0.0
  %2898 = vmatpush1.xpose.msra.mxu0 %v2881
  %2899 = vmatprep.subr.mxu0 0.0
  %2900 = vmatpush1.xpose.msra.mxu0 %v2883
  %2901 = vmatprep.subr.mxu0 0.0
  %2902 = vmatpush1.xpose.msra.mxu0 %v2885
  %2903 = vmatprep.subr.mxu0 0.0
  %2904 = vmatpush1.xpose.msra.mxu0 %v2887
  %2905 = vmatprep.subr.mxu0 0.0
  %2906 = vmatpush1.xpose.msra.mxu0 %v2889
  %2907 = vmatprep.subr.mxu0 0.0
  %2908 = vmatpush1.xpose.msra.mxu0 0.0
  %2909 = vmatprep.subr.mxu0 0.0
  %2910 = vmatpush1.xpose.msra.mxu0 0.0
  %2911 = vmatprep.subr.mxu0 0.0
  %2912 = vmatpush1.xpose.msra.mxu0 0.0
  %2913 = vmatprep.subr.mxu0 0.0
  %2914 = vmatpush1.xpose.msra.mxu0 0.0
  %2915 = vmatprep.subr.mxu0 0.0
  %2916 = vmatpush1.xpose.msra.mxu0 0.0
  %2917 = vmatprep.subr.mxu0 0.0
  %2918 = vmatpush1.xpose.msra.mxu0 0.0
  %2919 = vmatprep.subr.mxu0 0.0
  %2920 = vmatpush1.xpose.msra.mxu0 0.0
  %2921 = vmatprep.subr.mxu0 0.0
  %2922 = vmatpush1.xpose.msra.mxu0 0.0
  %2923 = vmatprep.subr.mxu0 0.0
  %2924 = vmatpush1.xpose.msra.mxu0 0.0
  %2925 = vmatprep.subr.mxu0 0.0
  %2926 = vmatpush1.xpose.msra.mxu0 0.0
  %2927 = vmatprep.subr.mxu0 0.0
  %2928 = vmatpush1.xpose.msra.mxu0 0.0
  %2929 = vmatprep.subr.mxu0 0.0
  %2930 = vmatpush1.xpose.msra.mxu0 0.0
  %2931 = vmatprep.subr.mxu0 0.0
  %2932 = vmatpush1.xpose.msra.mxu0 0.0
  %2933 = vmatprep.subr.mxu0 0.0
  %2934 = vmatpush1.xpose.msra.mxu0 0.0
  %2935 = vmatprep.subr.mxu0 0.0
  %2936 = vmatpush1.xpose.msra.mxu0 0.0
  %2937 = vmatprep.subr.mxu0 0.0
  %2938 = vmatpush1.xpose.msra.mxu0 0.0
  %2939 = vmatprep.subr.mxu0 0.0
  %2940 = vmatpush1.xpose.msra.mxu0 0.0
  %2941 = vmatprep.subr.mxu0 0.0
  %2942 = vmatpush1.xpose.msra.mxu0 0.0
  %2943 = vmatprep.subr.mxu0 0.0
  %2944 = vmatpush1.xpose.msra.mxu0 0.0
  %2945 = vmatprep.subr.mxu0 0.0
  %2946 = vmatpush1.xpose.msra.mxu0 0.0
  %2947 = vmatprep.subr.mxu0 0.0
  %2948 = vmatpush1.xpose.msra.mxu0 0.0
  %2949 = vmatprep.subr.mxu0 0.0
  %2950 = vmatpush1.xpose.msra.mxu0 0.0
  %2951 = vmatprep.subr.mxu0 0.0
  %2952 = vmatpush1.xpose.msra.mxu0 0.0
  %2953 = vmatprep.subr.mxu0 0.0
  %2954 = vmatpush1.xpose.msra.mxu0 0.0
  %2955 = vmatprep.mubr.f32.mxu0 0.0
  %2956 = vmatmul.mubr.f32.gmra.mrb[0].mxu0 %v2859
  %v2957 = vpop.f32.mrb[0].mxu0
  %v2958 = vadd.f32 0.0, %v2957
  %v2959 = vpop.f32.mrb[0].mxu0
  %2960 = vmatprep.mubr.f32.mxu0 0.0
  %2961 = vmatmul.mubr.f32.gmra.mrb[0].mxu0 %v2861
  %v2962 = vpop.f32.mrb[0].mxu0
  %v2963 = vadd.f32 0.0, %v2962
  %v2964 = vpop.f32.mrb[0].mxu0
  %2965 = vmatprep.mubr.f32.mxu0 0.0
  %2966 = vmatmul.mubr.f32.gmra.mrb[0].mxu0 %v2863
  %v2967 = vpop.f32.mrb[0].mxu0
  %v2968 = vadd.f32 0.0, %v2967
  %v2969 = vpop.f32.mrb[0].mxu0
  %2970 = vmatprep.mubr.f32.mxu0 0.0
  %2971 = vmatmul.mubr.f32.gmra.mrb[0].mxu0 %v2865
  %v2972 = vpop.f32.mrb[0].mxu0
  %v2973 = vadd.f32 0.0, %v2972
  %v2974 = vpop.f32.mrb[0].mxu0
  %2975 = vmatprep.mubr.f32.mxu0 0.0
  %2976 = vmatmul.mubr.f32.gmra.mrb[0].mxu0 %v2867
  %v2977 = vpop.f32.mrb[0].mxu0
  %v2978 = vadd.f32 0.0, %v2977
  %v2979 = vpop.f32.mrb[0].mxu0
  %2980 = vmatprep.mubr.f32.mxu0 0.0
  %2981 = vmatmul.mubr.f32.gmra.mrb[0].mxu0 %v2869
  %v2982 = vpop.f32.mrb[0].mxu0
  %v2983 = vadd.f32 0.0, %v2982
  %v2984 = vpop.f32.mrb[0].mxu0
  %2985 = vmatprep.mubr.f32.mxu0 0.0
  %2986 = vmatmul.mubr.f32.gmra.mrb[0].mxu0 %v2871
  %v2987 = vpop.f32.mrb[0].mxu0
  %v2988 = vadd.f32 0.0, %v2987
  %v2989 = vpop.f32.mrb[0].mxu0
  %2990 = vmatprep.mubr.f32.mxu0 0.0
  %2991 = vmatmul.mubr.f32.gmra.mrb[0].mxu0 %v2873
  %v2992 = vpop.f32.mrb[0].mxu0
  %v2993 = vadd.f32 0.0, %v2992
  %v2994 = vpop.f32.mrb[0].mxu0
  %2995 = vdwg.mxu0
  %v2996 = vsel %vm421, %v2958, -inf
  %2997 = vmax.xlane.f32.xlu0 %v2996
  %v2998 = vpop.xlane.xlu0 %2997
  %v2999 = vsel %vm421, %v2963, -inf
  %3000 = vmax.xlane.f32.xlu0 %v2999
  %v3001 = vpop.xlane.xlu0 %3000
  %v3002 = vsel %vm421, %v2968, -inf
  %3003 = vmax.xlane.f32.xlu0 %v3002
  %v3004 = vpop.xlane.xlu0 %3003
  %v3005 = vsel %vm421, %v2973, -inf
  %3006 = vmax.xlane.f32.xlu0 %v3005
  %v3007 = vpop.xlane.xlu0 %3006
  %v3008 = vsel %vm421, %v2978, -inf
  %3009 = vmax.xlane.f32.xlu0 %v3008
  %v3010 = vpop.xlane.xlu0 %3009
  %v3011 = vsel %vm421, %v2983, -inf
  %3012 = vmax.xlane.f32.xlu0 %v3011
  %v3013 = vpop.xlane.xlu0 %3012
  %v3014 = vsel %vm421, %v2988, -inf
  %3015 = vmax.xlane.f32.xlu0 %v3014
  %v3016 = vpop.xlane.xlu0 %3015
  %v3017 = vsel %vm421, %v2993, -inf
  %3018 = vmax.xlane.f32.xlu0 %v3017
  %v3019 = vpop.xlane.xlu0 %3018
  %v3020 = vsub.f32 %v2958, %v2998
  %v3021 = vsub.f32 %v2963, %v3001
  %v3022 = vsub.f32 %v2968, %v3004
  %v3023 = vsub.f32 %v2973, %v3007
  %v3024 = vsub.f32 %v2978, %v3010
  %v3025 = vsub.f32 %v2983, %v3013
  %v3026 = vsub.f32 %v2988, %v3016
  %v3027 = vsub.f32 %v2993, %v3019
  %v3028 = vmul.f32 %v3020, 1.442695
  %v3029 = vpow.pop %v3028
  %v3030 = vmul.f32 %v3021, 1.442695
  %v3031 = vpow.pop %v3030
  %v3032 = vmul.f32 %v3022, 1.442695
  %v3033 = vpow.pop %v3032
  %v3034 = vmul.f32 %v3023, 1.442695
  %v3035 = vpow.pop %v3034
  %v3036 = vmul.f32 %v3024, 1.442695
  %v3037 = vpow.pop %v3036
  %v3038 = vmul.f32 %v3025, 1.442695
  %v3039 = vpow.pop %v3038
  %v3040 = vmul.f32 %v3026, 1.442695
  %v3041 = vpow.pop %v3040
  %v3042 = vmul.f32 %v3027, 1.442695
  %v3043 = vpow.pop %v3042
  %v3044 = vsel %vm421, %v3029, 0.0
  %3045 = vadd.xlane.f32.xlu0 %v3044
  %v3046 = vpop.xlane.xlu0 %3045
  %v3047 = vsel %vm421, %v3031, 0.0
  %3048 = vadd.xlane.f32.xlu0 %v3047
  %v3049 = vpop.xlane.xlu0 %3048
  %v3050 = vsel %vm421, %v3033, 0.0
  %3051 = vadd.xlane.f32.xlu0 %v3050
  %v3052 = vpop.xlane.xlu0 %3051
  %v3053 = vsel %vm421, %v3035, 0.0
  %3054 = vadd.xlane.f32.xlu0 %v3053
  %v3055 = vpop.xlane.xlu0 %3054
  %v3056 = vsel %vm421, %v3037, 0.0
  %3057 = vadd.xlane.f32.xlu0 %v3056
  %v3058 = vpop.xlane.xlu0 %3057
  %v3059 = vsel %vm421, %v3039, 0.0
  %3060 = vadd.xlane.f32.xlu0 %v3059
  %v3061 = vpop.xlane.xlu0 %3060
  %v3062 = vsel %vm421, %v3041, 0.0
  %3063 = vadd.xlane.f32.xlu0 %v3062
  %v3064 = vpop.xlane.xlu0 %3063
  %v3065 = vsel %vm421, %v3043, 0.0
  %3066 = vadd.xlane.f32.xlu0 %v3065
  %v3067 = vpop.xlane.xlu0 %3066
  %3068 = vrot.lane.b32.xlu0 %v221, 56
  %v3069 = vpop.permute.xlu0 %3068
  %3070 = vrot.lane.b32.xlu0 %v226, 56
  %v3071 = vpop.permute.xlu0 %3070
  %3072 = vrot.lane.b32.xlu0 %v231, 56
  %v3073 = vpop.permute.xlu0 %3072
  %3074 = vrot.lane.b32.xlu0 %v236, 56
  %v3075 = vpop.permute.xlu0 %3074
  %3076 = vrot.lane.b32.xlu0 %v241, 56
  %v3077 = vpop.permute.xlu0 %3076
  %3078 = vrot.lane.b32.xlu0 %v246, 56
  %v3079 = vpop.permute.xlu0 %3078
  %3080 = vrot.lane.b32.xlu0 %v251, 56
  %v3081 = vpop.permute.xlu0 %3080
  %3082 = vrot.lane.b32.xlu0 %v256, 56
  %v3083 = vpop.permute.xlu0 %3082
  %v3093 = vsel %vm421, %v3029, 0
  %v3096 = vsel %vm421, %v3031, 0
  %v3099 = vsel %vm421, %v3033, 0
  %v3102 = vsel %vm421, %v3035, 0
  %v3105 = vsel %vm421, %v3037, 0
  %v3108 = vsel %vm421, %v3039, 0
  %v3111 = vsel %vm421, %v3041, 0
  %v3114 = vsel %vm421, %v3043, 0
  %3116 = vmatprep.subr.mxu0 0.0
  %3117 = vmatpush1.msra.mxu0 %v3069
  %3118 = vmatprep.subr.mxu0 0.0
  %3119 = vmatpush1.msra.mxu0 %v3071
  %3120 = vmatprep.subr.mxu0 0.0
  %3121 = vmatpush1.msra.mxu0 %v3073
  %3122 = vmatprep.subr.mxu0 0.0
  %3123 = vmatpush1.msra.mxu0 %v3075
  %3124 = vmatprep.subr.mxu0 0.0
  %3125 = vmatpush1.msra.mxu0 %v3077
  %3126 = vmatprep.subr.mxu0 0.0
  %3127 = vmatpush1.msra.mxu0 %v3079
  %3128 = vmatprep.subr.mxu0 0.0
  %3129 = vmatpush1.msra.mxu0 %v3081
  %3130 = vmatprep.subr.mxu0 0.0
  %3131 = vmatpush1.msra.mxu0 %v3083
  %3132 = vmatprep.subr.mxu0 0.0
  %3133 = vmatpush1.msra.mxu0 0.0
  %3134 = vmatprep.subr.mxu0 0.0
  %3135 = vmatpush1.msra.mxu0 0.0
  %3136 = vmatprep.subr.mxu0 0.0
  %3137 = vmatpush1.msra.mxu0 0.0
  %3138 = vmatprep.subr.mxu0 0.0
  %3139 = vmatpush1.msra.mxu0 0.0
  %3140 = vmatprep.subr.mxu0 0.0
  %3141 = vmatpush1.msra.mxu0 0.0
  %3142 = vmatprep.subr.mxu0 0.0
  %3143 = vmatpush1.msra.mxu0 0.0
  %3144 = vmatprep.subr.mxu0 0.0
  %3145 = vmatpush1.msra.mxu0 0.0
  %3146 = vmatprep.subr.mxu0 0.0
  %3147 = vmatpush1.msra.mxu0 0.0
  %3148 = vmatprep.subr.mxu0 0.0
  %3149 = vmatpush1.msra.mxu0 0.0
  %3150 = vmatprep.subr.mxu0 0.0
  %3151 = vmatpush1.msra.mxu0 0.0
  %3152 = vmatprep.subr.mxu0 0.0
  %3153 = vmatpush1.msra.mxu0 0.0
  %3154 = vmatprep.subr.mxu0 0.0
  %3155 = vmatpush1.msra.mxu0 0.0
  %3156 = vmatprep.subr.mxu0 0.0
  %3157 = vmatpush1.msra.mxu0 0.0
  %3158 = vmatprep.subr.mxu0 0.0
  %3159 = vmatpush1.msra.mxu0 0.0
  %3160 = vmatprep.subr.mxu0 0.0
  %3161 = vmatpush1.msra.mxu0 0.0
  %3162 = vmatprep.subr.mxu0 0.0
  %3163 = vmatpush1.msra.mxu0 0.0
  %3164 = vmatprep.subr.mxu0 0.0
  %3165 = vmatpush1.msra.mxu0 0.0
  %3166 = vmatprep.subr.mxu0 0.0
  %3167 = vmatpush1.msra.mxu0 0.0
  %3168 = vmatprep.subr.mxu0 0.0
  %3169 = vmatpush1.msra.mxu0 0.0
  %3170 = vmatprep.subr.mxu0 0.0
  %3171 = vmatpush1.msra.mxu0 0.0
  %3172 = vmatprep.subr.mxu0 0.0
  %3173 = vmatpush1.msra.mxu0 0.0
  %3174 = vmatprep.subr.mxu0 0.0
  %3175 = vmatpush1.msra.mxu0 0.0
  %3176 = vmatprep.subr.mxu0 0.0
  %3177 = vmatpush1.msra.mxu0 0.0
  %3178 = vmatprep.subr.mxu0 0.0
  %3179 = vmatpush1.msra.mxu0 0.0
  %3180 = vmatprep.mubr.f32.mxu0 0.0
  %3181 = vmatmul.mubr.f32.gmra.mrb[0].mxu0 %v3093
  %v3182 = vpop.f32.mrb[0].mxu0
  %v3183 = vadd.f32 0.0, %v3182
  %v3184 = vpop.f32.mrb[0].mxu0
  %3185 = vmatprep.mubr.f32.mxu0 0.0
  %3186 = vmatmul.mubr.f32.gmra.mrb[0].mxu0 %v3096
  %v3187 = vpop.f32.mrb[0].mxu0
  %v3188 = vadd.f32 0.0, %v3187
  %v3189 = vpop.f32.mrb[0].mxu0
  %3190 = vmatprep.mubr.f32.mxu0 0.0
  %3191 = vmatmul.mubr.f32.gmra.mrb[0].mxu0 %v3099
  %v3192 = vpop.f32.mrb[0].mxu0
  %v3193 = vadd.f32 0.0, %v3192
  %v3194 = vpop.f32.mrb[0].mxu0
  %3195 = vmatprep.mubr.f32.mxu0 0.0
  %3196 = vmatmul.mubr.f32.gmra.mrb[0].mxu0 %v3102
  %v3197 = vpop.f32.mrb[0].mxu0
  %v3198 = vadd.f32 0.0, %v3197
  %v3199 = vpop.f32.mrb[0].mxu0
  %3200 = vmatprep.mubr.f32.mxu0 0.0
  %3201 = vmatmul.mubr.f32.gmra.mrb[0].mxu0 %v3105
  %v3202 = vpop.f32.mrb[0].mxu0
  %v3203 = vadd.f32 0.0, %v3202
  %v3204 = vpop.f32.mrb[0].mxu0
  %3205 = vmatprep.mubr.f32.mxu0 0.0
  %3206 = vmatmul.mubr.f32.gmra.mrb[0].mxu0 %v3108
  %v3207 = vpop.f32.mrb[0].mxu0
  %v3208 = vadd.f32 0.0, %v3207
  %v3209 = vpop.f32.mrb[0].mxu0
  %3210 = vmatprep.mubr.f32.mxu0 0.0
  %3211 = vmatmul.mubr.f32.gmra.mrb[0].mxu0 %v3111
  %v3212 = vpop.f32.mrb[0].mxu0
  %v3213 = vadd.f32 0.0, %v3212
  %v3214 = vpop.f32.mrb[0].mxu0
  %3215 = vmatprep.mubr.f32.mxu0 0.0
  %3216 = vmatmul.mubr.f32.gmra.mrb[0].mxu0 %v3114
  %v3217 = vpop.f32.mrb[0].mxu0
  %v3218 = vadd.f32 0.0, %v3217
  %v3219 = vpop.f32.mrb[0].mxu0
  %3220 = vdwg.mxu0
  %v3221 = vrcp.pop %v3046
  %v3222 = vrcp.pop %v3049
  %v3223 = vrcp.pop %v3052
  %v3224 = vrcp.pop %v3055
  %v3225 = vrcp.pop %v3058
  %v3226 = vrcp.pop %v3061
  %v3227 = vrcp.pop %v3064
  %v3228 = vrcp.pop %v3067
  %v3229 = vmul.f32 %v3183, %v3221
  %v3230 = vmul.f32 %v3188, %v3222
  %v3231 = vmul.f32 %v3193, %v3223
  %v3232 = vmul.f32 %v3198, %v3224
  %v3233 = vmul.f32 %v3203, %v3225
  %v3234 = vmul.f32 %v3208, %v3226
  %v3235 = vmul.f32 %v3213, %v3227
  %v3236 = vmul.f32 %v3218, %v3228
  %v3238 = vsel %vm283, %v3229, 0
  %v3241 = vsel %vm283, %v3230, 0
  %v3244 = vsel %vm283, %v3231, 0
  %v3247 = vsel %vm283, %v3232, 0
  %v3250 = vsel %vm283, %v3233, 0
  %v3253 = vsel %vm283, %v3234, 0
  %v3256 = vsel %vm283, %v3235, 0
  %v3259 = vsel %vm283, %v3236, 0
  %3261 = vmatprep.subr.mxu0 0.0
  %3262 = vmatpush1.msra.mxu0 %v36
  %3263 = vmatprep.subr.mxu0 0.0
  %3264 = vmatpush1.msra.mxu0 0.0
  %3265 = vmatprep.subr.mxu0 0.0
  %3266 = vmatpush1.msra.mxu0 0.0
  %3267 = vmatprep.subr.mxu0 0.0
  %3268 = vmatpush1.msra.mxu0 0.0
  %3269 = vmatprep.subr.mxu0 0.0
  %3270 = vmatpush1.msra.mxu0 0.0
  %3271 = vmatprep.subr.mxu0 0.0
  %3272 = vmatpush1.msra.mxu0 0.0
  %3273 = vmatprep.subr.mxu0 0.0
  %3274 = vmatpush1.msra.mxu0 0.0
  %3275 = vmatprep.subr.mxu0 0.0
  %3276 = vmatpush1.msra.mxu0 0.0
  %3277 = vmatprep.subr.mxu0 0.0
  %3278 = vmatpush1.msra.mxu0 0.0
  %3279 = vmatprep.subr.mxu0 0.0
  %3280 = vmatpush1.msra.mxu0 0.0
  %3281 = vmatprep.subr.mxu0 0.0
  %3282 = vmatpush1.msra.mxu0 0.0
  %3283 = vmatprep.subr.mxu0 0.0
  %3284 = vmatpush1.msra.mxu0 0.0
  %3285 = vmatprep.subr.mxu0 0.0
  %3286 = vmatpush1.msra.mxu0 0.0
  %3287 = vmatprep.subr.mxu0 0.0
  %3288 = vmatpush1.msra.mxu0 0.0
  %3289 = vmatprep.subr.mxu0 0.0
  %3290 = vmatpush1.msra.mxu0 0.0
  %3291 = vmatprep.subr.mxu0 0.0
  %3292 = vmatpush1.msra.mxu0 0.0
  %3293 = vmatprep.subr.mxu0 0.0
  %3294 = vmatpush1.msra.mxu0 0.0
  %3295 = vmatprep.subr.mxu0 0.0
  %3296 = vmatpush1.msra.mxu0 0.0
  %3297 = vmatprep.subr.mxu0 0.0
  %3298 = vmatpush1.msra.mxu0 0.0
  %3299 = vmatprep.subr.mxu0 0.0
  %3300 = vmatpush1.msra.mxu0 0.0
  %3301 = vmatprep.subr.mxu0 0.0
  %3302 = vmatpush1.msra.mxu0 0.0
  %3303 = vmatprep.subr.mxu0 0.0
  %3304 = vmatpush1.msra.mxu0 0.0
  %3305 = vmatprep.subr.mxu0 0.0
  %3306 = vmatpush1.msra.mxu0 0.0
  %3307 = vmatprep.subr.mxu0 0.0
  %3308 = vmatpush1.msra.mxu0 0.0
  %3309 = vmatprep.subr.mxu0 0.0
  %3310 = vmatpush1.msra.mxu0 0.0
  %3311 = vmatprep.subr.mxu0 0.0
  %3312 = vmatpush1.msra.mxu0 0.0
  %3313 = vmatprep.subr.mxu0 0.0
  %3314 = vmatpush1.msra.mxu0 0.0
  %3315 = vmatprep.subr.mxu0 0.0
  %3316 = vmatpush1.msra.mxu0 0.0
  %3317 = vmatprep.subr.mxu0 0.0
  %3318 = vmatpush1.msra.mxu0 0.0
  %3319 = vmatprep.subr.mxu0 0.0
  %3320 = vmatpush1.msra.mxu0 0.0
  %3321 = vmatprep.subr.mxu0 0.0
  %3322 = vmatpush1.msra.mxu0 0.0
  %3323 = vmatprep.subr.mxu0 0.0
  %3324 = vmatpush1.msra.mxu0 0.0
  %3325 = vmatprep.mubr.f32.mxu0 0.0
  %3326 = vmatmul.mubr.f32.gmra.mrb[0].mxu0 %v3238
  %v3327 = vpop.f32.mrb[0].mxu0
  %v3328 = vadd.f32 0.0, %v3327
  %v3329 = vpop.f32.mrb[0].mxu0
  %3330 = vmatprep.mubr.f32.mxu0 0.0
  %3331 = vmatmul.mubr.f32.gmra.mrb[0].mxu0 %v3241
  %v3332 = vpop.f32.mrb[0].mxu0
  %v3333 = vadd.f32 0.0, %v3332
  %v3334 = vpop.f32.mrb[0].mxu0
  %3335 = vmatprep.mubr.f32.mxu0 0.0
  %3336 = vmatmul.mubr.f32.gmra.mrb[0].mxu0 %v3244
  %v3337 = vpop.f32.mrb[0].mxu0
  %v3338 = vadd.f32 0.0, %v3337
  %v3339 = vpop.f32.mrb[0].mxu0
  %3340 = vmatprep.mubr.f32.mxu0 0.0
  %3341 = vmatmul.mubr.f32.gmra.mrb[0].mxu0 %v3247
  %v3342 = vpop.f32.mrb[0].mxu0
  %v3343 = vadd.f32 0.0, %v3342
  %v3344 = vpop.f32.mrb[0].mxu0
  %3345 = vmatprep.mubr.f32.mxu0 0.0
  %3346 = vmatmul.mubr.f32.gmra.mrb[0].mxu0 %v3250
  %v3347 = vpop.f32.mrb[0].mxu0
  %v3348 = vadd.f32 0.0, %v3347
  %v3349 = vpop.f32.mrb[0].mxu0
  %3350 = vmatprep.mubr.f32.mxu0 0.0
  %3351 = vmatmul.mubr.f32.gmra.mrb[0].mxu0 %v3253
  %v3352 = vpop.f32.mrb[0].mxu0
  %v3353 = vadd.f32 0.0, %v3352
  %v3354 = vpop.f32.mrb[0].mxu0
  %3355 = vmatprep.mubr.f32.mxu0 0.0
  %3356 = vmatmul.mubr.f32.gmra.mrb[0].mxu0 %v3256
  %v3357 = vpop.f32.mrb[0].mxu0
  %v3358 = vadd.f32 0.0, %v3357
  %v3359 = vpop.f32.mrb[0].mxu0
  %3360 = vmatprep.mubr.f32.mxu0 0.0
  %3361 = vmatmul.mubr.f32.gmra.mrb[0].mxu0 %v3259
  %v3362 = vpop.f32.mrb[0].mxu0
  %v3363 = vadd.f32 0.0, %v3362
  %v3364 = vpop.f32.mrb[0].mxu0
  %3365 = vdwg.mxu0
  %v3367 = vsel %vm283, %v2819, 0
  %v3370 = vsel %vm283, %v2820, 0
  %v3373 = vsel %vm283, %v2821, 0
  %v3376 = vsel %vm283, %v2822, 0
  %v3379 = vsel %vm283, %v2823, 0
  %v3382 = vsel %vm283, %v2824, 0
  %v3385 = vsel %vm283, %v2825, 0
  %v3388 = vsel %vm283, %v2826, 0
  %3390 = vmatprep.subr.mxu0 0.0
  %3391 = vmatpush1.msra.mxu0 %v35
  %3392 = vmatprep.subr.mxu0 0.0
  %3393 = vmatpush1.msra.mxu0 0.0
  %3394 = vmatprep.subr.mxu0 0.0
  %3395 = vmatpush1.msra.mxu0 0.0
  %3396 = vmatprep.subr.mxu0 0.0
  %3397 = vmatpush1.msra.mxu0 0.0
  %3398 = vmatprep.subr.mxu0 0.0
  %3399 = vmatpush1.msra.mxu0 0.0
  %3400 = vmatprep.subr.mxu0 0.0
  %3401 = vmatpush1.msra.mxu0 0.0
  %3402 = vmatprep.subr.mxu0 0.0
  %3403 = vmatpush1.msra.mxu0 0.0
  %3404 = vmatprep.subr.mxu0 0.0
  %3405 = vmatpush1.msra.mxu0 0.0
  %3406 = vmatprep.subr.mxu0 0.0
  %3407 = vmatpush1.msra.mxu0 0.0
  %3408 = vmatprep.subr.mxu0 0.0
  %3409 = vmatpush1.msra.mxu0 0.0
  %3410 = vmatprep.subr.mxu0 0.0
  %3411 = vmatpush1.msra.mxu0 0.0
  %3412 = vmatprep.subr.mxu0 0.0
  %3413 = vmatpush1.msra.mxu0 0.0
  %3414 = vmatprep.subr.mxu0 0.0
  %3415 = vmatpush1.msra.mxu0 0.0
  %3416 = vmatprep.subr.mxu0 0.0
  %3417 = vmatpush1.msra.mxu0 0.0
  %3418 = vmatprep.subr.mxu0 0.0
  %3419 = vmatpush1.msra.mxu0 0.0
  %3420 = vmatprep.subr.mxu0 0.0
  %3421 = vmatpush1.msra.mxu0 0.0
  %3422 = vmatprep.subr.mxu0 0.0
  %3423 = vmatpush1.msra.mxu0 0.0
  %3424 = vmatprep.subr.mxu0 0.0
  %3425 = vmatpush1.msra.mxu0 0.0
  %3426 = vmatprep.subr.mxu0 0.0
  %3427 = vmatpush1.msra.mxu0 0.0
  %3428 = vmatprep.subr.mxu0 0.0
  %3429 = vmatpush1.msra.mxu0 0.0
  %3430 = vmatprep.subr.mxu0 0.0
  %3431 = vmatpush1.msra.mxu0 0.0
  %3432 = vmatprep.subr.mxu0 0.0
  %3433 = vmatpush1.msra.mxu0 0.0
  %3434 = vmatprep.subr.mxu0 0.0
  %3435 = vmatpush1.msra.mxu0 0.0
  %3436 = vmatprep.subr.mxu0 0.0
  %3437 = vmatpush1.msra.mxu0 0.0
  %3438 = vmatprep.subr.mxu0 0.0
  %3439 = vmatpush1.msra.mxu0 0.0
  %3440 = vmatprep.subr.mxu0 0.0
  %3441 = vmatpush1.msra.mxu0 0.0
  %3442 = vmatprep.subr.mxu0 0.0
  %3443 = vmatpush1.msra.mxu0 0.0
  %3444 = vmatprep.subr.mxu0 0.0
  %3445 = vmatpush1.msra.mxu0 0.0
  %3446 = vmatprep.subr.mxu0 0.0
  %3447 = vmatpush1.msra.mxu0 0.0
  %3448 = vmatprep.subr.mxu0 0.0
  %3449 = vmatpush1.msra.mxu0 0.0
  %3450 = vmatprep.subr.mxu0 0.0
  %3451 = vmatpush1.msra.mxu0 0.0
  %3452 = vmatprep.subr.mxu0 0.0
  %3453 = vmatpush1.msra.mxu0 0.0
  %3454 = vmatprep.mubr.f32.mxu0 0.0
  %3455 = vmatmul.mubr.f32.gmra.mrb[0].mxu0 %v3367
  %v3456 = vpop.f32.mrb[0].mxu0
  %v3457 = vadd.f32 %v3328, %v3456
  %v3458 = vpop.f32.mrb[0].mxu0
  %3459 = vmatprep.mubr.f32.mxu0 0.0
  %3460 = vmatmul.mubr.f32.gmra.mrb[0].mxu0 %v3370
  %v3461 = vpop.f32.mrb[0].mxu0
  %v3462 = vadd.f32 %v3333, %v3461
  %v3463 = vpop.f32.mrb[0].mxu0
  %3464 = vmatprep.mubr.f32.mxu0 0.0
  %3465 = vmatmul.mubr.f32.gmra.mrb[0].mxu0 %v3373
  %v3466 = vpop.f32.mrb[0].mxu0
  %v3467 = vadd.f32 %v3338, %v3466
  %v3468 = vpop.f32.mrb[0].mxu0
  %3469 = vmatprep.mubr.f32.mxu0 0.0
  %3470 = vmatmul.mubr.f32.gmra.mrb[0].mxu0 %v3376
  %v3471 = vpop.f32.mrb[0].mxu0
  %v3472 = vadd.f32 %v3343, %v3471
  %v3473 = vpop.f32.mrb[0].mxu0
  %3474 = vmatprep.mubr.f32.mxu0 0.0
  %3475 = vmatmul.mubr.f32.gmra.mrb[0].mxu0 %v3379
  %v3476 = vpop.f32.mrb[0].mxu0
  %v3477 = vadd.f32 %v3348, %v3476
  %v3478 = vpop.f32.mrb[0].mxu0
  %3479 = vmatprep.mubr.f32.mxu0 0.0
  %3480 = vmatmul.mubr.f32.gmra.mrb[0].mxu0 %v3382
  %v3481 = vpop.f32.mrb[0].mxu0
  %v3482 = vadd.f32 %v3353, %v3481
  %v3483 = vpop.f32.mrb[0].mxu0
  %3484 = vmatprep.mubr.f32.mxu0 0.0
  %3485 = vmatmul.mubr.f32.gmra.mrb[0].mxu0 %v3385
  %v3486 = vpop.f32.mrb[0].mxu0
  %v3487 = vadd.f32 %v3358, %v3486
  %v3488 = vpop.f32.mrb[0].mxu0
  %3489 = vmatprep.mubr.f32.mxu0 0.0
  %3490 = vmatmul.mubr.f32.gmra.mrb[0].mxu0 %v3388
  %v3491 = vpop.f32.mrb[0].mxu0
  %v3492 = vadd.f32 %v3363, %v3491
  %v3493 = vpop.f32.mrb[0].mxu0
  %3494 = vdwg.mxu0
  %3495 = vrot.lane.b32.xlu0 %v221, 112
  %v3496 = vpop.permute.xlu0 %3495
  %3497 = vrot.lane.b32.xlu0 %v226, 112
  %v3498 = vpop.permute.xlu0 %3497
  %3499 = vrot.lane.b32.xlu0 %v231, 112
  %v3500 = vpop.permute.xlu0 %3499
  %3501 = vrot.lane.b32.xlu0 %v236, 112
  %v3502 = vpop.permute.xlu0 %3501
  %3503 = vrot.lane.b32.xlu0 %v241, 112
  %v3504 = vpop.permute.xlu0 %3503
  %3505 = vrot.lane.b32.xlu0 %v246, 112
  %v3506 = vpop.permute.xlu0 %3505
  %3507 = vrot.lane.b32.xlu0 %v251, 112
  %v3508 = vpop.permute.xlu0 %3507
  %3509 = vrot.lane.b32.xlu0 %v256, 112
  %v3510 = vpop.permute.xlu0 %3509
  %3511 = vrot.lane.b32.xlu0 %v221, 80
  %v3512 = vpop.permute.xlu0 %3511
  %3513 = vrot.lane.b32.xlu0 %v226, 80
  %v3514 = vpop.permute.xlu0 %3513
  %3515 = vrot.lane.b32.xlu0 %v231, 80
  %v3516 = vpop.permute.xlu0 %3515
  %3517 = vrot.lane.b32.xlu0 %v236, 80
  %v3518 = vpop.permute.xlu0 %3517
  %3519 = vrot.lane.b32.xlu0 %v241, 80
  %v3520 = vpop.permute.xlu0 %3519
  %3521 = vrot.lane.b32.xlu0 %v246, 80
  %v3522 = vpop.permute.xlu0 %3521
  %3523 = vrot.lane.b32.xlu0 %v251, 80
  %v3524 = vpop.permute.xlu0 %3523
  %3525 = vrot.lane.b32.xlu0 %v256, 80
  %v3526 = vpop.permute.xlu0 %3525
  %v3527 = vsel %vm283, %v3496, 0
  %v3529 = vsel %vm283, %v3498, 0
  %v3531 = vsel %vm283, %v3500, 0
  %v3533 = vsel %vm283, %v3502, 0
  %v3535 = vsel %vm283, %v3504, 0
  %v3537 = vsel %vm283, %v3506, 0
  %v3539 = vsel %vm283, %v3508, 0
  %v3541 = vsel %vm283, %v3510, 0
  %v3543 = vsel %vm283, %v3512, 0
  %v3545 = vsel %vm283, %v3514, 0
  %v3547 = vsel %vm283, %v3516, 0
  %v3549 = vsel %vm283, %v3518, 0
  %v3551 = vsel %vm283, %v3520, 0
  %v3553 = vsel %vm283, %v3522, 0
  %v3555 = vsel %vm283, %v3524, 0
  %v3557 = vsel %vm283, %v3526, 0
  %3559 = vmatprep.subr.mxu0 0.0
  %3560 = vmatpush1.xpose.msra.mxu0 %v3543
  %3561 = vmatprep.subr.mxu0 0.0
  %3562 = vmatpush1.xpose.msra.mxu0 %v3545
  %3563 = vmatprep.subr.mxu0 0.0
  %3564 = vmatpush1.xpose.msra.mxu0 %v3547
  %3565 = vmatprep.subr.mxu0 0.0
  %3566 = vmatpush1.xpose.msra.mxu0 %v3549
  %3567 = vmatprep.subr.mxu0 0.0
  %3568 = vmatpush1.xpose.msra.mxu0 %v3551
  %3569 = vmatprep.subr.mxu0 0.0
  %3570 = vmatpush1.xpose.msra.mxu0 %v3553
  %3571 = vmatprep.subr.mxu0 0.0
  %3572 = vmatpush1.xpose.msra.mxu0 %v3555
  %3573 = vmatprep.subr.mxu0 0.0
  %3574 = vmatpush1.xpose.msra.mxu0 %v3557
  %3575 = vmatprep.subr.mxu0 0.0
  %3576 = vmatpush1.xpose.msra.mxu0 0.0
  %3577 = vmatprep.subr.mxu0 0.0
  %3578 = vmatpush1.xpose.msra.mxu0 0.0
  %3579 = vmatprep.subr.mxu0 0.0
  %3580 = vmatpush1.xpose.msra.mxu0 0.0
  %3581 = vmatprep.subr.mxu0 0.0
  %3582 = vmatpush1.xpose.msra.mxu0 0.0
  %3583 = vmatprep.subr.mxu0 0.0
  %3584 = vmatpush1.xpose.msra.mxu0 0.0
  %3585 = vmatprep.subr.mxu0 0.0
  %3586 = vmatpush1.xpose.msra.mxu0 0.0
  %3587 = vmatprep.subr.mxu0 0.0
  %3588 = vmatpush1.xpose.msra.mxu0 0.0
  %3589 = vmatprep.subr.mxu0 0.0
  %3590 = vmatpush1.xpose.msra.mxu0 0.0
  %3591 = vmatprep.subr.mxu0 0.0
  %3592 = vmatpush1.xpose.msra.mxu0 0.0
  %3593 = vmatprep.subr.mxu0 0.0
  %3594 = vmatpush1.xpose.msra.mxu0 0.0
  %3595 = vmatprep.subr.mxu0 0.0
  %3596 = vmatpush1.xpose.msra.mxu0 0.0
  %3597 = vmatprep.subr.mxu0 0.0
  %3598 = vmatpush1.xpose.msra.mxu0 0.0
  %3599 = vmatprep.subr.mxu0 0.0
  %3600 = vmatpush1.xpose.msra.mxu0 0.0
  %3601 = vmatprep.subr.mxu0 0.0
  %3602 = vmatpush1.xpose.msra.mxu0 0.0
  %3603 = vmatprep.subr.mxu0 0.0
  %3604 = vmatpush1.xpose.msra.mxu0 0.0
  %3605 = vmatprep.subr.mxu0 0.0
  %3606 = vmatpush1.xpose.msra.mxu0 0.0
  %3607 = vmatprep.subr.mxu0 0.0
  %3608 = vmatpush1.xpose.msra.mxu0 0.0
  %3609 = vmatprep.subr.mxu0 0.0
  %3610 = vmatpush1.xpose.msra.mxu0 0.0
  %3611 = vmatprep.subr.mxu0 0.0
  %3612 = vmatpush1.xpose.msra.mxu0 0.0
  %3613 = vmatprep.subr.mxu0 0.0
  %3614 = vmatpush1.xpose.msra.mxu0 0.0
  %3615 = vmatprep.subr.mxu0 0.0
  %3616 = vmatpush1.xpose.msra.mxu0 0.0
  %3617 = vmatprep.subr.mxu0 0.0
  %3618 = vmatpush1.xpose.msra.mxu0 0.0
  %3619 = vmatprep.subr.mxu0 0.0
  %3620 = vmatpush1.xpose.msra.mxu0 0.0
  %3621 = vmatprep.subr.mxu0 0.0
  %3622 = vmatpush1.xpose.msra.mxu0 0.0
  %3623 = vmatprep.mubr.f32.mxu0 0.0
  %3624 = vmatmul.mubr.f32.gmra.mrb[0].mxu0 %v3527
  %v3625 = vpop.f32.mrb[0].mxu0
  %v3626 = vadd.f32 0.0, %v3625
  %v3627 = vpop.f32.mrb[0].mxu0
  %3628 = vmatprep.mubr.f32.mxu0 0.0
  %3629 = vmatmul.mubr.f32.gmra.mrb[0].mxu0 %v3529
  %v3630 = vpop.f32.mrb[0].mxu0
  %v3631 = vadd.f32 0.0, %v3630
  %v3632 = vpop.f32.mrb[0].mxu0
  %3633 = vmatprep.mubr.f32.mxu0 0.0
  %3634 = vmatmul.mubr.f32.gmra.mrb[0].mxu0 %v3531
  %v3635 = vpop.f32.mrb[0].mxu0
  %v3636 = vadd.f32 0.0, %v3635
  %v3637 = vpop.f32.mrb[0].mxu0
  %3638 = vmatprep.mubr.f32.mxu0 0.0
  %3639 = vmatmul.mubr.f32.gmra.mrb[0].mxu0 %v3533
  %v3640 = vpop.f32.mrb[0].mxu0
  %v3641 = vadd.f32 0.0, %v3640
  %v3642 = vpop.f32.mrb[0].mxu0
  %3643 = vmatprep.mubr.f32.mxu0 0.0
  %3644 = vmatmul.mubr.f32.gmra.mrb[0].mxu0 %v3535
  %v3645 = vpop.f32.mrb[0].mxu0
  %v3646 = vadd.f32 0.0, %v3645
  %v3647 = vpop.f32.mrb[0].mxu0
  %3648 = vmatprep.mubr.f32.mxu0 0.0
  %3649 = vmatmul.mubr.f32.gmra.mrb[0].mxu0 %v3537
  %v3650 = vpop.f32.mrb[0].mxu0
  %v3651 = vadd.f32 0.0, %v3650
  %v3652 = vpop.f32.mrb[0].mxu0
  %3653 = vmatprep.mubr.f32.mxu0 0.0
  %3654 = vmatmul.mubr.f32.gmra.mrb[0].mxu0 %v3539
  %v3655 = vpop.f32.mrb[0].mxu0
  %v3656 = vadd.f32 0.0, %v3655
  %v3657 = vpop.f32.mrb[0].mxu0
  %3658 = vmatprep.mubr.f32.mxu0 0.0
  %3659 = vmatmul.mubr.f32.gmra.mrb[0].mxu0 %v3541
  %v3660 = vpop.f32.mrb[0].mxu0
  %v3661 = vadd.f32 0.0, %v3660
  %v3662 = vpop.f32.mrb[0].mxu0
  %3663 = vdwg.mxu0
  %v3664 = vsel %vm421, %v3626, -inf
  %3665 = vmax.xlane.f32.xlu0 %v3664
  %v3666 = vpop.xlane.xlu0 %3665
  %v3667 = vsel %vm421, %v3631, -inf
  %3668 = vmax.xlane.f32.xlu0 %v3667
  %v3669 = vpop.xlane.xlu0 %3668
  %v3670 = vsel %vm421, %v3636, -inf
  %3671 = vmax.xlane.f32.xlu0 %v3670
  %v3672 = vpop.xlane.xlu0 %3671
  %v3673 = vsel %vm421, %v3641, -inf
  %3674 = vmax.xlane.f32.xlu0 %v3673
  %v3675 = vpop.xlane.xlu0 %3674
  %v3676 = vsel %vm421, %v3646, -inf
  %3677 = vmax.xlane.f32.xlu0 %v3676
  %v3678 = vpop.xlane.xlu0 %3677
  %v3679 = vsel %vm421, %v3651, -inf
  %3680 = vmax.xlane.f32.xlu0 %v3679
  %v3681 = vpop.xlane.xlu0 %3680
  %v3682 = vsel %vm421, %v3656, -inf
  %3683 = vmax.xlane.f32.xlu0 %v3682
  %v3684 = vpop.xlane.xlu0 %3683
  %v3685 = vsel %vm421, %v3661, -inf
  %3686 = vmax.xlane.f32.xlu0 %v3685
  %v3687 = vpop.xlane.xlu0 %3686
  %v3688 = vsub.f32 %v3626, %v3666
  %v3689 = vsub.f32 %v3631, %v3669
  %v3690 = vsub.f32 %v3636, %v3672
  %v3691 = vsub.f32 %v3641, %v3675
  %v3692 = vsub.f32 %v3646, %v3678
  %v3693 = vsub.f32 %v3651, %v3681
  %v3694 = vsub.f32 %v3656, %v3684
  %v3695 = vsub.f32 %v3661, %v3687
  %v3696 = vmul.f32 %v3688, 1.442695
  %v3697 = vpow.pop %v3696
  %v3698 = vmul.f32 %v3689, 1.442695
  %v3699 = vpow.pop %v3698
  %v3700 = vmul.f32 %v3690, 1.442695
  %v3701 = vpow.pop %v3700
  %v3702 = vmul.f32 %v3691, 1.442695
  %v3703 = vpow.pop %v3702
  %v3704 = vmul.f32 %v3692, 1.442695
  %v3705 = vpow.pop %v3704
  %v3706 = vmul.f32 %v3693, 1.442695
  %v3707 = vpow.pop %v3706
  %v3708 = vmul.f32 %v3694, 1.442695
  %v3709 = vpow.pop %v3708
  %v3710 = vmul.f32 %v3695, 1.442695
  %v3711 = vpow.pop %v3710
  %v3712 = vsel %vm421, %v3697, 0.0
  %3713 = vadd.xlane.f32.xlu0 %v3712
  %v3714 = vpop.xlane.xlu0 %3713
  %v3715 = vsel %vm421, %v3699, 0.0
  %3716 = vadd.xlane.f32.xlu0 %v3715
  %v3717 = vpop.xlane.xlu0 %3716
  %v3718 = vsel %vm421, %v3701, 0.0
  %3719 = vadd.xlane.f32.xlu0 %v3718
  %v3720 = vpop.xlane.xlu0 %3719
  %v3721 = vsel %vm421, %v3703, 0.0
  %3722 = vadd.xlane.f32.xlu0 %v3721
  %v3723 = vpop.xlane.xlu0 %3722
  %v3724 = vsel %vm421, %v3705, 0.0
  %3725 = vadd.xlane.f32.xlu0 %v3724
  %v3726 = vpop.xlane.xlu0 %3725
  %v3727 = vsel %vm421, %v3707, 0.0
  %3728 = vadd.xlane.f32.xlu0 %v3727
  %v3729 = vpop.xlane.xlu0 %3728
  %v3730 = vsel %vm421, %v3709, 0.0
  %3731 = vadd.xlane.f32.xlu0 %v3730
  %v3732 = vpop.xlane.xlu0 %3731
  %v3733 = vsel %vm421, %v3711, 0.0
  %3734 = vadd.xlane.f32.xlu0 %v3733
  %v3735 = vpop.xlane.xlu0 %3734
  %3736 = vrot.lane.b32.xlu0 %v221, 48
  %v3737 = vpop.permute.xlu0 %3736
  %3738 = vrot.lane.b32.xlu0 %v226, 48
  %v3739 = vpop.permute.xlu0 %3738
  %3740 = vrot.lane.b32.xlu0 %v231, 48
  %v3741 = vpop.permute.xlu0 %3740
  %3742 = vrot.lane.b32.xlu0 %v236, 48
  %v3743 = vpop.permute.xlu0 %3742
  %3744 = vrot.lane.b32.xlu0 %v241, 48
  %v3745 = vpop.permute.xlu0 %3744
  %3746 = vrot.lane.b32.xlu0 %v246, 48
  %v3747 = vpop.permute.xlu0 %3746
  %3748 = vrot.lane.b32.xlu0 %v251, 48
  %v3749 = vpop.permute.xlu0 %3748
  %3750 = vrot.lane.b32.xlu0 %v256, 48
  %v3751 = vpop.permute.xlu0 %3750
  %v3761 = vsel %vm421, %v3697, 0
  %v3764 = vsel %vm421, %v3699, 0
  %v3767 = vsel %vm421, %v3701, 0
  %v3770 = vsel %vm421, %v3703, 0
  %v3773 = vsel %vm421, %v3705, 0
  %v3776 = vsel %vm421, %v3707, 0
  %v3779 = vsel %vm421, %v3709, 0
  %v3782 = vsel %vm421, %v3711, 0
  %3784 = vmatprep.subr.mxu0 0.0
  %3785 = vmatpush1.msra.mxu0 %v3737
  %3786 = vmatprep.subr.mxu0 0.0
  %3787 = vmatpush1.msra.mxu0 %v3739
  %3788 = vmatprep.subr.mxu0 0.0
  %3789 = vmatpush1.msra.mxu0 %v3741
  %3790 = vmatprep.subr.mxu0 0.0
  %3791 = vmatpush1.msra.mxu0 %v3743
  %3792 = vmatprep.subr.mxu0 0.0
  %3793 = vmatpush1.msra.mxu0 %v3745
  %3794 = vmatprep.subr.mxu0 0.0
  %3795 = vmatpush1.msra.mxu0 %v3747
  %3796 = vmatprep.subr.mxu0 0.0
  %3797 = vmatpush1.msra.mxu0 %v3749
  %3798 = vmatprep.subr.mxu0 0.0
  %3799 = vmatpush1.msra.mxu0 %v3751
  %3800 = vmatprep.subr.mxu0 0.0
  %3801 = vmatpush1.msra.mxu0 0.0
  %3802 = vmatprep.subr.mxu0 0.0
  %3803 = vmatpush1.msra.mxu0 0.0
  %3804 = vmatprep.subr.mxu0 0.0
  %3805 = vmatpush1.msra.mxu0 0.0
  %3806 = vmatprep.subr.mxu0 0.0
  %3807 = vmatpush1.msra.mxu0 0.0
  %3808 = vmatprep.subr.mxu0 0.0
  %3809 = vmatpush1.msra.mxu0 0.0
  %3810 = vmatprep.subr.mxu0 0.0
  %3811 = vmatpush1.msra.mxu0 0.0
  %3812 = vmatprep.subr.mxu0 0.0
  %3813 = vmatpush1.msra.mxu0 0.0
  %3814 = vmatprep.subr.mxu0 0.0
  %3815 = vmatpush1.msra.mxu0 0.0
  %3816 = vmatprep.subr.mxu0 0.0
  %3817 = vmatpush1.msra.mxu0 0.0
  %3818 = vmatprep.subr.mxu0 0.0
  %3819 = vmatpush1.msra.mxu0 0.0
  %3820 = vmatprep.subr.mxu0 0.0
  %3821 = vmatpush1.msra.mxu0 0.0
  %3822 = vmatprep.subr.mxu0 0.0
  %3823 = vmatpush1.msra.mxu0 0.0
  %3824 = vmatprep.subr.mxu0 0.0
  %3825 = vmatpush1.msra.mxu0 0.0
  %3826 = vmatprep.subr.mxu0 0.0
  %3827 = vmatpush1.msra.mxu0 0.0
  %3828 = vmatprep.subr.mxu0 0.0
  %3829 = vmatpush1.msra.mxu0 0.0
  %3830 = vmatprep.subr.mxu0 0.0
  %3831 = vmatpush1.msra.mxu0 0.0
  %3832 = vmatprep.subr.mxu0 0.0
  %3833 = vmatpush1.msra.mxu0 0.0
  %3834 = vmatprep.subr.mxu0 0.0
  %3835 = vmatpush1.msra.mxu0 0.0
  %3836 = vmatprep.subr.mxu0 0.0
  %3837 = vmatpush1.msra.mxu0 0.0
  %3838 = vmatprep.subr.mxu0 0.0
  %3839 = vmatpush1.msra.mxu0 0.0
  %3840 = vmatprep.subr.mxu0 0.0
  %3841 = vmatpush1.msra.mxu0 0.0
  %3842 = vmatprep.subr.mxu0 0.0
  %3843 = vmatpush1.msra.mxu0 0.0
  %3844 = vmatprep.subr.mxu0 0.0
  %3845 = vmatpush1.msra.mxu0 0.0
  %3846 = vmatprep.subr.mxu0 0.0
  %3847 = vmatpush1.msra.mxu0 0.0
  %3848 = vmatprep.mubr.f32.mxu0 0.0
  %3849 = vmatmul.mubr.f32.gmra.mrb[0].mxu0 %v3761
  %v3850 = vpop.f32.mrb[0].mxu0
  %v3851 = vadd.f32 0.0, %v3850
  %v3852 = vpop.f32.mrb[0].mxu0
  %3853 = vmatprep.mubr.f32.mxu0 0.0
  %3854 = vmatmul.mubr.f32.gmra.mrb[0].mxu0 %v3764
  %v3855 = vpop.f32.mrb[0].mxu0
  %v3856 = vadd.f32 0.0, %v3855
  %v3857 = vpop.f32.mrb[0].mxu0
  %3858 = vmatprep.mubr.f32.mxu0 0.0
  %3859 = vmatmul.mubr.f32.gmra.mrb[0].mxu0 %v3767
  %v3860 = vpop.f32.mrb[0].mxu0
  %v3861 = vadd.f32 0.0, %v3860
  %v3862 = vpop.f32.mrb[0].mxu0
  %3863 = vmatprep.mubr.f32.mxu0 0.0
  %3864 = vmatmul.mubr.f32.gmra.mrb[0].mxu0 %v3770
  %v3865 = vpop.f32.mrb[0].mxu0
  %v3866 = vadd.f32 0.0, %v3865
  %v3867 = vpop.f32.mrb[0].mxu0
  %3868 = vmatprep.mubr.f32.mxu0 0.0
  %3869 = vmatmul.mubr.f32.gmra.mrb[0].mxu0 %v3773
  %v3870 = vpop.f32.mrb[0].mxu0
  %v3871 = vadd.f32 0.0, %v3870
  %v3872 = vpop.f32.mrb[0].mxu0
  %3873 = vmatprep.mubr.f32.mxu0 0.0
  %3874 = vmatmul.mubr.f32.gmra.mrb[0].mxu0 %v3776
  %v3875 = vpop.f32.mrb[0].mxu0
  %v3876 = vadd.f32 0.0, %v3875
  %v3877 = vpop.f32.mrb[0].mxu0
  %3878 = vmatprep.mubr.f32.mxu0 0.0
  %3879 = vmatmul.mubr.f32.gmra.mrb[0].mxu0 %v3779
  %v3880 = vpop.f32.mrb[0].mxu0
  %v3881 = vadd.f32 0.0, %v3880
  %v3882 = vpop.f32.mrb[0].mxu0
  %3883 = vmatprep.mubr.f32.mxu0 0.0
  %3884 = vmatmul.mubr.f32.gmra.mrb[0].mxu0 %v3782
  %v3885 = vpop.f32.mrb[0].mxu0
  %v3886 = vadd.f32 0.0, %v3885
  %v3887 = vpop.f32.mrb[0].mxu0
  %3888 = vdwg.mxu0
  %v3889 = vrcp.pop %v3714
  %v3890 = vrcp.pop %v3717
  %v3891 = vrcp.pop %v3720
  %v3892 = vrcp.pop %v3723
  %v3893 = vrcp.pop %v3726
  %v3894 = vrcp.pop %v3729
  %v3895 = vrcp.pop %v3732
  %v3896 = vrcp.pop %v3735
  %v3897 = vmul.f32 %v3851, %v3889
  %v3898 = vmul.f32 %v3856, %v3890
  %v3899 = vmul.f32 %v3861, %v3891
  %v3900 = vmul.f32 %v3866, %v3892
  %v3901 = vmul.f32 %v3871, %v3893
  %v3902 = vmul.f32 %v3876, %v3894
  %v3903 = vmul.f32 %v3881, %v3895
  %v3904 = vmul.f32 %v3886, %v3896
  %v3906 = vsel %vm283, %v3897, 0
  %v3909 = vsel %vm283, %v3898, 0
  %v3912 = vsel %vm283, %v3899, 0
  %v3915 = vsel %vm283, %v3900, 0
  %v3918 = vsel %vm283, %v3901, 0
  %v3921 = vsel %vm283, %v3902, 0
  %v3924 = vsel %vm283, %v3903, 0
  %v3927 = vsel %vm283, %v3904, 0
  %3929 = vmatprep.subr.mxu0 0.0
  %3930 = vmatpush1.msra.mxu0 %v37
  %3931 = vmatprep.subr.mxu0 0.0
  %3932 = vmatpush1.msra.mxu0 0.0
  %3933 = vmatprep.subr.mxu0 0.0
  %3934 = vmatpush1.msra.mxu0 0.0
  %3935 = vmatprep.subr.mxu0 0.0
  %3936 = vmatpush1.msra.mxu0 0.0
  %3937 = vmatprep.subr.mxu0 0.0
  %3938 = vmatpush1.msra.mxu0 0.0
  %3939 = vmatprep.subr.mxu0 0.0
  %3940 = vmatpush1.msra.mxu0 0.0
  %3941 = vmatprep.subr.mxu0 0.0
  %3942 = vmatpush1.msra.mxu0 0.0
  %3943 = vmatprep.subr.mxu0 0.0
  %3944 = vmatpush1.msra.mxu0 0.0
  %3945 = vmatprep.subr.mxu0 0.0
  %3946 = vmatpush1.msra.mxu0 0.0
  %3947 = vmatprep.subr.mxu0 0.0
  %3948 = vmatpush1.msra.mxu0 0.0
  %3949 = vmatprep.subr.mxu0 0.0
  %3950 = vmatpush1.msra.mxu0 0.0
  %3951 = vmatprep.subr.mxu0 0.0
  %3952 = vmatpush1.msra.mxu0 0.0
  %3953 = vmatprep.subr.mxu0 0.0
  %3954 = vmatpush1.msra.mxu0 0.0
  %3955 = vmatprep.subr.mxu0 0.0
  %3956 = vmatpush1.msra.mxu0 0.0
  %3957 = vmatprep.subr.mxu0 0.0
  %3958 = vmatpush1.msra.mxu0 0.0
  %3959 = vmatprep.subr.mxu0 0.0
  %3960 = vmatpush1.msra.mxu0 0.0
  %3961 = vmatprep.subr.mxu0 0.0
  %3962 = vmatpush1.msra.mxu0 0.0
  %3963 = vmatprep.subr.mxu0 0.0
  %3964 = vmatpush1.msra.mxu0 0.0
  %3965 = vmatprep.subr.mxu0 0.0
  %3966 = vmatpush1.msra.mxu0 0.0
  %3967 = vmatprep.subr.mxu0 0.0
  %3968 = vmatpush1.msra.mxu0 0.0
  %3969 = vmatprep.subr.mxu0 0.0
  %3970 = vmatpush1.msra.mxu0 0.0
  %3971 = vmatprep.subr.mxu0 0.0
  %3972 = vmatpush1.msra.mxu0 0.0
  %3973 = vmatprep.subr.mxu0 0.0
  %3974 = vmatpush1.msra.mxu0 0.0
  %3975 = vmatprep.subr.mxu0 0.0
  %3976 = vmatpush1.msra.mxu0 0.0
  %3977 = vmatprep.subr.mxu0 0.0
  %3978 = vmatpush1.msra.mxu0 0.0
  %3979 = vmatprep.subr.mxu0 0.0
  %3980 = vmatpush1.msra.mxu0 0.0
  %3981 = vmatprep.subr.mxu0 0.0
  %3982 = vmatpush1.msra.mxu0 0.0
  %3983 = vmatprep.subr.mxu0 0.0
  %3984 = vmatpush1.msra.mxu0 0.0
  %3985 = vmatprep.subr.mxu0 0.0
  %3986 = vmatpush1.msra.mxu0 0.0
  %3987 = vmatprep.subr.mxu0 0.0
  %3988 = vmatpush1.msra.mxu0 0.0
  %3989 = vmatprep.subr.mxu0 0.0
  %3990 = vmatpush1.msra.mxu0 0.0
  %3991 = vmatprep.subr.mxu0 0.0
  %3992 = vmatpush1.msra.mxu0 0.0
  %3993 = vmatprep.mubr.f32.mxu0 0.0
  %3994 = vmatmul.mubr.f32.gmra.mrb[0].mxu0 %v3906
  %v3995 = vpop.f32.mrb[0].mxu0
  %v3996 = vadd.f32 0.0, %v3995
  %v3997 = vpop.f32.mrb[0].mxu0
  %3998 = vmatprep.mubr.f32.mxu0 0.0
  %3999 = vmatmul.mubr.f32.gmra.mrb[0].mxu0 %v3909
  %v4000 = vpop.f32.mrb[0].mxu0
  %v4001 = vadd.f32 0.0, %v4000
  %v4002 = vpop.f32.mrb[0].mxu0
  %4003 = vmatprep.mubr.f32.mxu0 0.0
  %4004 = vmatmul.mubr.f32.gmra.mrb[0].mxu0 %v3912
  %v4005 = vpop.f32.mrb[0].mxu0
  %v4006 = vadd.f32 0.0, %v4005
  %v4007 = vpop.f32.mrb[0].mxu0
  %4008 = vmatprep.mubr.f32.mxu0 0.0
  %4009 = vmatmul.mubr.f32.gmra.mrb[0].mxu0 %v3915
  %v4010 = vpop.f32.mrb[0].mxu0
  %v4011 = vadd.f32 0.0, %v4010
  %v4012 = vpop.f32.mrb[0].mxu0
  %4013 = vmatprep.mubr.f32.mxu0 0.0
  %4014 = vmatmul.mubr.f32.gmra.mrb[0].mxu0 %v3918
  %v4015 = vpop.f32.mrb[0].mxu0
  %v4016 = vadd.f32 0.0, %v4015
  %v4017 = vpop.f32.mrb[0].mxu0
  %4018 = vmatprep.mubr.f32.mxu0 0.0
  %4019 = vmatmul.mubr.f32.gmra.mrb[0].mxu0 %v3921
  %v4020 = vpop.f32.mrb[0].mxu0
  %v4021 = vadd.f32 0.0, %v4020
  %v4022 = vpop.f32.mrb[0].mxu0
  %4023 = vmatprep.mubr.f32.mxu0 0.0
  %4024 = vmatmul.mubr.f32.gmra.mrb[0].mxu0 %v3924
  %v4025 = vpop.f32.mrb[0].mxu0
  %v4026 = vadd.f32 0.0, %v4025
  %v4027 = vpop.f32.mrb[0].mxu0
  %4028 = vmatprep.mubr.f32.mxu0 0.0
  %4029 = vmatmul.mubr.f32.gmra.mrb[0].mxu0 %v3927
  %v4030 = vpop.f32.mrb[0].mxu0
  %v4031 = vadd.f32 0.0, %v4030
  %v4032 = vpop.f32.mrb[0].mxu0
  %4033 = vdwg.mxu0
  %v4034 = vadd.f32 %v3457, %v3996
  %v4035 = vadd.f32 %v3462, %v4001
  %v4036 = vadd.f32 %v3467, %v4006
  %v4037 = vadd.f32 %v3472, %v4011
  %v4038 = vadd.f32 %v3477, %v4016
  %v4039 = vadd.f32 %v3482, %v4021
  %v4040 = vadd.f32 %v3487, %v4026
  %v4041 = vadd.f32 %v3492, %v4031
  %4042 = vrot.lane.b32.xlu0 %v221, 104
  %v4043 = vpop.permute.xlu0 %4042
  %4044 = vrot.lane.b32.xlu0 %v226, 104
  %v4045 = vpop.permute.xlu0 %4044
  %4046 = vrot.lane.b32.xlu0 %v231, 104
  %v4047 = vpop.permute.xlu0 %4046
  %4048 = vrot.lane.b32.xlu0 %v236, 104
  %v4049 = vpop.permute.xlu0 %4048
  %4050 = vrot.lane.b32.xlu0 %v241, 104
  %v4051 = vpop.permute.xlu0 %4050
  %4052 = vrot.lane.b32.xlu0 %v246, 104
  %v4053 = vpop.permute.xlu0 %4052
  %4054 = vrot.lane.b32.xlu0 %v251, 104
  %v4055 = vpop.permute.xlu0 %4054
  %4056 = vrot.lane.b32.xlu0 %v256, 104
  %v4057 = vpop.permute.xlu0 %4056
  %4058 = vrot.lane.b32.xlu0 %v221, 72
  %v4059 = vpop.permute.xlu0 %4058
  %4060 = vrot.lane.b32.xlu0 %v226, 72
  %v4061 = vpop.permute.xlu0 %4060
  %4062 = vrot.lane.b32.xlu0 %v231, 72
  %v4063 = vpop.permute.xlu0 %4062
  %4064 = vrot.lane.b32.xlu0 %v236, 72
  %v4065 = vpop.permute.xlu0 %4064
  %4066 = vrot.lane.b32.xlu0 %v241, 72
  %v4067 = vpop.permute.xlu0 %4066
  %4068 = vrot.lane.b32.xlu0 %v246, 72
  %v4069 = vpop.permute.xlu0 %4068
  %4070 = vrot.lane.b32.xlu0 %v251, 72
  %v4071 = vpop.permute.xlu0 %4070
  %4072 = vrot.lane.b32.xlu0 %v256, 72
  %v4073 = vpop.permute.xlu0 %4072
  %v4074 = vsel %vm283, %v4043, 0
  %v4076 = vsel %vm283, %v4045, 0
  %v4078 = vsel %vm283, %v4047, 0
  %v4080 = vsel %vm283, %v4049, 0
  %v4082 = vsel %vm283, %v4051, 0
  %v4084 = vsel %vm283, %v4053, 0
  %v4086 = vsel %vm283, %v4055, 0
  %v4088 = vsel %vm283, %v4057, 0
  %v4090 = vsel %vm283, %v4059, 0
  %v4092 = vsel %vm283, %v4061, 0
  %v4094 = vsel %vm283, %v4063, 0
  %v4096 = vsel %vm283, %v4065, 0
  %v4098 = vsel %vm283, %v4067, 0
  %v4100 = vsel %vm283, %v4069, 0
  %v4102 = vsel %vm283, %v4071, 0
  %v4104 = vsel %vm283, %v4073, 0
  %4106 = vmatprep.subr.mxu0 0.0
  %4107 = vmatpush1.xpose.msra.mxu0 %v4090
  %4108 = vmatprep.subr.mxu0 0.0
  %4109 = vmatpush1.xpose.msra.mxu0 %v4092
  %4110 = vmatprep.subr.mxu0 0.0
  %4111 = vmatpush1.xpose.msra.mxu0 %v4094
  %4112 = vmatprep.subr.mxu0 0.0
  %4113 = vmatpush1.xpose.msra.mxu0 %v4096
  %4114 = vmatprep.subr.mxu0 0.0
  %4115 = vmatpush1.xpose.msra.mxu0 %v4098
  %4116 = vmatprep.subr.mxu0 0.0
  %4117 = vmatpush1.xpose.msra.mxu0 %v4100
  %4118 = vmatprep.subr.mxu0 0.0
  %4119 = vmatpush1.xpose.msra.mxu0 %v4102
  %4120 = vmatprep.subr.mxu0 0.0
  %4121 = vmatpush1.xpose.msra.mxu0 %v4104
  %4122 = vmatprep.subr.mxu0 0.0
  %4123 = vmatpush1.xpose.msra.mxu0 0.0
  %4124 = vmatprep.subr.mxu0 0.0
  %4125 = vmatpush1.xpose.msra.mxu0 0.0
  %4126 = vmatprep.subr.mxu0 0.0
  %4127 = vmatpush1.xpose.msra.mxu0 0.0
  %4128 = vmatprep.subr.mxu0 0.0
  %4129 = vmatpush1.xpose.msra.mxu0 0.0
  %4130 = vmatprep.subr.mxu0 0.0
  %4131 = vmatpush1.xpose.msra.mxu0 0.0
  %4132 = vmatprep.subr.mxu0 0.0
  %4133 = vmatpush1.xpose.msra.mxu0 0.0
  %4134 = vmatprep.subr.mxu0 0.0
  %4135 = vmatpush1.xpose.msra.mxu0 0.0
  %4136 = vmatprep.subr.mxu0 0.0
  %4137 = vmatpush1.xpose.msra.mxu0 0.0
  %4138 = vmatprep.subr.mxu0 0.0
  %4139 = vmatpush1.xpose.msra.mxu0 0.0
  %4140 = vmatprep.subr.mxu0 0.0
  %4141 = vmatpush1.xpose.msra.mxu0 0.0
  %4142 = vmatprep.subr.mxu0 0.0
  %4143 = vmatpush1.xpose.msra.mxu0 0.0
  %4144 = vmatprep.subr.mxu0 0.0
  %4145 = vmatpush1.xpose.msra.mxu0 0.0
  %4146 = vmatprep.subr.mxu0 0.0
  %4147 = vmatpush1.xpose.msra.mxu0 0.0
  %4148 = vmatprep.subr.mxu0 0.0
  %4149 = vmatpush1.xpose.msra.mxu0 0.0
  %4150 = vmatprep.subr.mxu0 0.0
  %4151 = vmatpush1.xpose.msra.mxu0 0.0
  %4152 = vmatprep.subr.mxu0 0.0
  %4153 = vmatpush1.xpose.msra.mxu0 0.0
  %4154 = vmatprep.subr.mxu0 0.0
  %4155 = vmatpush1.xpose.msra.mxu0 0.0
  %4156 = vmatprep.subr.mxu0 0.0
  %4157 = vmatpush1.xpose.msra.mxu0 0.0
  %4158 = vmatprep.subr.mxu0 0.0
  %4159 = vmatpush1.xpose.msra.mxu0 0.0
  %4160 = vmatprep.subr.mxu0 0.0
  %4161 = vmatpush1.xpose.msra.mxu0 0.0
  %4162 = vmatprep.subr.mxu0 0.0
  %4163 = vmatpush1.xpose.msra.mxu0 0.0
  %4164 = vmatprep.subr.mxu0 0.0
  %4165 = vmatpush1.xpose.msra.mxu0 0.0
  %4166 = vmatprep.subr.mxu0 0.0
  %4167 = vmatpush1.xpose.msra.mxu0 0.0
  %4168 = vmatprep.subr.mxu0 0.0
  %4169 = vmatpush1.xpose.msra.mxu0 0.0
  %4170 = vmatprep.mubr.f32.mxu0 0.0
  %4171 = vmatmul.mubr.f32.gmra.mrb[0].mxu0 %v4074
  %v4172 = vpop.f32.mrb[0].mxu0
  %v4173 = vadd.f32 0.0, %v4172
  %v4174 = vpop.f32.mrb[0].mxu0
  %4175 = vmatprep.mubr.f32.mxu0 0.0
  %4176 = vmatmul.mubr.f32.gmra.mrb[0].mxu0 %v4076
  %v4177 = vpop.f32.mrb[0].mxu0
  %v4178 = vadd.f32 0.0, %v4177
  %v4179 = vpop.f32.mrb[0].mxu0
  %4180 = vmatprep.mubr.f32.mxu0 0.0
  %4181 = vmatmul.mubr.f32.gmra.mrb[0].mxu0 %v4078
  %v4182 = vpop.f32.mrb[0].mxu0
  %v4183 = vadd.f32 0.0, %v4182
  %v4184 = vpop.f32.mrb[0].mxu0
  %4185 = vmatprep.mubr.f32.mxu0 0.0
  %4186 = vmatmul.mubr.f32.gmra.mrb[0].mxu0 %v4080
  %v4187 = vpop.f32.mrb[0].mxu0
  %v4188 = vadd.f32 0.0, %v4187
  %v4189 = vpop.f32.mrb[0].mxu0
  %4190 = vmatprep.mubr.f32.mxu0 0.0
  %4191 = vmatmul.mubr.f32.gmra.mrb[0].mxu0 %v4082
  %v4192 = vpop.f32.mrb[0].mxu0
  %v4193 = vadd.f32 0.0, %v4192
  %v4194 = vpop.f32.mrb[0].mxu0
  %4195 = vmatprep.mubr.f32.mxu0 0.0
  %4196 = vmatmul.mubr.f32.gmra.mrb[0].mxu0 %v4084
  %v4197 = vpop.f32.mrb[0].mxu0
  %v4198 = vadd.f32 0.0, %v4197
  %v4199 = vpop.f32.mrb[0].mxu0
  %4200 = vmatprep.mubr.f32.mxu0 0.0
  %4201 = vmatmul.mubr.f32.gmra.mrb[0].mxu0 %v4086
  %v4202 = vpop.f32.mrb[0].mxu0
  %v4203 = vadd.f32 0.0, %v4202
  %v4204 = vpop.f32.mrb[0].mxu0
  %4205 = vmatprep.mubr.f32.mxu0 0.0
  %4206 = vmatmul.mubr.f32.gmra.mrb[0].mxu0 %v4088
  %v4207 = vpop.f32.mrb[0].mxu0
  %v4208 = vadd.f32 0.0, %v4207
  %v4209 = vpop.f32.mrb[0].mxu0
  %4210 = vdwg.mxu0
  %v4211 = vsel %vm421, %v4173, -inf
  %4212 = vmax.xlane.f32.xlu0 %v4211
  %v4213 = vpop.xlane.xlu0 %4212
  %v4214 = vsel %vm421, %v4178, -inf
  %4215 = vmax.xlane.f32.xlu0 %v4214
  %v4216 = vpop.xlane.xlu0 %4215
  %v4217 = vsel %vm421, %v4183, -inf
  %4218 = vmax.xlane.f32.xlu0 %v4217
  %v4219 = vpop.xlane.xlu0 %4218
  %v4220 = vsel %vm421, %v4188, -inf
  %4221 = vmax.xlane.f32.xlu0 %v4220
  %v4222 = vpop.xlane.xlu0 %4221
  %v4223 = vsel %vm421, %v4193, -inf
  %4224 = vmax.xlane.f32.xlu0 %v4223
  %v4225 = vpop.xlane.xlu0 %4224
  %v4226 = vsel %vm421, %v4198, -inf
  %4227 = vmax.xlane.f32.xlu0 %v4226
  %v4228 = vpop.xlane.xlu0 %4227
  %v4229 = vsel %vm421, %v4203, -inf
  %4230 = vmax.xlane.f32.xlu0 %v4229
  %v4231 = vpop.xlane.xlu0 %4230
  %v4232 = vsel %vm421, %v4208, -inf
  %4233 = vmax.xlane.f32.xlu0 %v4232
  %v4234 = vpop.xlane.xlu0 %4233
  %v4235 = vsub.f32 %v4173, %v4213
  %v4236 = vsub.f32 %v4178, %v4216
  %v4237 = vsub.f32 %v4183, %v4219
  %v4238 = vsub.f32 %v4188, %v4222
  %v4239 = vsub.f32 %v4193, %v4225
  %v4240 = vsub.f32 %v4198, %v4228
  %v4241 = vsub.f32 %v4203, %v4231
  %v4242 = vsub.f32 %v4208, %v4234
  %v4243 = vmul.f32 %v4235, 1.442695
  %v4244 = vpow.pop %v4243
  %v4245 = vmul.f32 %v4236, 1.442695
  %v4246 = vpow.pop %v4245
  %v4247 = vmul.f32 %v4237, 1.442695
  %v4248 = vpow.pop %v4247
  %v4249 = vmul.f32 %v4238, 1.442695
  %v4250 = vpow.pop %v4249
  %v4251 = vmul.f32 %v4239, 1.442695
  %v4252 = vpow.pop %v4251
  %v4253 = vmul.f32 %v4240, 1.442695
  %v4254 = vpow.pop %v4253
  %v4255 = vmul.f32 %v4241, 1.442695
  %v4256 = vpow.pop %v4255
  %v4257 = vmul.f32 %v4242, 1.442695
  %v4258 = vpow.pop %v4257
  %v4259 = vsel %vm421, %v4244, 0.0
  %4260 = vadd.xlane.f32.xlu0 %v4259
  %v4261 = vpop.xlane.xlu0 %4260
  %v4262 = vsel %vm421, %v4246, 0.0
  %4263 = vadd.xlane.f32.xlu0 %v4262
  %v4264 = vpop.xlane.xlu0 %4263
  %v4265 = vsel %vm421, %v4248, 0.0
  %4266 = vadd.xlane.f32.xlu0 %v4265
  %v4267 = vpop.xlane.xlu0 %4266
  %v4268 = vsel %vm421, %v4250, 0.0
  %4269 = vadd.xlane.f32.xlu0 %v4268
  %v4270 = vpop.xlane.xlu0 %4269
  %v4271 = vsel %vm421, %v4252, 0.0
  %4272 = vadd.xlane.f32.xlu0 %v4271
  %v4273 = vpop.xlane.xlu0 %4272
  %v4274 = vsel %vm421, %v4254, 0.0
  %4275 = vadd.xlane.f32.xlu0 %v4274
  %v4276 = vpop.xlane.xlu0 %4275
  %v4277 = vsel %vm421, %v4256, 0.0
  %4278 = vadd.xlane.f32.xlu0 %v4277
  %v4279 = vpop.xlane.xlu0 %4278
  %v4280 = vsel %vm421, %v4258, 0.0
  %4281 = vadd.xlane.f32.xlu0 %v4280
  %v4282 = vpop.xlane.xlu0 %4281
  %4283 = vrot.lane.b32.xlu0 %v221, 40
  %v4284 = vpop.permute.xlu0 %4283
  %4285 = vrot.lane.b32.xlu0 %v226, 40
  %v4286 = vpop.permute.xlu0 %4285
  %4287 = vrot.lane.b32.xlu0 %v231, 40
  %v4288 = vpop.permute.xlu0 %4287
  %4289 = vrot.lane.b32.xlu0 %v236, 40
  %v4290 = vpop.permute.xlu0 %4289
  %4291 = vrot.lane.b32.xlu0 %v241, 40
  %v4292 = vpop.permute.xlu0 %4291
  %4293 = vrot.lane.b32.xlu0 %v246, 40
  %v4294 = vpop.permute.xlu0 %4293
  %4295 = vrot.lane.b32.xlu0 %v251, 40
  %v4296 = vpop.permute.xlu0 %4295
  %4297 = vrot.lane.b32.xlu0 %v256, 40
  %v4298 = vpop.permute.xlu0 %4297
  %v4308 = vsel %vm421, %v4244, 0
  %v4311 = vsel %vm421, %v4246, 0
  %v4314 = vsel %vm421, %v4248, 0
  %v4317 = vsel %vm421, %v4250, 0
  %v4320 = vsel %vm421, %v4252, 0
  %v4323 = vsel %vm421, %v4254, 0
  %v4326 = vsel %vm421, %v4256, 0
  %v4329 = vsel %vm421, %v4258, 0
  %4331 = vmatprep.subr.mxu0 0.0
  %4332 = vmatpush1.msra.mxu0 %v4284
  %4333 = vmatprep.subr.mxu0 0.0
  %4334 = vmatpush1.msra.mxu0 %v4286
  %4335 = vmatprep.subr.mxu0 0.0
  %4336 = vmatpush1.msra.mxu0 %v4288
  %4337 = vmatprep.subr.mxu0 0.0
  %4338 = vmatpush1.msra.mxu0 %v4290
  %4339 = vmatprep.subr.mxu0 0.0
  %4340 = vmatpush1.msra.mxu0 %v4292
  %4341 = vmatprep.subr.mxu0 0.0
  %4342 = vmatpush1.msra.mxu0 %v4294
  %4343 = vmatprep.subr.mxu0 0.0
  %4344 = vmatpush1.msra.mxu0 %v4296
  %4345 = vmatprep.subr.mxu0 0.0
  %4346 = vmatpush1.msra.mxu0 %v4298
  %4347 = vmatprep.subr.mxu0 0.0
  %4348 = vmatpush1.msra.mxu0 0.0
  %4349 = vmatprep.subr.mxu0 0.0
  %4350 = vmatpush1.msra.mxu0 0.0
  %4351 = vmatprep.subr.mxu0 0.0
  %4352 = vmatpush1.msra.mxu0 0.0
  %4353 = vmatprep.subr.mxu0 0.0
  %4354 = vmatpush1.msra.mxu0 0.0
  %4355 = vmatprep.subr.mxu0 0.0
  %4356 = vmatpush1.msra.mxu0 0.0
  %4357 = vmatprep.subr.mxu0 0.0
  %4358 = vmatpush1.msra.mxu0 0.0
  %4359 = vmatprep.subr.mxu0 0.0
  %4360 = vmatpush1.msra.mxu0 0.0
  %4361 = vmatprep.subr.mxu0 0.0
  %4362 = vmatpush1.msra.mxu0 0.0
  %4363 = vmatprep.subr.mxu0 0.0
  %4364 = vmatpush1.msra.mxu0 0.0
  %4365 = vmatprep.subr.mxu0 0.0
  %4366 = vmatpush1.msra.mxu0 0.0
  %4367 = vmatprep.subr.mxu0 0.0
  %4368 = vmatpush1.msra.mxu0 0.0
  %4369 = vmatprep.subr.mxu0 0.0
  %4370 = vmatpush1.msra.mxu0 0.0
  %4371 = vmatprep.subr.mxu0 0.0
  %4372 = vmatpush1.msra.mxu0 0.0
  %4373 = vmatprep.subr.mxu0 0.0
  %4374 = vmatpush1.msra.mxu0 0.0
  %4375 = vmatprep.subr.mxu0 0.0
  %4376 = vmatpush1.msra.mxu0 0.0
  %4377 = vmatprep.subr.mxu0 0.0
  %4378 = vmatpush1.msra.mxu0 0.0
  %4379 = vmatprep.subr.mxu0 0.0
  %4380 = vmatpush1.msra.mxu0 0.0
  %4381 = vmatprep.subr.mxu0 0.0
  %4382 = vmatpush1.msra.mxu0 0.0
  %4383 = vmatprep.subr.mxu0 0.0
  %4384 = vmatpush1.msra.mxu0 0.0
  %4385 = vmatprep.subr.mxu0 0.0
  %4386 = vmatpush1.msra.mxu0 0.0
  %4387 = vmatprep.subr.mxu0 0.0
  %4388 = vmatpush1.msra.mxu0 0.0
  %4389 = vmatprep.subr.mxu0 0.0
  %4390 = vmatpush1.msra.mxu0 0.0
  %4391 = vmatprep.subr.mxu0 0.0
  %4392 = vmatpush1.msra.mxu0 0.0
  %4393 = vmatprep.subr.mxu0 0.0
  %4394 = vmatpush1.msra.mxu0 0.0
  %4395 = vmatprep.mubr.f32.mxu0 0.0
  %4396 = vmatmul.mubr.f32.gmra.mrb[0].mxu0 %v4308
  %v4397 = vpop.f32.mrb[0].mxu0
  %v4398 = vadd.f32 0.0, %v4397
  %v4399 = vpop.f32.mrb[0].mxu0
  %4400 = vmatprep.mubr.f32.mxu0 0.0
  %4401 = vmatmul.mubr.f32.gmra.mrb[0].mxu0 %v4311
  %v4402 = vpop.f32.mrb[0].mxu0
  %v4403 = vadd.f32 0.0, %v4402
  %v4404 = vpop.f32.mrb[0].mxu0
  %4405 = vmatprep.mubr.f32.mxu0 0.0
  %4406 = vmatmul.mubr.f32.gmra.mrb[0].mxu0 %v4314
  %v4407 = vpop.f32.mrb[0].mxu0
  %v4408 = vadd.f32 0.0, %v4407
  %v4409 = vpop.f32.mrb[0].mxu0
  %4410 = vmatprep.mubr.f32.mxu0 0.0
  %4411 = vmatmul.mubr.f32.gmra.mrb[0].mxu0 %v4317
  %v4412 = vpop.f32.mrb[0].mxu0
  %v4413 = vadd.f32 0.0, %v4412
  %v4414 = vpop.f32.mrb[0].mxu0
  %4415 = vmatprep.mubr.f32.mxu0 0.0
  %4416 = vmatmul.mubr.f32.gmra.mrb[0].mxu0 %v4320
  %v4417 = vpop.f32.mrb[0].mxu0
  %v4418 = vadd.f32 0.0, %v4417
  %v4419 = vpop.f32.mrb[0].mxu0
  %4420 = vmatprep.mubr.f32.mxu0 0.0
  %4421 = vmatmul.mubr.f32.gmra.mrb[0].mxu0 %v4323
  %v4422 = vpop.f32.mrb[0].mxu0
  %v4423 = vadd.f32 0.0, %v4422
  %v4424 = vpop.f32.mrb[0].mxu0
  %4425 = vmatprep.mubr.f32.mxu0 0.0
  %4426 = vmatmul.mubr.f32.gmra.mrb[0].mxu0 %v4326
  %v4427 = vpop.f32.mrb[0].mxu0
  %v4428 = vadd.f32 0.0, %v4427
  %v4429 = vpop.f32.mrb[0].mxu0
  %4430 = vmatprep.mubr.f32.mxu0 0.0
  %4431 = vmatmul.mubr.f32.gmra.mrb[0].mxu0 %v4329
  %v4432 = vpop.f32.mrb[0].mxu0
  %v4433 = vadd.f32 0.0, %v4432
  %v4434 = vpop.f32.mrb[0].mxu0
  %4435 = vdwg.mxu0
  %v4436 = vrcp.pop %v4261
  %v4437 = vrcp.pop %v4264
  %v4438 = vrcp.pop %v4267
  %v4439 = vrcp.pop %v4270
  %v4440 = vrcp.pop %v4273
  %v4441 = vrcp.pop %v4276
  %v4442 = vrcp.pop %v4279
  %v4443 = vrcp.pop %v4282
  %v4444 = vmul.f32 %v4398, %v4436
  %v4445 = vmul.f32 %v4403, %v4437
  %v4446 = vmul.f32 %v4408, %v4438
  %v4447 = vmul.f32 %v4413, %v4439
  %v4448 = vmul.f32 %v4418, %v4440
  %v4449 = vmul.f32 %v4423, %v4441
  %v4450 = vmul.f32 %v4428, %v4442
  %v4451 = vmul.f32 %v4433, %v4443
  %v4453 = vsel %vm283, %v4444, 0
  %v4456 = vsel %vm283, %v4445, 0
  %v4459 = vsel %vm283, %v4446, 0
  %v4462 = vsel %vm283, %v4447, 0
  %v4465 = vsel %vm283, %v4448, 0
  %v4468 = vsel %vm283, %v4449, 0
  %v4471 = vsel %vm283, %v4450, 0
  %v4474 = vsel %vm283, %v4451, 0
  %4476 = vmatprep.subr.mxu0 0.0
  %4477 = vmatpush1.msra.mxu0 %v38
  %4478 = vmatprep.subr.mxu0 0.0
  %4479 = vmatpush1.msra.mxu0 0.0
  %4480 = vmatprep.subr.mxu0 0.0
  %4481 = vmatpush1.msra.mxu0 0.0
  %4482 = vmatprep.subr.mxu0 0.0
  %4483 = vmatpush1.msra.mxu0 0.0
  %4484 = vmatprep.subr.mxu0 0.0
  %4485 = vmatpush1.msra.mxu0 0.0
  %4486 = vmatprep.subr.mxu0 0.0
  %4487 = vmatpush1.msra.mxu0 0.0
  %4488 = vmatprep.subr.mxu0 0.0
  %4489 = vmatpush1.msra.mxu0 0.0
  %4490 = vmatprep.subr.mxu0 0.0
  %4491 = vmatpush1.msra.mxu0 0.0
  %4492 = vmatprep.subr.mxu0 0.0
  %4493 = vmatpush1.msra.mxu0 0.0
  %4494 = vmatprep.subr.mxu0 0.0
  %4495 = vmatpush1.msra.mxu0 0.0
  %4496 = vmatprep.subr.mxu0 0.0
  %4497 = vmatpush1.msra.mxu0 0.0
  %4498 = vmatprep.subr.mxu0 0.0
  %4499 = vmatpush1.msra.mxu0 0.0
  %4500 = vmatprep.subr.mxu0 0.0
  %4501 = vmatpush1.msra.mxu0 0.0
  %4502 = vmatprep.subr.mxu0 0.0
  %4503 = vmatpush1.msra.mxu0 0.0
  %4504 = vmatprep.subr.mxu0 0.0
  %4505 = vmatpush1.msra.mxu0 0.0
  %4506 = vmatprep.subr.mxu0 0.0
  %4507 = vmatpush1.msra.mxu0 0.0
  %4508 = vmatprep.subr.mxu0 0.0
  %4509 = vmatpush1.msra.mxu0 0.0
  %4510 = vmatprep.subr.mxu0 0.0
  %4511 = vmatpush1.msra.mxu0 0.0
  %4512 = vmatprep.subr.mxu0 0.0
  %4513 = vmatpush1.msra.mxu0 0.0
  %4514 = vmatprep.subr.mxu0 0.0
  %4515 = vmatpush1.msra.mxu0 0.0
  %4516 = vmatprep.subr.mxu0 0.0
  %4517 = vmatpush1.msra.mxu0 0.0
  %4518 = vmatprep.subr.mxu0 0.0
  %4519 = vmatpush1.msra.mxu0 0.0
  %4520 = vmatprep.subr.mxu0 0.0
  %4521 = vmatpush1.msra.mxu0 0.0
  %4522 = vmatprep.subr.mxu0 0.0
  %4523 = vmatpush1.msra.mxu0 0.0
  %4524 = vmatprep.subr.mxu0 0.0
  %4525 = vmatpush1.msra.mxu0 0.0
  %4526 = vmatprep.subr.mxu0 0.0
  %4527 = vmatpush1.msra.mxu0 0.0
  %4528 = vmatprep.subr.mxu0 0.0
  %4529 = vmatpush1.msra.mxu0 0.0
  %4530 = vmatprep.subr.mxu0 0.0
  %4531 = vmatpush1.msra.mxu0 0.0
  %4532 = vmatprep.subr.mxu0 0.0
  %4533 = vmatpush1.msra.mxu0 0.0
  %4534 = vmatprep.subr.mxu0 0.0
  %4535 = vmatpush1.msra.mxu0 0.0
  %4536 = vmatprep.subr.mxu0 0.0
  %4537 = vmatpush1.msra.mxu0 0.0
  %4538 = vmatprep.subr.mxu0 0.0
  %4539 = vmatpush1.msra.mxu0 0.0
  %4540 = vmatprep.mubr.f32.mxu0 0.0
  %4541 = vmatmul.mubr.f32.gmra.mrb[0].mxu0 %v4453
  %v4542 = vpop.f32.mrb[0].mxu0
  %v4543 = vadd.f32 0.0, %v4542
  %v4544 = vpop.f32.mrb[0].mxu0
  %4545 = vmatprep.mubr.f32.mxu0 0.0
  %4546 = vmatmul.mubr.f32.gmra.mrb[0].mxu0 %v4456
  %v4547 = vpop.f32.mrb[0].mxu0
  %v4548 = vadd.f32 0.0, %v4547
  %v4549 = vpop.f32.mrb[0].mxu0
  %4550 = vmatprep.mubr.f32.mxu0 0.0
  %4551 = vmatmul.mubr.f32.gmra.mrb[0].mxu0 %v4459
  %v4552 = vpop.f32.mrb[0].mxu0
  %v4553 = vadd.f32 0.0, %v4552
  %v4554 = vpop.f32.mrb[0].mxu0
  %4555 = vmatprep.mubr.f32.mxu0 0.0
  %4556 = vmatmul.mubr.f32.gmra.mrb[0].mxu0 %v4462
  %v4557 = vpop.f32.mrb[0].mxu0
  %v4558 = vadd.f32 0.0, %v4557
  %v4559 = vpop.f32.mrb[0].mxu0
  %4560 = vmatprep.mubr.f32.mxu0 0.0
  %4561 = vmatmul.mubr.f32.gmra.mrb[0].mxu0 %v4465
  %v4562 = vpop.f32.mrb[0].mxu0
  %v4563 = vadd.f32 0.0, %v4562
  %v4564 = vpop.f32.mrb[0].mxu0
  %4565 = vmatprep.mubr.f32.mxu0 0.0
  %4566 = vmatmul.mubr.f32.gmra.mrb[0].mxu0 %v4468
  %v4567 = vpop.f32.mrb[0].mxu0
  %v4568 = vadd.f32 0.0, %v4567
  %v4569 = vpop.f32.mrb[0].mxu0
  %4570 = vmatprep.mubr.f32.mxu0 0.0
  %4571 = vmatmul.mubr.f32.gmra.mrb[0].mxu0 %v4471
  %v4572 = vpop.f32.mrb[0].mxu0
  %v4573 = vadd.f32 0.0, %v4572
  %v4574 = vpop.f32.mrb[0].mxu0
  %4575 = vmatprep.mubr.f32.mxu0 0.0
  %4576 = vmatmul.mubr.f32.gmra.mrb[0].mxu0 %v4474
  %v4577 = vpop.f32.mrb[0].mxu0
  %v4578 = vadd.f32 0.0, %v4577
  %v4579 = vpop.f32.mrb[0].mxu0
  %4580 = vdwg.mxu0
  %v4581 = vadd.f32 %v4034, %v4543
  %v4582 = vadd.f32 %v4035, %v4548
  %v4583 = vadd.f32 %v4036, %v4553
  %v4584 = vadd.f32 %v4037, %v4558
  %v4585 = vadd.f32 %v4038, %v4563
  %v4586 = vadd.f32 %v4039, %v4568
  %v4587 = vadd.f32 %v4040, %v4573
  %v4588 = vadd.f32 %v4041, %v4578
  %v4590 = vlaneseq
  %v4591 = vshrl.u32 %v4590, 7
  %v4592 = vsub.s32 0, %v4591
  %v4593 = vrot.slane %v39, %v4592
  %v4595 = vadd.f32 %v2417, %v4593
  %v4596 = vadd.f32 %v2418, %v4593
  %v4597 = vadd.f32 %v2419, %v4593
  %v4598 = vadd.f32 %v2420, %v4593
  %v4599 = vadd.f32 %v2421, %v4593
  %v4600 = vadd.f32 %v2422, %v4593
  %v4601 = vadd.f32 %v2423, %v4593
  %v4602 = vadd.f32 %v2424, %v4593
  %v4603 = vadd.f32 %v4581, %v4593
  %v4604 = vadd.f32 %v4582, %v4593
  %v4605 = vadd.f32 %v4583, %v4593
  %v4606 = vadd.f32 %v4584, %v4593
  %v4607 = vadd.f32 %v4585, %v4593
  %v4608 = vadd.f32 %v4586, %v4593
  %v4609 = vadd.f32 %v4587, %v4593
  %v4610 = vadd.f32 %v4588, %v4593
  %v4611 = vstv %s40
  %v4612 = vmul.f32 %v4611, %v4595
  %v4613 = vmul.f32 %v4611, %v4596
  %v4614 = vmul.f32 %v4611, %v4597
  %v4615 = vmul.f32 %v4611, %v4598
  %v4616 = vmul.f32 %v4611, %v4599
  %v4617 = vmul.f32 %v4611, %v4600
  %v4618 = vmul.f32 %v4611, %v4601
  %v4619 = vmul.f32 %v4611, %v4602
  %v4620 = vmul.f32 %v4611, %v4603
  %v4621 = vmul.f32 %v4611, %v4604
  %v4622 = vmul.f32 %v4611, %v4605
  %v4623 = vmul.f32 %v4611, %v4606
  %v4624 = vmul.f32 %v4611, %v4607
  %v4625 = vmul.f32 %v4611, %v4608
  %v4626 = vmul.f32 %v4611, %v4609
  %v4627 = vmul.f32 %v4611, %v4610
  %v4628 = vadd.f32 %v4612, %v43
  %v4629 = vadd.f32 %v4613, %v44
  %v4630 = vadd.f32 %v4614, %v45
  %v4631 = vadd.f32 %v4615, %v46
  %v4632 = vadd.f32 %v4616, %v47
  %v4633 = vadd.f32 %v4617, %v48
  %v4634 = vadd.f32 %v4618, %v49
  %v4635 = vadd.f32 %v4619, %v50
  %v4636 = vadd.f32 %v4620, %v51
  %v4637 = vadd.f32 %v4621, %v52
  %v4638 = vadd.f32 %v4622, %v53
  %v4639 = vadd.f32 %v4623, %v54
  %v4640 = vadd.f32 %v4624, %v55
  %v4641 = vadd.f32 %v4625, %v56
  %v4642 = vadd.f32 %v4626, %v57
  %v4643 = vadd.f32 %v4627, %v58
  %v4644 = vsel %vm65, %v4628, 0.0
  %4645 = vadd.xlane.f32.xlu0 %v4644
  %v4646 = vpop.xlane.xlu0 %4645
  %v4647 = vsel %vm65, %v4629, 0.0
  %4648 = vadd.xlane.f32.xlu0 %v4647
  %v4649 = vpop.xlane.xlu0 %4648
  %v4650 = vsel %vm65, %v4630, 0.0
  %4651 = vadd.xlane.f32.xlu0 %v4650
  %v4652 = vpop.xlane.xlu0 %4651
  %v4653 = vsel %vm65, %v4631, 0.0
  %4654 = vadd.xlane.f32.xlu0 %v4653
  %v4655 = vpop.xlane.xlu0 %4654
  %v4656 = vsel %vm65, %v4632, 0.0
  %4657 = vadd.xlane.f32.xlu0 %v4656
  %v4658 = vpop.xlane.xlu0 %4657
  %v4659 = vsel %vm65, %v4633, 0.0
  %4660 = vadd.xlane.f32.xlu0 %v4659
  %v4661 = vpop.xlane.xlu0 %4660
  %v4662 = vsel %vm65, %v4634, 0.0
  %4663 = vadd.xlane.f32.xlu0 %v4662
  %v4664 = vpop.xlane.xlu0 %4663
  %v4665 = vsel %vm65, %v4635, 0.0
  %4666 = vadd.xlane.f32.xlu0 %v4665
  %v4667 = vpop.xlane.xlu0 %4666
  %v4668 = vsel %vm65, %v4636, 0.0
  %4669 = vadd.xlane.f32.xlu0 %v4668
  %v4670 = vpop.xlane.xlu0 %4669
  %v4671 = vsel %vm65, %v4637, 0.0
  %4672 = vadd.xlane.f32.xlu0 %v4671
  %v4673 = vpop.xlane.xlu0 %4672
  %v4674 = vsel %vm65, %v4638, 0.0
  %4675 = vadd.xlane.f32.xlu0 %v4674
  %v4676 = vpop.xlane.xlu0 %4675
  %v4677 = vsel %vm65, %v4639, 0.0
  %4678 = vadd.xlane.f32.xlu0 %v4677
  %v4679 = vpop.xlane.xlu0 %4678
  %v4680 = vsel %vm65, %v4640, 0.0
  %4681 = vadd.xlane.f32.xlu0 %v4680
  %v4682 = vpop.xlane.xlu0 %4681
  %v4683 = vsel %vm65, %v4641, 0.0
  %4684 = vadd.xlane.f32.xlu0 %v4683
  %v4685 = vpop.xlane.xlu0 %4684
  %v4686 = vsel %vm65, %v4642, 0.0
  %4687 = vadd.xlane.f32.xlu0 %v4686
  %v4688 = vpop.xlane.xlu0 %4687
  %v4689 = vsel %vm65, %v4643, 0.0
  %4690 = vadd.xlane.f32.xlu0 %v4689
  %v4691 = vpop.xlane.xlu0 %4690
  %v4692 = vrcp.pop 32.0
  %v4693 = vmul.f32 %v4646, %v4692
  %v4694 = vmul.f32 %v4649, %v4692
  %v4695 = vmul.f32 %v4652, %v4692
  %v4696 = vmul.f32 %v4655, %v4692
  %v4697 = vmul.f32 %v4658, %v4692
  %v4698 = vmul.f32 %v4661, %v4692
  %v4699 = vmul.f32 %v4664, %v4692
  %v4700 = vmul.f32 %v4667, %v4692
  %v4701 = vmul.f32 %v4670, %v4692
  %v4702 = vmul.f32 %v4673, %v4692
  %v4703 = vmul.f32 %v4676, %v4692
  %v4704 = vmul.f32 %v4679, %v4692
  %v4705 = vmul.f32 %v4682, %v4692
  %v4706 = vmul.f32 %v4685, %v4692
  %v4707 = vmul.f32 %v4688, %v4692
  %v4708 = vmul.f32 %v4691, %v4692
  %v4709 = vsub.f32 %v4628, %v4693
  %v4710 = vsub.f32 %v4629, %v4694
  %v4711 = vsub.f32 %v4630, %v4695
  %v4712 = vsub.f32 %v4631, %v4696
  %v4713 = vsub.f32 %v4632, %v4697
  %v4714 = vsub.f32 %v4633, %v4698
  %v4715 = vsub.f32 %v4634, %v4699
  %v4716 = vsub.f32 %v4635, %v4700
  %v4717 = vsub.f32 %v4636, %v4701
  %v4718 = vsub.f32 %v4637, %v4702
  %v4719 = vsub.f32 %v4638, %v4703
  %v4720 = vsub.f32 %v4639, %v4704
  %v4721 = vsub.f32 %v4640, %v4705
  %v4722 = vsub.f32 %v4641, %v4706
  %v4723 = vsub.f32 %v4642, %v4707
  %v4724 = vsub.f32 %v4643, %v4708
  %v4725 = vmul.f32 %v4709, %v4709
  %v4726 = vmul.f32 %v4710, %v4710
  %v4727 = vmul.f32 %v4711, %v4711
  %v4728 = vmul.f32 %v4712, %v4712
  %v4729 = vmul.f32 %v4713, %v4713
  %v4730 = vmul.f32 %v4714, %v4714
  %v4731 = vmul.f32 %v4715, %v4715
  %v4732 = vmul.f32 %v4716, %v4716
  %v4733 = vmul.f32 %v4717, %v4717
  %v4734 = vmul.f32 %v4718, %v4718
  %v4735 = vmul.f32 %v4719, %v4719
  %v4736 = vmul.f32 %v4720, %v4720
  %v4737 = vmul.f32 %v4721, %v4721
  %v4738 = vmul.f32 %v4722, %v4722
  %v4739 = vmul.f32 %v4723, %v4723
  %v4740 = vmul.f32 %v4724, %v4724
  %v4741 = vsel %vm65, %v4725, 0.0
  %4742 = vadd.xlane.f32.xlu0 %v4741
  %v4743 = vpop.xlane.xlu0 %4742
  %v4744 = vsel %vm65, %v4726, 0.0
  %4745 = vadd.xlane.f32.xlu0 %v4744
  %v4746 = vpop.xlane.xlu0 %4745
  %v4747 = vsel %vm65, %v4727, 0.0
  %4748 = vadd.xlane.f32.xlu0 %v4747
  %v4749 = vpop.xlane.xlu0 %4748
  %v4750 = vsel %vm65, %v4728, 0.0
  %4751 = vadd.xlane.f32.xlu0 %v4750
  %v4752 = vpop.xlane.xlu0 %4751
  %v4753 = vsel %vm65, %v4729, 0.0
  %4754 = vadd.xlane.f32.xlu0 %v4753
  %v4755 = vpop.xlane.xlu0 %4754
  %v4756 = vsel %vm65, %v4730, 0.0
  %4757 = vadd.xlane.f32.xlu0 %v4756
  %v4758 = vpop.xlane.xlu0 %4757
  %v4759 = vsel %vm65, %v4731, 0.0
  %4760 = vadd.xlane.f32.xlu0 %v4759
  %v4761 = vpop.xlane.xlu0 %4760
  %v4762 = vsel %vm65, %v4732, 0.0
  %4763 = vadd.xlane.f32.xlu0 %v4762
  %v4764 = vpop.xlane.xlu0 %4763
  %v4765 = vsel %vm65, %v4733, 0.0
  %4766 = vadd.xlane.f32.xlu0 %v4765
  %v4767 = vpop.xlane.xlu0 %4766
  %v4768 = vsel %vm65, %v4734, 0.0
  %4769 = vadd.xlane.f32.xlu0 %v4768
  %v4770 = vpop.xlane.xlu0 %4769
  %v4771 = vsel %vm65, %v4735, 0.0
  %4772 = vadd.xlane.f32.xlu0 %v4771
  %v4773 = vpop.xlane.xlu0 %4772
  %v4774 = vsel %vm65, %v4736, 0.0
  %4775 = vadd.xlane.f32.xlu0 %v4774
  %v4776 = vpop.xlane.xlu0 %4775
  %v4777 = vsel %vm65, %v4737, 0.0
  %4778 = vadd.xlane.f32.xlu0 %v4777
  %v4779 = vpop.xlane.xlu0 %4778
  %v4780 = vsel %vm65, %v4738, 0.0
  %4781 = vadd.xlane.f32.xlu0 %v4780
  %v4782 = vpop.xlane.xlu0 %4781
  %v4783 = vsel %vm65, %v4739, 0.0
  %4784 = vadd.xlane.f32.xlu0 %v4783
  %v4785 = vpop.xlane.xlu0 %4784
  %v4786 = vsel %vm65, %v4740, 0.0
  %4787 = vadd.xlane.f32.xlu0 %v4786
  %v4788 = vpop.xlane.xlu0 %4787
  %v4789 = vmul.f32 %v4743, %v4692
  %v4790 = vmul.f32 %v4746, %v4692
  %v4791 = vmul.f32 %v4749, %v4692
  %v4792 = vmul.f32 %v4752, %v4692
  %v4793 = vmul.f32 %v4755, %v4692
  %v4794 = vmul.f32 %v4758, %v4692
  %v4795 = vmul.f32 %v4761, %v4692
  %v4796 = vmul.f32 %v4764, %v4692
  %v4797 = vmul.f32 %v4767, %v4692
  %v4798 = vmul.f32 %v4770, %v4692
  %v4799 = vmul.f32 %v4773, %v4692
  %v4800 = vmul.f32 %v4776, %v4692
  %v4801 = vmul.f32 %v4779, %v4692
  %v4802 = vmul.f32 %v4782, %v4692
  %v4803 = vmul.f32 %v4785, %v4692
  %v4804 = vmul.f32 %v4788, %v4692
  %v4805 = vadd.f32 %v4789, 1e-05
  %v4806 = vadd.f32 %v4790, 1e-05
  %v4807 = vadd.f32 %v4791, 1e-05
  %v4808 = vadd.f32 %v4792, 1e-05
  %v4809 = vadd.f32 %v4793, 1e-05
  %v4810 = vadd.f32 %v4794, 1e-05
  %v4811 = vadd.f32 %v4795, 1e-05
  %v4812 = vadd.f32 %v4796, 1e-05
  %v4813 = vadd.f32 %v4797, 1e-05
  %v4814 = vadd.f32 %v4798, 1e-05
  %v4815 = vadd.f32 %v4799, 1e-05
  %v4816 = vadd.f32 %v4800, 1e-05
  %v4817 = vadd.f32 %v4801, 1e-05
  %v4818 = vadd.f32 %v4802, 1e-05
  %v4819 = vadd.f32 %v4803, 1e-05
  %v4820 = vadd.f32 %v4804, 1e-05
  %v4821 = vrsqrt.pop %v4805
  %v4822 = vrsqrt.pop %v4806
  %v4823 = vrsqrt.pop %v4807
  %v4824 = vrsqrt.pop %v4808
  %v4825 = vrsqrt.pop %v4809
  %v4826 = vrsqrt.pop %v4810
  %v4827 = vrsqrt.pop %v4811
  %v4828 = vrsqrt.pop %v4812
  %v4829 = vrsqrt.pop %v4813
  %v4830 = vrsqrt.pop %v4814
  %v4831 = vrsqrt.pop %v4815
  %v4832 = vrsqrt.pop %v4816
  %v4833 = vrsqrt.pop %v4817
  %v4834 = vrsqrt.pop %v4818
  %v4835 = vrsqrt.pop %v4819
  %v4836 = vrsqrt.pop %v4820
  %v4837 = vmul.f32 %v4709, %v4821
  %v4838 = vmul.f32 %v4710, %v4822
  %v4839 = vmul.f32 %v4711, %v4823
  %v4840 = vmul.f32 %v4712, %v4824
  %v4841 = vmul.f32 %v4713, %v4825
  %v4842 = vmul.f32 %v4714, %v4826
  %v4843 = vmul.f32 %v4715, %v4827
  %v4844 = vmul.f32 %v4716, %v4828
  %v4845 = vmul.f32 %v4717, %v4829
  %v4846 = vmul.f32 %v4718, %v4830
  %v4847 = vmul.f32 %v4719, %v4831
  %v4848 = vmul.f32 %v4720, %v4832
  %v4849 = vmul.f32 %v4721, %v4833
  %v4850 = vmul.f32 %v4722, %v4834
  %v4851 = vmul.f32 %v4723, %v4835
  %v4852 = vmul.f32 %v4724, %v4836
  %v4854 = vlaneseq
  %v4855 = vshrl.u32 %v4854, 7
  %v4856 = vsub.s32 0, %v4855
  %v4857 = vrot.slane %v41, %v4856
  %v4859 = vmul.f32 %v4837, %v4857
  %v4860 = vmul.f32 %v4838, %v4857
  %v4861 = vmul.f32 %v4839, %v4857
  %v4862 = vmul.f32 %v4840, %v4857
  %v4863 = vmul.f32 %v4841, %v4857
  %v4864 = vmul.f32 %v4842, %v4857
  %v4865 = vmul.f32 %v4843, %v4857
  %v4866 = vmul.f32 %v4844, %v4857
  %v4867 = vmul.f32 %v4845, %v4857
  %v4868 = vmul.f32 %v4846, %v4857
  %v4869 = vmul.f32 %v4847, %v4857
  %v4870 = vmul.f32 %v4848, %v4857
  %v4871 = vmul.f32 %v4849, %v4857
  %v4872 = vmul.f32 %v4850, %v4857
  %v4873 = vmul.f32 %v4851, %v4857
  %v4874 = vmul.f32 %v4852, %v4857
  %v4876 = vlaneseq
  %v4877 = vshrl.u32 %v4876, 7
  %v4878 = vsub.s32 0, %v4877
  %v4879 = vrot.slane %v42, %v4878
  %v4881 = vadd.f32 %v4859, %v4879
  %v4882 = vadd.f32 %v4860, %v4879
  %v4883 = vadd.f32 %v4861, %v4879
  %v4884 = vadd.f32 %v4862, %v4879
  %v4885 = vadd.f32 %v4863, %v4879
  %v4886 = vadd.f32 %v4864, %v4879
  %v4887 = vadd.f32 %v4865, %v4879
  %v4888 = vadd.f32 %v4866, %v4879
  %v4889 = vadd.f32 %v4867, %v4879
  %v4890 = vadd.f32 %v4868, %v4879
  %v4891 = vadd.f32 %v4869, %v4879
  %v4892 = vadd.f32 %v4870, %v4879
  %v4893 = vadd.f32 %v4871, %v4879
  %v4894 = vadd.f32 %v4872, %v4879
  %v4895 = vadd.f32 %v4873, %v4879
  %v4896 = vadd.f32 %v4874, %v4879
  %4897 = vst.msk [vmem:[%s8] sm:$0xff] %vm65, %v4881
  %4898 = vst.msk [vmem:[%s8 + $0x8] sm:$0xff] %vm65, %v4882
  %4899 = vst.msk [vmem:[%s8 + $0x10] sm:$0xff] %vm65, %v4883
  %4900 = vst.msk [vmem:[%s8 + $0x18] sm:$0xff] %vm65, %v4884
  %4901 = vst.msk [vmem:[%s8 + $0x20] sm:$0xff] %vm65, %v4885
  %4902 = vst.msk [vmem:[%s8 + $0x28] sm:$0xff] %vm65, %v4886
  %4903 = vst.msk [vmem:[%s8 + $0x30] sm:$0xff] %vm65, %v4887
  %4904 = vst.msk [vmem:[%s8 + $0x38] sm:$0xff] %vm65, %v4888
  %4905 = vst.msk [vmem:[%s8 + $0x40] sm:$0xff] %vm65, %v4889
  %4906 = vst.msk [vmem:[%s8 + $0x48] sm:$0xff] %vm65, %v4890
  %4907 = vst.msk [vmem:[%s8 + $0x50] sm:$0xff] %vm65, %v4891
  %4908 = vst.msk [vmem:[%s8 + $0x58] sm:$0xff] %vm65, %v4892
  %4909 = vst.msk [vmem:[%s8 + $0x60] sm:$0xff] %vm65, %v4893
  %4910 = vst.msk [vmem:[%s8 + $0x68] sm:$0xff] %vm65, %v4894
  %4911 = vst.msk [vmem:[%s8 + $0x70] sm:$0xff] %vm65, %v4895
  %4912 = vst.msk [vmem:[%s8 + $0x78] sm:$0xff] %vm65, %v4896
  // Predicated region
  $region34: #{tpu_custom_call.1} parent=0 // pred_check
    _
  $region35: #{tpu_custom_call.1} parent=0 // pred_check_branch
    %4914 = sbr.rel (0) target = $region37
  $region36: #{tpu_custom_call.1} parent=0 // pred_region
    _
  $region37: #{tpu_custom_call.1} parent=0 // pred_fallthru
    _
  // Predicated region
  $region38: #{tpu_custom_call.1} parent=0 // pred_check
    _
  $region39: #{tpu_custom_call.1} parent=0 // pred_check_branch
    %4916 = sbr.rel (0) target = $region41
  $region40: #{tpu_custom_call.1} parent=0 // pred_region
    _
  $region41: #{tpu_custom_call.1} parent=0 // pred_fallthru
    _

</llo_original>
